<compile_context>
chip_gen: v6e
topology: v6e:2x2x1
jax: 0.10.0
libtpu: 0.0.40
codegen_flags: <defaults>
</compile_context>

<pallas_src>
import math

import jax
import jax.numpy as jnp
from jax.experimental import pallas as pl
from jax.experimental.pallas import tpu as pltpu


_LANES = 128
_SUBLANES = 8
# 1024 rows is the smallest block that keeps the lane-dense output block
# (blk, 128) with blk a multiple of 8 sublanes.
_ROW_QUANTUM = _SUBLANES * _LANES
_TARGET_GRID_STEPS = 4          # >= 2 grid steps per TensorCore on v7x megacore.

# VMEM per x tile (f32): the d (=50) minor dim is lane-padded to 128, so a
# (rows, d<=128) tile costs rows * 128 * 4 B = rows * 512 B.  With double
# buffering plus the in-kernel intermediates (x*x and three (rows, 1) matmul
# columns, each also lane-padded) a block needs roughly 6 * rows * 512 B.
# 4096 rows ~= 12 MiB worst case: fits v5e/v6e/v7x with the explicit limit
# set in lyapunov_forward.
_MAX_BLOCK_ROWS = 4096


def _cdiv(a, b):
    return -(-a // b)


def _lyapunov_kernel(scal_ref, x_ref, w_s_ref, w_c1_ref, w_c2_ref, o_ref):
    """One grid step over a (block_rows, d) slice of x.

    scal_ref : SMEM (1, 3) = [1/(scale*sqrt(d)), ||c1||^2, ||c2||^2]
    x_ref    : VMEM (block_rows, d)  (f32 or bf16)
    w_s_ref  : VMEM (d, 1) = ones        (sum-of-squares column)
    w_c1_ref : VMEM (d, 1) = -2 * c1^T
    w_c2_ref : VMEM (d, 1) = -2 * c2^T
    o_ref    : VMEM (blk, 128) lane-dense output, blk = block_rows // 128
    """
    blk, lanes = o_ref.shape
    x = x_ref[...].astype(jnp.float32)        # upcast (no-op for f32 inputs)
    xx = x * x                                # single VPU square (was 2x sub+sq)

    # ||x-c||^2 = sum(x^2) - 2*x.c + ||c||^2: the three per-row reductions are
    # skinny MXU matmuls; HIGHEST keeps full f32 accuracy (default bf16 passes
    # would cost ~1e-3 relative error and miss the 1e-5 tolerance).
    hp = jax.lax.Precision.HIGHEST
    m_s = jnp.dot(xx, w_s_ref[...], precision=hp,
                  preferred_element_type=jnp.float32)        # (rows, 1)
    m_1 = jnp.dot(x, w_c1_ref[...], precision=hp,
                  preferred_element_type=jnp.float32)        # (rows, 1)
    m_2 = jnp.dot(x, w_c2_ref[...], precision=hp,
                  preferred_element_type=jnp.float32)        # (rows, 1)

    def lane_dense(col):
        # (rows, 1) -> (blk, 128, 1) is a pure row regrouping (layout
        # preserving); the size-1 reduce then performs the sublane->lane
        # relayout on the XLU so the sqrt/exp tail and the output store run
        # on full 128-lane vregs instead of 1-live-lane columns.
        return jnp.sum(col.reshape(blk, lanes, 1), axis=-1)

    s = lane_dense(m_s)                       # sum(x^2)      (blk, 128)
    u1 = lane_dense(m_1)                      # -2*x.c1       (blk, 128)
    u2 = lane_dense(m_2)                      # -2*x.c2       (blk, 128)

    inv = scal_ref[0, 0]
    c1sq = scal_ref[0, 1]
    c2sq = scal_ref[0, 2]
    # Clamp: cancellation in the expanded form can produce tiny negatives.
    d1 = jnp.maximum(s + u1 + c1sq, 0.0)
    d2 = jnp.maximum(s + u2 + c2sq, 0.0)
    o_ref[...] = (-jnp.exp(-jnp.sqrt(d1) * inv)
                  - jnp.exp(-jnp.sqrt(d2) * inv))


def _choose_block_rows(n, max_block_rows):
    max_block_rows = max(_ROW_QUANTUM,
                         (max_block_rows // _ROW_QUANTUM) * _ROW_QUANTUM)
    n_units = _cdiv(n, _ROW_QUANTUM)
    if n_units <= 1:
        return _ROW_QUANTUM
    # Aim for >= _TARGET_GRID_STEPS grid steps (v7x megacore + pipelining),
    # capped by the VMEM-safe maximum tile.
    units_per_block = max(1, n_units // _TARGET_GRID_STEPS)
    return min(max_block_rows, units_per_block * _ROW_QUANTUM)


def lyapunov_forward(x, c1, c2, scale, *, max_block_rows=_MAX_BLOCK_ROWS):
    """x: (N, d); c1, c2: (1, d); scale: scalar.  Returns (N,) float32."""
    N, d = x.shape
    if x.dtype not in (jnp.float32, jnp.bfloat16):
        x = x.astype(jnp.float32)   # bf16 is streamed as-is (half the HBM bytes)

    c1 = c1.astype(jnp.float32).reshape(1, d)
    c2 = c2.astype(jnp.float32).reshape(1, d)
    scale = jnp.asarray(scale, jnp.float32)

    # Hoisted scalars for SMEM: 1/(scale*sqrt(d)), ||c1||^2, ||c2||^2.
    inv = 1.0 / (scale * math.sqrt(d))
    c1sq = jnp.sum(c1 * c1)
    c2sq = jnp.sum(c2 * c2)
    scalars = jnp.stack([inv, c1sq, c2sq]).reshape(1, 3).astype(jnp.float32)

    # MXU reduction weights.
    w_s = jnp.ones((d, 1), jnp.float32)
    w_c1 = (-2.0 * c1).reshape(d, 1)
    w_c2 = (-2.0 * c2).reshape(d, 1)

    block_rows = _choose_block_rows(N, max_block_rows)
    if N <= block_rows:
        # Single-block case (N <= 1024): pad to a lane multiple.  The copy is
        # at most ~0.2 MiB -- unlike the old full-array pad for large ragged N.
        n_pad = _cdiv(N, _LANES) * _LANES
        if n_pad != N:
            x = jnp.pad(x, ((0, n_pad - N), (0, 0)))
        block_rows = n_pad
        grid_n = 1
    else:
        # Multi-block case: no padding.  The partial last block reads stale
        # VMEM in its out-of-bounds rows; those only affect output entries
        # >= N which are sliced off below (rows are fully independent).
        grid_n = _cdiv(N, block_rows)

    blk = block_rows // _LANES

    # Corrected VMEM budget (lane padding: rows * 512 B per same-size buffer).
    est = 6 * block_rows * _LANES * 4 + (1 << 20)
    vmem_limit = int(min(64 * 1024 * 1024, max(32 * 1024 * 1024, 2 * est)))

    out = pl.pallas_call(
        _lyapunov_kernel,
        out_shape=jax.ShapeDtypeStruct((grid_n * blk, _LANES), jnp.float32),
        grid_spec=pltpu.PrefetchScalarGridSpec(
            num_scalar_prefetch=0,
            grid=(grid_n,),
            in_specs=[
                pl.BlockSpec(memory_space=pltpu.MemorySpace.SMEM),   # scalars
                pl.BlockSpec((block_rows, d), lambda i: (i, 0)),     # x tile
                pl.BlockSpec((d, 1), lambda i: (0, 0)),              # ones
                pl.BlockSpec((d, 1), lambda i: (0, 0)),              # -2*c1
                pl.BlockSpec((d, 1), lambda i: (0, 0)),              # -2*c2
            ],
            out_specs=pl.BlockSpec((blk, _LANES), lambda i: (i, 0)),
        ),
        compiler_params=pltpu.CompilerParams(
            dimension_semantics=("parallel",),    # independent blocks -> megacore
            vmem_limit_bytes=vmem_limit),
    )(scalars, x, w_s, w_c1, w_c2)

    return out.reshape(grid_n * block_rows)[:N]


def lyapunov_reference(x, c1, c2, scale):
    d = x.shape[-1]
    denom = scale * math.sqrt(d)
    t1 = jnp.sqrt(jnp.sum((x - c1) ** 2, axis=-1))
    t2 = jnp.sqrt(jnp.sum((x - c2) ** 2, axis=-1))
    return -jnp.exp(-t1 / denom) - jnp.exp(-t2 / denom)


if __name__ == "__main__":
    # Module defaults: c1=0.0, c2=3.0, d=50, scale=1.0
    d = 50
    key = jax.random.PRNGKey(0)

    # Deterministic parameter init, matching nn.Module __init__
    c1 = jnp.zeros((1, d), dtype=jnp.float32)          # 0 * ones(1, d)
    c2 = 3.0 * jnp.ones((1, d), dtype=jnp.float32)     # 3 * ones(1, d)
    scale = jnp.asarray(1.0, dtype=jnp.float32)

    # Case 1: small batch (single-block path, tiny pad, grid=1).
    x_small = jax.random.normal(key, (8, d), dtype=jnp.float32)
    y_small = lyapunov_forward(x_small, c1, c2, scale)
    jax.block_until_ready(y_small)
    assert y_small.shape == (8,)
    assert jnp.allclose(y_small, lyapunov_reference(x_small, c1, c2, scale),
                        atol=1e-5, rtol=1e-5)

    # Case 2: multi-block grid (no-pad path, partial last block, >=2 steps).
    x_big = jax.random.normal(jax.random.PRNGKey(1), (2500, d), dtype=jnp.float32)
    y_big = lyapunov_forward(x_big, c1, c2, scale, max_block_rows=1024)
    jax.block_until_ready(y_big)
    assert y_big.shape == (2500,)
    assert jnp.allclose(y_big, lyapunov_reference(x_big, c1, c2, scale),
                        atol=1e-5, rtol=1e-5)

    print("KERNEL_OK")
</pallas_src>

<mosaic_0001>
module attributes {stable_mosaic.version = 11 : i64} {
  func.func @_lyapunov_kernel(%arg0: i32, %arg1: memref<1x3xf32, #tpu.memory_space<smem>>, %arg2: memref<128x50xf32, #tpu.memory_space<vmem>>, %arg3: memref<50x1xf32, #tpu.memory_space<vmem>>, %arg4: memref<50x1xf32, #tpu.memory_space<vmem>>, %arg5: memref<50x1xf32, #tpu.memory_space<vmem>>, %arg6: memref<1x128xf32, #tpu.memory_space<vmem>>) attributes {dimension_semantics = [#tpu.dimension_semantics<parallel>], iteration_bounds = array<i64: 1>, scalar_prefetch = 0 : i64, scratch_operands = 0 : i64, tpu.core_type = #tpu.core_type<tc>, window_params = [{transform_indices = @transform_0, window_bounds = array<i64: 1, 3>}, {transform_indices = @transform_1, window_bounds = array<i64: 128, 50>}, {pipeline_mode = #tpu.pipeline_mode<synchronous>, transform_indices = @transform_2, window_bounds = array<i64: 50, 1>}, {pipeline_mode = #tpu.pipeline_mode<synchronous>, transform_indices = @transform_3, window_bounds = array<i64: 50, 1>}, {pipeline_mode = #tpu.pipeline_mode<synchronous>, transform_indices = @transform_4, window_bounds = array<i64: 50, 1>}, {transform_indices = @transform_5, window_bounds = array<i64: 1, 128>}]} {
    %c0 = arith.constant 0 : index
    %c0_0 = arith.constant 0 : index
    %0 = vector.load %arg2[%c0, %c0_0] : memref<128x50xf32, #tpu.memory_space<vmem>>, vector<128x50xf32>
    %1 = arith.mulf %0, %0 : vector<128x50xf32>
    %c0_1 = arith.constant 0 : index
    %c0_2 = arith.constant 0 : index
    %2 = vector.load %arg3[%c0_1, %c0_2] : memref<50x1xf32, #tpu.memory_space<vmem>>, vector<50x1xf32>
    %cst = arith.constant dense<0.000000e+00> : vector<128x1xf32>
    %3 = tpu.matmul %1, %2, %cst {dimension_numbers = #tpu.dot_dimension_numbers<[1], [0], [0], [1], [0, 0, 1, 1], [], []>, precision = #tpu.contract_precision<fp32>} : vector<128x50xf32>, vector<50x1xf32>, vector<128x1xf32> -> vector<128x1xf32>
    %c0_3 = arith.constant 0 : index
    %c0_4 = arith.constant 0 : index
    %4 = vector.load %arg4[%c0_3, %c0_4] : memref<50x1xf32, #tpu.memory_space<vmem>>, vector<50x1xf32>
    %cst_5 = arith.constant dense<0.000000e+00> : vector<128x1xf32>
    %5 = tpu.matmul %0, %4, %cst_5 {dimension_numbers = #tpu.dot_dimension_numbers<[1], [0], [0], [1], [0, 0, 1, 1], [], []>, precision = #tpu.contract_precision<fp32>} : vector<128x50xf32>, vector<50x1xf32>, vector<128x1xf32> -> vector<128x1xf32>
    %c0_6 = arith.constant 0 : index
    %c0_7 = arith.constant 0 : index
    %6 = vector.load %arg5[%c0_6, %c0_7] : memref<50x1xf32, #tpu.memory_space<vmem>>, vector<50x1xf32>
    %cst_8 = arith.constant dense<0.000000e+00> : vector<128x1xf32>
    %7 = tpu.matmul %0, %6, %cst_8 {dimension_numbers = #tpu.dot_dimension_numbers<[1], [0], [0], [1], [0, 0, 1, 1], [], []>, precision = #tpu.contract_precision<fp32>} : vector<128x50xf32>, vector<50x1xf32>, vector<128x1xf32> -> vector<128x1xf32>
    %8 = vector.shape_cast %3 : vector<128x1xf32> to vector<1x128x1xf32>
    %cst_9 = arith.constant dense<0.000000e+00> : vector<1x128xf32>
    %9 = vector.multi_reduction <add>, %8, %cst_9 [2] : vector<1x128x1xf32> to vector<1x128xf32>
    %10 = vector.shape_cast %5 : vector<128x1xf32> to vector<1x128x1xf32>
    %cst_10 = arith.constant dense<0.000000e+00> : vector<1x128xf32>
    %11 = vector.multi_reduction <add>, %10, %cst_10 [2] : vector<1x128x1xf32> to vector<1x128xf32>
    %12 = vector.shape_cast %7 : vector<128x1xf32> to vector<1x128x1xf32>
    %cst_11 = arith.constant dense<0.000000e+00> : vector<1x128xf32>
    %13 = vector.multi_reduction <add>, %12, %cst_11 [2] : vector<1x128x1xf32> to vector<1x128xf32>
    %c0_12 = arith.constant 0 : index
    %c0_13 = arith.constant 0 : index
    %14 = memref.load %arg1[%c0_12, %c0_13] : memref<1x3xf32, #tpu.memory_space<smem>>
    %c0_14 = arith.constant 0 : index
    %c1 = arith.constant 1 : index
    %15 = memref.load %arg1[%c0_14, %c1] : memref<1x3xf32, #tpu.memory_space<smem>>
    %c0_15 = arith.constant 0 : index
    %c2 = arith.constant 2 : index
    %16 = memref.load %arg1[%c0_15, %c2] : memref<1x3xf32, #tpu.memory_space<smem>>
    %17 = arith.addf %9, %11 : vector<1x128xf32>
    %18 = vector.broadcast %15 : f32 to vector<1x128xf32>
    %19 = arith.addf %17, %18 : vector<1x128xf32>
    %cst_16 = arith.constant 0.000000e+00 : f32
    %20 = vector.broadcast %cst_16 : f32 to vector<1x128xf32>
    %21 = arith.maximumf %19, %20 : vector<1x128xf32>
    %22 = arith.addf %9, %13 : vector<1x128xf32>
    %23 = vector.broadcast %16 : f32 to vector<1x128xf32>
    %24 = arith.addf %22, %23 : vector<1x128xf32>
    %cst_17 = arith.constant 0.000000e+00 : f32
    %25 = vector.broadcast %cst_17 : f32 to vector<1x128xf32>
    %26 = arith.maximumf %24, %25 : vector<1x128xf32>
    %27 = math.sqrt %21 : vector<1x128xf32>
    %cst_18 = arith.constant 0.000000e+00 : f32
    %28 = vector.broadcast %cst_18 : f32 to vector<1x128xf32>
    %29 = arith.subf %28, %27 : vector<1x128xf32>
    %30 = vector.broadcast %14 : f32 to vector<1x128xf32>
    %31 = arith.mulf %29, %30 : vector<1x128xf32>
    %32 = math.exp %31 : vector<1x128xf32>
    %cst_19 = arith.constant 0.000000e+00 : f32
    %33 = vector.broadcast %cst_19 : f32 to vector<1x128xf32>
    %34 = arith.subf %33, %32 : vector<1x128xf32>
    %35 = math.sqrt %26 : vector<1x128xf32>
    %cst_20 = arith.constant 0.000000e+00 : f32
    %36 = vector.broadcast %cst_20 : f32 to vector<1x128xf32>
    %37 = arith.subf %36, %35 : vector<1x128xf32>
    %38 = vector.broadcast %14 : f32 to vector<1x128xf32>
    %39 = arith.mulf %37, %38 : vector<1x128xf32>
    %40 = math.exp %39 : vector<1x128xf32>
    %41 = arith.subf %34, %40 : vector<1x128xf32>
    %c0_21 = arith.constant 0 : index
    %c0_22 = arith.constant 0 : index
    %42 = vector.load %arg6[%c0_21, %c0_22] : memref<1x128xf32, #tpu.memory_space<vmem>>, vector<1x128xf32>
    tpu.vector_store %arg6[%c0_21, %c0_22], %41 {strides = array<i32>} : memref<1x128xf32, #tpu.memory_space<vmem>>, vector<1x128xf32>,
    return
  }
  func.func @transform_0(%arg0: i32) -> (i32, i32) {
    %c0_i32 = arith.constant 0 : i32
    %c0_i32_0 = arith.constant 0 : i32
    %c0_i32_1 = arith.constant 0 : i32
    return %c0_i32, %c0_i32_0 : i32, i32
  }
  func.func @transform_1(%arg0: i32) -> (i32, i32) {
    %c0_i32 = arith.constant 0 : i32
    %c0_i32_0 = arith.constant 0 : i32
    return %arg0, %c0_i32 : i32, i32
  }
  func.func @transform_2(%arg0: i32) -> (i32, i32) {
    %c0_i32 = arith.constant 0 : i32
    %c0_i32_0 = arith.constant 0 : i32
    %c0_i32_1 = arith.constant 0 : i32
    return %c0_i32, %c0_i32_0 : i32, i32
  }
  func.func @transform_3(%arg0: i32) -> (i32, i32) {
    %c0_i32 = arith.constant 0 : i32
    %c0_i32_0 = arith.constant 0 : i32
    %c0_i32_1 = arith.constant 0 : i32
    return %c0_i32, %c0_i32_0 : i32, i32
  }
  func.func @transform_4(%arg0: i32) -> (i32, i32) {
    %c0_i32 = arith.constant 0 : i32
    %c0_i32_0 = arith.constant 0 : i32
    %c0_i32_1 = arith.constant 0 : i32
    return %c0_i32, %c0_i32_0 : i32, i32
  }
  func.func @transform_5(%arg0: i32) -> (i32, i32) {
    %c0_i32 = arith.constant 0 : i32
    %c0_i32_0 = arith.constant 0 : i32
    return %arg0, %c0_i32 : i32, i32
  }
}

</mosaic_0001>

<llo_original>
// kernel: tpu_custom_call.1
$region0: #{tpu_custom_call.1}
  #allocation0 [shape = 'u32[]', space=smem, size = 0x4, offset = 0x4, fixed_abs, tag = 'smem constant byte address 0x4 - core index']
  #allocation1 [shape = 'u32[144,128]{1,0:T(1,128)}', space=vmem, size = 0x12000, scoped, tag = 'internal scratch']
  %s0 = inlined_call_operand.vmem [shape: f32[1,3], index: 0, kind: input, shape index: {}]
  %s1 = inlined_call_operand.vmem [shape: f32[128,50], index: 1, kind: input, shape index: {}]
  %s2 = inlined_call_operand.vmem [shape: f32[50,1], index: 2, kind: input, shape index: {}]
  %s3 = inlined_call_operand.vmem [shape: f32[50,1], index: 3, kind: input, shape index: {}]
  %s4 = inlined_call_operand.vmem [shape: f32[50,1], index: 4, kind: input, shape index: {}]
  %s5 = inlined_call_operand.hbm [shape: f32[1,128], index: 5, kind: output, shape index: {}]
  %s6 = sld [smem:[#allocation0]]
  $region34: #{tpu_custom_call.1} parent=0
    _
  %s8 = ssub.s32 1, %s6
  %s9 = scalar_select 0, %s8, %s6
  $region1: #{tpu_custom_call.1} parent=0
    #allocation2 [shape = 'u8[512]{0}', space=smem, size = 0x200, scoped, tag = 'input window, operand 0, single buffered']
    #allocation3 [shape = 's32[1]{0}', space=sflag, size = 0x4, scoped, tag = 'scoped memory for tpu_custom_call.1']
    #allocation4 [shape = 's32[1]{0}', space=sflag, size = 0x4, scoped, tag = 'scoped memory for tpu_custom_call.1']
    #allocation5 [shape = 'u8[512]{0}', space=vmem, size = 0x400, scoped, tag = 'output window, operand 0, single buffered']
    %10 = vsyncpa [#allocation4], 0
    %11 = vsyncpa [#allocation3], 0
    // Predicated region
    $region2: #{tpu_custom_call.1} parent=1 // pred_check
      _
    $region3: #{tpu_custom_call.1} parent=1 // pred_check_branch
      %13 = sbr.rel (0) target = $region5
    $region4: #{tpu_custom_call.1} parent=1 // pred_region
      %s15 = ssub.s32 16, 16
      %16 = vsyncadd [#allocation4], %s15
      %s18 = sshll.u32 %s0, 4
      %s19 = int_to_ptr.vmem [resolvable:$true] %s18
      %21 = dma.vmem_to_smem %s19, 16, [#allocation2], [#allocation4]
    $region5: #{tpu_custom_call.1} parent=1 // pred_fallthru
      _
    // Predicated region
    $region6: #{tpu_custom_call.1} parent=1 // pred_check
      _
    $region7: #{tpu_custom_call.1} parent=1 // pred_check_branch
      %23 = sbr.rel (0) target = $region9
    $region8: #{tpu_custom_call.1} parent=1 // pred_region
      _
    $region9: #{tpu_custom_call.1} parent=1 // pred_fallthru
      _
    // Predicated region
    $region10: #{tpu_custom_call.1} parent=1 // pred_check
      _
    $region11: #{tpu_custom_call.1} parent=1 // pred_check_branch
      %25 = sbr.rel (0) target = $region13
    $region12: #{tpu_custom_call.1} parent=1 // pred_region
      _
    $region13: #{tpu_custom_call.1} parent=1 // pred_fallthru
      _
    // Predicated region
    $region14: #{tpu_custom_call.1} parent=1 // pred_check
      _
    $region15: #{tpu_custom_call.1} parent=1 // pred_check_branch
      %27 = sbr.rel (0) target = $region17
    $region16: #{tpu_custom_call.1} parent=1 // pred_region
      _
    $region17: #{tpu_custom_call.1} parent=1 // pred_fallthru
      _
    // Predicated region
    $region18: #{tpu_custom_call.1} parent=1 // pred_check
      _
    $region19: #{tpu_custom_call.1} parent=1 // pred_check_branch
      %29 = sbr.rel (0) target = $region21
    $region20: #{tpu_custom_call.1} parent=1 // pred_region
      _
    $region21: #{tpu_custom_call.1} parent=1 // pred_fallthru
      _
    // Predicated region
    $region22: #{tpu_custom_call.1} parent=1 // pred_check
      _
    $region23: #{tpu_custom_call.1} parent=1 // pred_check_branch
      %31 = sbr.rel (0) target = $region25
    $region24: #{tpu_custom_call.1} parent=1 // pred_region
      %32 = dma.done [#allocation4], 16
    $region25: #{tpu_custom_call.1} parent=1 // pred_fallthru
      _
    %33 = sfence
    %v34 = vld [vmem:[%s1] sm:$0xff]
    %v35 = vld [vmem:[%s1 + $0x8] sm:$0xff]
    %v36 = vld [vmem:[%s1 + $0x10] sm:$0xff]
    %v37 = vld [vmem:[%s1 + $0x18] sm:$0xff]
    %v38 = vld [vmem:[%s1 + $0x20] sm:$0xff]
    %v39 = vld [vmem:[%s1 + $0x28] sm:$0xff]
    %v40 = vld [vmem:[%s1 + $0x30] sm:$0xff]
    %v41 = vld [vmem:[%s1 + $0x38] sm:$0xff]
    %v42 = vld [vmem:[%s1 + $0x40] sm:$0xff]
    %v43 = vld [vmem:[%s1 + $0x48] sm:$0xff]
    %v44 = vld [vmem:[%s1 + $0x50] sm:$0xff]
    %v45 = vld [vmem:[%s1 + $0x58] sm:$0xff]
    %v46 = vld [vmem:[%s1 + $0x60] sm:$0xff]
    %v47 = vld [vmem:[%s1 + $0x68] sm:$0xff]
    %v48 = vld [vmem:[%s1 + $0x70] sm:$0xff]
    %v49 = vld [vmem:[%s1 + $0x78] sm:$0xff]
    %v50 = vmul.f32 %v34, %v34
    %v51 = vmul.f32 %v35, %v35
    %v52 = vmul.f32 %v36, %v36
    %v53 = vmul.f32 %v37, %v37
    %v54 = vmul.f32 %v38, %v38
    %v55 = vmul.f32 %v39, %v39
    %v56 = vmul.f32 %v40, %v40
    %v57 = vmul.f32 %v41, %v41
    %v58 = vmul.f32 %v42, %v42
    %v59 = vmul.f32 %v43, %v43
    %v60 = vmul.f32 %v44, %v44
    %v61 = vmul.f32 %v45, %v45
    %v62 = vmul.f32 %v46, %v46
    %v63 = vmul.f32 %v47, %v47
    %v64 = vmul.f32 %v48, %v48
    %v65 = vmul.f32 %v49, %v49
    %v66 = vld [vmem:[%s2] sm:$0xff]
    %v67 = vld [vmem:[%s2 + $0x8] sm:$0xff]
    %v68 = vld [vmem:[%s2 + $0x10] sm:$0xff]
    %v69 = vld [vmem:[%s2 + $0x18] sm:$0xff]
    %v70 = vld [vmem:[%s2 + $0x20] sm:$0xff]
    %v71 = vld [vmem:[%s2 + $0x28] sm:$0xff]
    %v72 = vld [vmem:[%s2 + $0x30] sm:$0x3]
    %vm73 = vcmask 408576
    %v75 = vsel %vm73, %v50, 0
    %v78 = vsel %vm73, %v51, 0
    %v81 = vsel %vm73, %v52, 0
    %v84 = vsel %vm73, %v53, 0
    %v87 = vsel %vm73, %v54, 0
    %v90 = vsel %vm73, %v55, 0
    %v93 = vsel %vm73, %v56, 0
    %v96 = vsel %vm73, %v57, 0
    %v99 = vsel %vm73, %v58, 0
    %v102 = vsel %vm73, %v59, 0
    %v105 = vsel %vm73, %v60, 0
    %v108 = vsel %vm73, %v61, 0
    %v111 = vsel %vm73, %v62, 0
    %v114 = vsel %vm73, %v63, 0
    %v117 = vsel %vm73, %v64, 0
    %v120 = vsel %vm73, %v65, 0
    %vm122 = vcmask 1041408
    %v124 = vsel %vm122, %v72, 0
    %126 = vmatprep.subr.mxu0 0.0
    %127 = vmatpush1.msra.mxu0 0.0
    %128 = vmatprep.subr.mxu0 0.0
    %129 = vmatpush1.msra.mxu0 0.0
    %130 = vmatprep.subr.mxu0 0.0
    %131 = vmatpush1.msra.mxu0 0.0
    %132 = vmatprep.subr.mxu0 0.0
    %133 = vmatpush1.msra.mxu0 0.0
    %134 = vmatprep.subr.mxu0 0.0
    %135 = vmatpush1.msra.mxu0 0.0
    %136 = vmatprep.subr.mxu0 0.0
    %137 = vmatpush1.msra.mxu0 0.0
    %138 = vmatprep.subr.mxu0 0.0
    %139 = vmatpush1.msra.mxu0 0.0
    %140 = vmatprep.subr.mxu0 0.0
    %141 = vmatpush1.msra.mxu0 0.0
    %142 = vmatprep.subr.mxu0 0.0
    %143 = vmatpush1.msra.mxu0 0.0
    %144 = vmatprep.subr.mxu0 0.0
    %v145 = vand.u32 %v124, 4294901760
    %146 = vmatpush1.msra.mxu0 %v145
    %147 = vmatprep.subr.mxu0 0.0
    %v148 = vand.u32 %v71, 4294901760
    %149 = vmatpush1.msra.mxu0 %v148
    %150 = vmatprep.subr.mxu0 0.0
    %v151 = vand.u32 %v70, 4294901760
    %152 = vmatpush1.msra.mxu0 %v151
    %153 = vmatprep.subr.mxu0 0.0
    %v154 = vand.u32 %v69, 4294901760
    %155 = vmatpush1.msra.mxu0 %v154
    %156 = vmatprep.subr.mxu0 0.0
    %v157 = vand.u32 %v68, 4294901760
    %158 = vmatpush1.msra.mxu0 %v157
    %159 = vmatprep.subr.mxu0 0.0
    %v160 = vand.u32 %v67, 4294901760
    %161 = vmatpush1.msra.mxu0 %v160
    %162 = vmatprep.subr.mxu0 0.0
    %v163 = vand.u32 %v66, 4294901760
    %164 = vmatpush1.msra.mxu0 %v163
    %165 = vmatprep.subr.mxu0 0.0
    %166 = vmatpush2.msra.mxu0 0.0
    %167 = vmatprep.subr.mxu0 0.0
    %168 = vmatpush2.msra.mxu0 0.0
    %169 = vmatprep.subr.mxu0 0.0
    %170 = vmatpush2.msra.mxu0 0.0
    %171 = vmatprep.subr.mxu0 0.0
    %172 = vmatpush2.msra.mxu0 0.0
    %173 = vmatprep.subr.mxu0 0.0
    %174 = vmatpush2.msra.mxu0 0.0
    %175 = vmatprep.subr.mxu0 0.0
    %176 = vmatpush2.msra.mxu0 0.0
    %177 = vmatprep.subr.mxu0 0.0
    %178 = vmatpush2.msra.mxu0 0.0
    %179 = vmatprep.subr.mxu0 0.0
    %180 = vmatpush2.msra.mxu0 0.0
    %181 = vmatprep.subr.mxu0 0.0
    %182 = vmatpush2.msra.mxu0 0.0
    %183 = vmatprep.subr.mxu0 0.0
    %184 = vmatpush2.msra.mxu0 0.0
    %185 = vmatprep.subr.mxu0 0.0
    %186 = vmatpush2.msra.mxu0 0.0
    %187 = vmatprep.subr.mxu0 0.0
    %188 = vmatpush2.msra.mxu0 0.0
    %189 = vmatprep.subr.mxu0 0.0
    %190 = vmatpush2.msra.mxu0 0.0
    %191 = vmatprep.subr.mxu0 0.0
    %192 = vmatpush2.msra.mxu0 0.0
    %193 = vmatprep.subr.mxu0 0.0
    %194 = vmatpush2.msra.mxu0 0.0
    %195 = vmatprep.subr.mxu0 0.0
    %196 = vmatpush2.msra.mxu0 0.0
    %197 = vmatprep.mubr.f32.mxu0 0.0
    %v198 = vand.u32 %v75, 4294901760
    %v199 = vsub.f32 %v75, %v198
    %v200 = vand.u32 %v199, 4294901760
    %v201 = vsub.f32 %v199, %v200
    %v202 = vand.u32 %v201, 4294901760
    %203 = vmatmul.mubr.f32.gmra.mxu0 %v202
    %v204 = vpop.f32.mrf.mxu0
    %v205 = vadd.f32 0.0, %v204
    %v206 = vpop.f32.mrf.mxu0
    %207 = vmatprep.mubr.f32.mxu0 0.0
    %v208 = vand.u32 %v78, 4294901760
    %v209 = vsub.f32 %v78, %v208
    %v210 = vand.u32 %v209, 4294901760
    %v211 = vsub.f32 %v209, %v210
    %v212 = vand.u32 %v211, 4294901760
    %213 = vmatmul.mubr.f32.gmra.mxu0 %v212
    %v214 = vpop.f32.mrf.mxu0
    %v215 = vadd.f32 0.0, %v214
    %v216 = vpop.f32.mrf.mxu0
    %217 = vmatprep.mubr.f32.mxu0 0.0
    %v218 = vand.u32 %v81, 4294901760
    %v219 = vsub.f32 %v81, %v218
    %v220 = vand.u32 %v219, 4294901760
    %v221 = vsub.f32 %v219, %v220
    %v222 = vand.u32 %v221, 4294901760
    %223 = vmatmul.mubr.f32.gmra.mxu0 %v222
    %v224 = vpop.f32.mrf.mxu0
    %v225 = vadd.f32 0.0, %v224
    %v226 = vpop.f32.mrf.mxu0
    %227 = vmatprep.mubr.f32.mxu0 0.0
    %v228 = vand.u32 %v84, 4294901760
    %v229 = vsub.f32 %v84, %v228
    %v230 = vand.u32 %v229, 4294901760
    %v231 = vsub.f32 %v229, %v230
    %v232 = vand.u32 %v231, 4294901760
    %233 = vmatmul.mubr.f32.gmra.mxu0 %v232
    %v234 = vpop.f32.mrf.mxu0
    %v235 = vadd.f32 0.0, %v234
    %v236 = vpop.f32.mrf.mxu0
    %237 = vmatprep.mubr.f32.mxu0 0.0
    %v238 = vand.u32 %v87, 4294901760
    %v239 = vsub.f32 %v87, %v238
    %v240 = vand.u32 %v239, 4294901760
    %v241 = vsub.f32 %v239, %v240
    %v242 = vand.u32 %v241, 4294901760
    %243 = vmatmul.mubr.f32.gmra.mxu0 %v242
    %v244 = vpop.f32.mrf.mxu0
    %v245 = vadd.f32 0.0, %v244
    %v246 = vpop.f32.mrf.mxu0
    %247 = vmatprep.mubr.f32.mxu0 0.0
    %v248 = vand.u32 %v90, 4294901760
    %v249 = vsub.f32 %v90, %v248
    %v250 = vand.u32 %v249, 4294901760
    %v251 = vsub.f32 %v249, %v250
    %v252 = vand.u32 %v251, 4294901760
    %253 = vmatmul.mubr.f32.gmra.mxu0 %v252
    %v254 = vpop.f32.mrf.mxu0
    %v255 = vadd.f32 0.0, %v254
    %v256 = vpop.f32.mrf.mxu0
    %257 = vmatprep.mubr.f32.mxu0 0.0
    %v258 = vand.u32 %v93, 4294901760
    %v259 = vsub.f32 %v93, %v258
    %v260 = vand.u32 %v259, 4294901760
    %v261 = vsub.f32 %v259, %v260
    %v262 = vand.u32 %v261, 4294901760
    %263 = vmatmul.mubr.f32.gmra.mxu0 %v262
    %v264 = vpop.f32.mrf.mxu0
    %v265 = vadd.f32 0.0, %v264
    %v266 = vpop.f32.mrf.mxu0
    %267 = vmatprep.mubr.f32.mxu0 0.0
    %v268 = vand.u32 %v96, 4294901760
    %v269 = vsub.f32 %v96, %v268
    %v270 = vand.u32 %v269, 4294901760
    %v271 = vsub.f32 %v269, %v270
    %v272 = vand.u32 %v271, 4294901760
    %273 = vmatmul.mubr.f32.gmra.mxu0 %v272
    %v274 = vpop.f32.mrf.mxu0
    %v275 = vadd.f32 0.0, %v274
    %v276 = vpop.f32.mrf.mxu0
    %277 = vmatprep.mubr.f32.mxu0 0.0
    %v278 = vand.u32 %v99, 4294901760
    %v279 = vsub.f32 %v99, %v278
    %v280 = vand.u32 %v279, 4294901760
    %v281 = vsub.f32 %v279, %v280
    %v282 = vand.u32 %v281, 4294901760
    %283 = vmatmul.mubr.f32.gmra.mxu0 %v282
    %v284 = vpop.f32.mrf.mxu0
    %v285 = vadd.f32 0.0, %v284
    %v286 = vpop.f32.mrf.mxu0
    %287 = vmatprep.mubr.f32.mxu0 0.0
    %v288 = vand.u32 %v102, 4294901760
    %v289 = vsub.f32 %v102, %v288
    %v290 = vand.u32 %v289, 4294901760
    %v291 = vsub.f32 %v289, %v290
    %v292 = vand.u32 %v291, 4294901760
    %293 = vmatmul.mubr.f32.gmra.mxu0 %v292
    %v294 = vpop.f32.mrf.mxu0
    %v295 = vadd.f32 0.0, %v294
    %v296 = vpop.f32.mrf.mxu0
    %297 = vmatprep.mubr.f32.mxu0 0.0
    %v298 = vand.u32 %v105, 4294901760
    %v299 = vsub.f32 %v105, %v298
    %v300 = vand.u32 %v299, 4294901760
    %v301 = vsub.f32 %v299, %v300
    %v302 = vand.u32 %v301, 4294901760
    %303 = vmatmul.mubr.f32.gmra.mxu0 %v302
    %v304 = vpop.f32.mrf.mxu0
    %v305 = vadd.f32 0.0, %v304
    %v306 = vpop.f32.mrf.mxu0
    %307 = vmatprep.mubr.f32.mxu0 0.0
    %v308 = vand.u32 %v108, 4294901760
    %v309 = vsub.f32 %v108, %v308
    %v310 = vand.u32 %v309, 4294901760
    %v311 = vsub.f32 %v309, %v310
    %v312 = vand.u32 %v311, 4294901760
    %313 = vmatmul.mubr.f32.gmra.mxu0 %v312
    %v314 = vpop.f32.mrf.mxu0
    %v315 = vadd.f32 0.0, %v314
    %v316 = vpop.f32.mrf.mxu0
    %317 = vmatprep.mubr.f32.mxu0 0.0
    %v318 = vand.u32 %v111, 4294901760
    %v319 = vsub.f32 %v111, %v318
    %v320 = vand.u32 %v319, 4294901760
    %v321 = vsub.f32 %v319, %v320
    %v322 = vand.u32 %v321, 4294901760
    %323 = vmatmul.mubr.f32.gmra.mxu0 %v322
    %v324 = vpop.f32.mrf.mxu0
    %v325 = vadd.f32 0.0, %v324
    %v326 = vpop.f32.mrf.mxu0
    %327 = vmatprep.mubr.f32.mxu0 0.0
    %v328 = vand.u32 %v114, 4294901760
    %v329 = vsub.f32 %v114, %v328
    %v330 = vand.u32 %v329, 4294901760
    %v331 = vsub.f32 %v329, %v330
    %v332 = vand.u32 %v331, 4294901760
    %333 = vmatmul.mubr.f32.gmra.mxu0 %v332
    %v334 = vpop.f32.mrf.mxu0
    %v335 = vadd.f32 0.0, %v334
    %v336 = vpop.f32.mrf.mxu0
    %337 = vmatprep.mubr.f32.mxu0 0.0
    %v338 = vand.u32 %v117, 4294901760
    %v339 = vsub.f32 %v117, %v338
    %v340 = vand.u32 %v339, 4294901760
    %v341 = vsub.f32 %v339, %v340
    %v342 = vand.u32 %v341, 4294901760
    %343 = vmatmul.mubr.f32.gmra.mxu0 %v342
    %v344 = vpop.f32.mrf.mxu0
    %v345 = vadd.f32 0.0, %v344
    %v346 = vpop.f32.mrf.mxu0
    %347 = vmatprep.mubr.f32.mxu0 0.0
    %v348 = vand.u32 %v120, 4294901760
    %v349 = vsub.f32 %v120, %v348
    %v350 = vand.u32 %v349, 4294901760
    %v351 = vsub.f32 %v349, %v350
    %v352 = vand.u32 %v351, 4294901760
    %353 = vmatmul.mubr.f32.gmra.mxu0 %v352
    %v354 = vpop.f32.mrf.mxu0
    %v355 = vadd.f32 0.0, %v354
    %v356 = vpop.f32.mrf.mxu0
    %357 = vdwg.mxu0
    %358 = vmatprep.subr.mxu0 0.0
    %359 = vmatpush1.msra.mxu0 0.0
    %360 = vmatprep.subr.mxu0 0.0
    %361 = vmatpush1.msra.mxu0 0.0
    %362 = vmatprep.subr.mxu0 0.0
    %363 = vmatpush1.msra.mxu0 0.0
    %364 = vmatprep.subr.mxu0 0.0
    %365 = vmatpush1.msra.mxu0 0.0
    %366 = vmatprep.subr.mxu0 0.0
    %367 = vmatpush1.msra.mxu0 0.0
    %368 = vmatprep.subr.mxu0 0.0
    %369 = vmatpush1.msra.mxu0 0.0
    %370 = vmatprep.subr.mxu0 0.0
    %371 = vmatpush1.msra.mxu0 0.0
    %372 = vmatprep.subr.mxu0 0.0
    %373 = vmatpush1.msra.mxu0 0.0
    %374 = vmatprep.subr.mxu0 0.0
    %375 = vmatpush1.msra.mxu0 0.0
    %376 = vmatprep.subr.mxu0 0.0
    %v377 = vand.u32 %v124, 4294901760
    %v378 = vsub.f32 %v124, %v377
    %v379 = vand.u32 %v378, 4294901760
    %v380 = vsub.f32 %v378, %v379
    %v381 = vand.u32 %v380, 4294901760
    %382 = vmatpush1.msra.mxu0 %v381
    %383 = vmatprep.subr.mxu0 0.0
    %v384 = vand.u32 %v71, 4294901760
    %v385 = vsub.f32 %v71, %v384
    %v386 = vand.u32 %v385, 4294901760
    %v387 = vsub.f32 %v385, %v386
    %v388 = vand.u32 %v387, 4294901760
    %389 = vmatpush1.msra.mxu0 %v388
    %390 = vmatprep.subr.mxu0 0.0
    %v391 = vand.u32 %v70, 4294901760
    %v392 = vsub.f32 %v70, %v391
    %v393 = vand.u32 %v392, 4294901760
    %v394 = vsub.f32 %v392, %v393
    %v395 = vand.u32 %v394, 4294901760
    %396 = vmatpush1.msra.mxu0 %v395
    %397 = vmatprep.subr.mxu0 0.0
    %v398 = vand.u32 %v69, 4294901760
    %v399 = vsub.f32 %v69, %v398
    %v400 = vand.u32 %v399, 4294901760
    %v401 = vsub.f32 %v399, %v400
    %v402 = vand.u32 %v401, 4294901760
    %403 = vmatpush1.msra.mxu0 %v402
    %404 = vmatprep.subr.mxu0 0.0
    %v405 = vand.u32 %v68, 4294901760
    %v406 = vsub.f32 %v68, %v405
    %v407 = vand.u32 %v406, 4294901760
    %v408 = vsub.f32 %v406, %v407
    %v409 = vand.u32 %v408, 4294901760
    %410 = vmatpush1.msra.mxu0 %v409
    %411 = vmatprep.subr.mxu0 0.0
    %v412 = vand.u32 %v67, 4294901760
    %v413 = vsub.f32 %v67, %v412
    %v414 = vand.u32 %v413, 4294901760
    %v415 = vsub.f32 %v413, %v414
    %v416 = vand.u32 %v415, 4294901760
    %417 = vmatpush1.msra.mxu0 %v416
    %418 = vmatprep.subr.mxu0 0.0
    %v419 = vand.u32 %v66, 4294901760
    %v420 = vsub.f32 %v66, %v419
    %v421 = vand.u32 %v420, 4294901760
    %v422 = vsub.f32 %v420, %v421
    %v423 = vand.u32 %v422, 4294901760
    %424 = vmatpush1.msra.mxu0 %v423
    %425 = vmatprep.subr.mxu0 0.0
    %426 = vmatpush2.msra.mxu0 0.0
    %427 = vmatprep.subr.mxu0 0.0
    %428 = vmatpush2.msra.mxu0 0.0
    %429 = vmatprep.subr.mxu0 0.0
    %430 = vmatpush2.msra.mxu0 0.0
    %431 = vmatprep.subr.mxu0 0.0
    %432 = vmatpush2.msra.mxu0 0.0
    %433 = vmatprep.subr.mxu0 0.0
    %434 = vmatpush2.msra.mxu0 0.0
    %435 = vmatprep.subr.mxu0 0.0
    %436 = vmatpush2.msra.mxu0 0.0
    %437 = vmatprep.subr.mxu0 0.0
    %438 = vmatpush2.msra.mxu0 0.0
    %439 = vmatprep.subr.mxu0 0.0
    %440 = vmatpush2.msra.mxu0 0.0
    %441 = vmatprep.subr.mxu0 0.0
    %442 = vmatpush2.msra.mxu0 0.0
    %443 = vmatprep.subr.mxu0 0.0
    %444 = vmatpush2.msra.mxu0 0.0
    %445 = vmatprep.subr.mxu0 0.0
    %446 = vmatpush2.msra.mxu0 0.0
    %447 = vmatprep.subr.mxu0 0.0
    %448 = vmatpush2.msra.mxu0 0.0
    %449 = vmatprep.subr.mxu0 0.0
    %450 = vmatpush2.msra.mxu0 0.0
    %451 = vmatprep.subr.mxu0 0.0
    %452 = vmatpush2.msra.mxu0 0.0
    %453 = vmatprep.subr.mxu0 0.0
    %454 = vmatpush2.msra.mxu0 0.0
    %455 = vmatprep.subr.mxu0 0.0
    %456 = vmatpush2.msra.mxu0 0.0
    %457 = vmatprep.mubr.f32.mxu0 0.0
    %v458 = vand.u32 %v75, 4294901760
    %459 = vmatmul.mubr.f32.gmra.mxu0 %v458
    %v460 = vpop.f32.mrf.mxu0
    %v461 = vadd.f32 %v205, %v460
    %v462 = vpop.f32.mrf.mxu0
    %463 = vmatprep.mubr.f32.mxu0 0.0
    %v464 = vand.u32 %v78, 4294901760
    %465 = vmatmul.mubr.f32.gmra.mxu0 %v464
    %v466 = vpop.f32.mrf.mxu0
    %v467 = vadd.f32 %v215, %v466
    %v468 = vpop.f32.mrf.mxu0
    %469 = vmatprep.mubr.f32.mxu0 0.0
    %v470 = vand.u32 %v81, 4294901760
    %471 = vmatmul.mubr.f32.gmra.mxu0 %v470
    %v472 = vpop.f32.mrf.mxu0
    %v473 = vadd.f32 %v225, %v472
    %v474 = vpop.f32.mrf.mxu0
    %475 = vmatprep.mubr.f32.mxu0 0.0
    %v476 = vand.u32 %v84, 4294901760
    %477 = vmatmul.mubr.f32.gmra.mxu0 %v476
    %v478 = vpop.f32.mrf.mxu0
    %v479 = vadd.f32 %v235, %v478
    %v480 = vpop.f32.mrf.mxu0
    %481 = vmatprep.mubr.f32.mxu0 0.0
    %v482 = vand.u32 %v87, 4294901760
    %483 = vmatmul.mubr.f32.gmra.mxu0 %v482
    %v484 = vpop.f32.mrf.mxu0
    %v485 = vadd.f32 %v245, %v484
    %v486 = vpop.f32.mrf.mxu0
    %487 = vmatprep.mubr.f32.mxu0 0.0
    %v488 = vand.u32 %v90, 4294901760
    %489 = vmatmul.mubr.f32.gmra.mxu0 %v488
    %v490 = vpop.f32.mrf.mxu0
    %v491 = vadd.f32 %v255, %v490
    %v492 = vpop.f32.mrf.mxu0
    %493 = vmatprep.mubr.f32.mxu0 0.0
    %v494 = vand.u32 %v93, 4294901760
    %495 = vmatmul.mubr.f32.gmra.mxu0 %v494
    %v496 = vpop.f32.mrf.mxu0
    %v497 = vadd.f32 %v265, %v496
    %v498 = vpop.f32.mrf.mxu0
    %499 = vmatprep.mubr.f32.mxu0 0.0
    %v500 = vand.u32 %v96, 4294901760
    %501 = vmatmul.mubr.f32.gmra.mxu0 %v500
    %v502 = vpop.f32.mrf.mxu0
    %v503 = vadd.f32 %v275, %v502
    %v504 = vpop.f32.mrf.mxu0
    %505 = vmatprep.mubr.f32.mxu0 0.0
    %v506 = vand.u32 %v99, 4294901760
    %507 = vmatmul.mubr.f32.gmra.mxu0 %v506
    %v508 = vpop.f32.mrf.mxu0
    %v509 = vadd.f32 %v285, %v508
    %v510 = vpop.f32.mrf.mxu0
    %511 = vmatprep.mubr.f32.mxu0 0.0
    %v512 = vand.u32 %v102, 4294901760
    %513 = vmatmul.mubr.f32.gmra.mxu0 %v512
    %v514 = vpop.f32.mrf.mxu0
    %v515 = vadd.f32 %v295, %v514
    %v516 = vpop.f32.mrf.mxu0
    %517 = vmatprep.mubr.f32.mxu0 0.0
    %v518 = vand.u32 %v105, 4294901760
    %519 = vmatmul.mubr.f32.gmra.mxu0 %v518
    %v520 = vpop.f32.mrf.mxu0
    %v521 = vadd.f32 %v305, %v520
    %v522 = vpop.f32.mrf.mxu0
    %523 = vmatprep.mubr.f32.mxu0 0.0
    %v524 = vand.u32 %v108, 4294901760
    %525 = vmatmul.mubr.f32.gmra.mxu0 %v524
    %v526 = vpop.f32.mrf.mxu0
    %v527 = vadd.f32 %v315, %v526
    %v528 = vpop.f32.mrf.mxu0
    %529 = vmatprep.mubr.f32.mxu0 0.0
    %v530 = vand.u32 %v111, 4294901760
    %531 = vmatmul.mubr.f32.gmra.mxu0 %v530
    %v532 = vpop.f32.mrf.mxu0
    %v533 = vadd.f32 %v325, %v532
    %v534 = vpop.f32.mrf.mxu0
    %535 = vmatprep.mubr.f32.mxu0 0.0
    %v536 = vand.u32 %v114, 4294901760
    %537 = vmatmul.mubr.f32.gmra.mxu0 %v536
    %v538 = vpop.f32.mrf.mxu0
    %v539 = vadd.f32 %v335, %v538
    %v540 = vpop.f32.mrf.mxu0
    %541 = vmatprep.mubr.f32.mxu0 0.0
    %v542 = vand.u32 %v117, 4294901760
    %543 = vmatmul.mubr.f32.gmra.mxu0 %v542
    %v544 = vpop.f32.mrf.mxu0
    %v545 = vadd.f32 %v345, %v544
    %v546 = vpop.f32.mrf.mxu0
    %547 = vmatprep.mubr.f32.mxu0 0.0
    %v548 = vand.u32 %v120, 4294901760
    %549 = vmatmul.mubr.f32.gmra.mxu0 %v548
    %v550 = vpop.f32.mrf.mxu0
    %v551 = vadd.f32 %v355, %v550
    %v552 = vpop.f32.mrf.mxu0
    %553 = vdwg.mxu0
    %554 = vmatprep.subr.mxu0 0.0
    %555 = vmatpush1.msra.mxu0 0.0
    %556 = vmatprep.subr.mxu0 0.0
    %557 = vmatpush1.msra.mxu0 0.0
    %558 = vmatprep.subr.mxu0 0.0
    %559 = vmatpush1.msra.mxu0 0.0
    %560 = vmatprep.subr.mxu0 0.0
    %561 = vmatpush1.msra.mxu0 0.0
    %562 = vmatprep.subr.mxu0 0.0
    %563 = vmatpush1.msra.mxu0 0.0
    %564 = vmatprep.subr.mxu0 0.0
    %565 = vmatpush1.msra.mxu0 0.0
    %566 = vmatprep.subr.mxu0 0.0
    %567 = vmatpush1.msra.mxu0 0.0
    %568 = vmatprep.subr.mxu0 0.0
    %569 = vmatpush1.msra.mxu0 0.0
    %570 = vmatprep.subr.mxu0 0.0
    %571 = vmatpush1.msra.mxu0 0.0
    %572 = vmatprep.subr.mxu0 0.0
    %v573 = vand.u32 %v124, 4294901760
    %v574 = vsub.f32 %v124, %v573
    %575 = vmatpush1.msra.mxu0 %v574
    %576 = vmatprep.subr.mxu0 0.0
    %v577 = vand.u32 %v71, 4294901760
    %v578 = vsub.f32 %v71, %v577
    %579 = vmatpush1.msra.mxu0 %v578
    %580 = vmatprep.subr.mxu0 0.0
    %v581 = vand.u32 %v70, 4294901760
    %v582 = vsub.f32 %v70, %v581
    %583 = vmatpush1.msra.mxu0 %v582
    %584 = vmatprep.subr.mxu0 0.0
    %v585 = vand.u32 %v69, 4294901760
    %v586 = vsub.f32 %v69, %v585
    %587 = vmatpush1.msra.mxu0 %v586
    %588 = vmatprep.subr.mxu0 0.0
    %v589 = vand.u32 %v68, 4294901760
    %v590 = vsub.f32 %v68, %v589
    %591 = vmatpush1.msra.mxu0 %v590
    %592 = vmatprep.subr.mxu0 0.0
    %v593 = vand.u32 %v67, 4294901760
    %v594 = vsub.f32 %v67, %v593
    %595 = vmatpush1.msra.mxu0 %v594
    %596 = vmatprep.subr.mxu0 0.0
    %v597 = vand.u32 %v66, 4294901760
    %v598 = vsub.f32 %v66, %v597
    %599 = vmatpush1.msra.mxu0 %v598
    %600 = vmatprep.subr.mxu0 0.0
    %601 = vmatpush2.msra.mxu0 0.0
    %602 = vmatprep.subr.mxu0 0.0
    %603 = vmatpush2.msra.mxu0 0.0
    %604 = vmatprep.subr.mxu0 0.0
    %605 = vmatpush2.msra.mxu0 0.0
    %606 = vmatprep.subr.mxu0 0.0
    %607 = vmatpush2.msra.mxu0 0.0
    %608 = vmatprep.subr.mxu0 0.0
    %609 = vmatpush2.msra.mxu0 0.0
    %610 = vmatprep.subr.mxu0 0.0
    %611 = vmatpush2.msra.mxu0 0.0
    %612 = vmatprep.subr.mxu0 0.0
    %613 = vmatpush2.msra.mxu0 0.0
    %614 = vmatprep.subr.mxu0 0.0
    %615 = vmatpush2.msra.mxu0 0.0
    %616 = vmatprep.subr.mxu0 0.0
    %617 = vmatpush2.msra.mxu0 0.0
    %618 = vmatprep.subr.mxu0 0.0
    %619 = vmatpush2.msra.mxu0 0.0
    %620 = vmatprep.subr.mxu0 0.0
    %621 = vmatpush2.msra.mxu0 0.0
    %622 = vmatprep.subr.mxu0 0.0
    %623 = vmatpush2.msra.mxu0 0.0
    %624 = vmatprep.subr.mxu0 0.0
    %625 = vmatpush2.msra.mxu0 0.0
    %626 = vmatprep.subr.mxu0 0.0
    %627 = vmatpush2.msra.mxu0 0.0
    %628 = vmatprep.subr.mxu0 0.0
    %629 = vmatpush2.msra.mxu0 0.0
    %630 = vmatprep.subr.mxu0 0.0
    %631 = vmatpush2.msra.mxu0 0.0
    %632 = vmatprep.mubr.f32.mxu0 0.0
    %v633 = vand.u32 %v75, 4294901760
    %v634 = vsub.f32 %v75, %v633
    %635 = vmatmul.mubr.f32.gmra.mxu0 %v634
    %v636 = vpop.f32.mrf.mxu0
    %v637 = vadd.f32 %v461, %v636
    %v638 = vpop.f32.mrf.mxu0
    %639 = vmatprep.mubr.f32.mxu0 0.0
    %v640 = vand.u32 %v78, 4294901760
    %v641 = vsub.f32 %v78, %v640
    %642 = vmatmul.mubr.f32.gmra.mxu0 %v641
    %v643 = vpop.f32.mrf.mxu0
    %v644 = vadd.f32 %v467, %v643
    %v645 = vpop.f32.mrf.mxu0
    %646 = vmatprep.mubr.f32.mxu0 0.0
    %v647 = vand.u32 %v81, 4294901760
    %v648 = vsub.f32 %v81, %v647
    %649 = vmatmul.mubr.f32.gmra.mxu0 %v648
    %v650 = vpop.f32.mrf.mxu0
    %v651 = vadd.f32 %v473, %v650
    %v652 = vpop.f32.mrf.mxu0
    %653 = vmatprep.mubr.f32.mxu0 0.0
    %v654 = vand.u32 %v84, 4294901760
    %v655 = vsub.f32 %v84, %v654
    %656 = vmatmul.mubr.f32.gmra.mxu0 %v655
    %v657 = vpop.f32.mrf.mxu0
    %v658 = vadd.f32 %v479, %v657
    %v659 = vpop.f32.mrf.mxu0
    %660 = vmatprep.mubr.f32.mxu0 0.0
    %v661 = vand.u32 %v87, 4294901760
    %v662 = vsub.f32 %v87, %v661
    %663 = vmatmul.mubr.f32.gmra.mxu0 %v662
    %v664 = vpop.f32.mrf.mxu0
    %v665 = vadd.f32 %v485, %v664
    %v666 = vpop.f32.mrf.mxu0
    %667 = vmatprep.mubr.f32.mxu0 0.0
    %v668 = vand.u32 %v90, 4294901760
    %v669 = vsub.f32 %v90, %v668
    %670 = vmatmul.mubr.f32.gmra.mxu0 %v669
    %v671 = vpop.f32.mrf.mxu0
    %v672 = vadd.f32 %v491, %v671
    %v673 = vpop.f32.mrf.mxu0
    %674 = vmatprep.mubr.f32.mxu0 0.0
    %v675 = vand.u32 %v93, 4294901760
    %v676 = vsub.f32 %v93, %v675
    %677 = vmatmul.mubr.f32.gmra.mxu0 %v676
    %v678 = vpop.f32.mrf.mxu0
    %v679 = vadd.f32 %v497, %v678
    %v680 = vpop.f32.mrf.mxu0
    %681 = vmatprep.mubr.f32.mxu0 0.0
    %v682 = vand.u32 %v96, 4294901760
    %v683 = vsub.f32 %v96, %v682
    %684 = vmatmul.mubr.f32.gmra.mxu0 %v683
    %v685 = vpop.f32.mrf.mxu0
    %v686 = vadd.f32 %v503, %v685
    %v687 = vpop.f32.mrf.mxu0
    %688 = vmatprep.mubr.f32.mxu0 0.0
    %v689 = vand.u32 %v99, 4294901760
    %v690 = vsub.f32 %v99, %v689
    %691 = vmatmul.mubr.f32.gmra.mxu0 %v690
    %v692 = vpop.f32.mrf.mxu0
    %v693 = vadd.f32 %v509, %v692
    %v694 = vpop.f32.mrf.mxu0
    %695 = vmatprep.mubr.f32.mxu0 0.0
    %v696 = vand.u32 %v102, 4294901760
    %v697 = vsub.f32 %v102, %v696
    %698 = vmatmul.mubr.f32.gmra.mxu0 %v697
    %v699 = vpop.f32.mrf.mxu0
    %v700 = vadd.f32 %v515, %v699
    %v701 = vpop.f32.mrf.mxu0
    %702 = vmatprep.mubr.f32.mxu0 0.0
    %v703 = vand.u32 %v105, 4294901760
    %v704 = vsub.f32 %v105, %v703
    %705 = vmatmul.mubr.f32.gmra.mxu0 %v704
    %v706 = vpop.f32.mrf.mxu0
    %v707 = vadd.f32 %v521, %v706
    %v708 = vpop.f32.mrf.mxu0
    %709 = vmatprep.mubr.f32.mxu0 0.0
    %v710 = vand.u32 %v108, 4294901760
    %v711 = vsub.f32 %v108, %v710
    %712 = vmatmul.mubr.f32.gmra.mxu0 %v711
    %v713 = vpop.f32.mrf.mxu0
    %v714 = vadd.f32 %v527, %v713
    %v715 = vpop.f32.mrf.mxu0
    %716 = vmatprep.mubr.f32.mxu0 0.0
    %v717 = vand.u32 %v111, 4294901760
    %v718 = vsub.f32 %v111, %v717
    %719 = vmatmul.mubr.f32.gmra.mxu0 %v718
    %v720 = vpop.f32.mrf.mxu0
    %v721 = vadd.f32 %v533, %v720
    %v722 = vpop.f32.mrf.mxu0
    %723 = vmatprep.mubr.f32.mxu0 0.0
    %v724 = vand.u32 %v114, 4294901760
    %v725 = vsub.f32 %v114, %v724
    %726 = vmatmul.mubr.f32.gmra.mxu0 %v725
    %v727 = vpop.f32.mrf.mxu0
    %v728 = vadd.f32 %v539, %v727
    %v729 = vpop.f32.mrf.mxu0
    %730 = vmatprep.mubr.f32.mxu0 0.0
    %v731 = vand.u32 %v117, 4294901760
    %v732 = vsub.f32 %v117, %v731
    %733 = vmatmul.mubr.f32.gmra.mxu0 %v732
    %v734 = vpop.f32.mrf.mxu0
    %v735 = vadd.f32 %v545, %v734
    %v736 = vpop.f32.mrf.mxu0
    %737 = vmatprep.mubr.f32.mxu0 0.0
    %v738 = vand.u32 %v120, 4294901760
    %v739 = vsub.f32 %v120, %v738
    %740 = vmatmul.mubr.f32.gmra.mxu0 %v739
    %v741 = vpop.f32.mrf.mxu0
    %v742 = vadd.f32 %v551, %v741
    %v743 = vpop.f32.mrf.mxu0
    %744 = vdwg.mxu0
    %745 = vmatprep.subr.mxu0 0.0
    %746 = vmatpush1.msra.mxu0 0.0
    %747 = vmatprep.subr.mxu0 0.0
    %748 = vmatpush1.msra.mxu0 0.0
    %749 = vmatprep.subr.mxu0 0.0
    %750 = vmatpush1.msra.mxu0 0.0
    %751 = vmatprep.subr.mxu0 0.0
    %752 = vmatpush1.msra.mxu0 0.0
    %753 = vmatprep.subr.mxu0 0.0
    %754 = vmatpush1.msra.mxu0 0.0
    %755 = vmatprep.subr.mxu0 0.0
    %756 = vmatpush1.msra.mxu0 0.0
    %757 = vmatprep.subr.mxu0 0.0
    %758 = vmatpush1.msra.mxu0 0.0
    %759 = vmatprep.subr.mxu0 0.0
    %760 = vmatpush1.msra.mxu0 0.0
    %761 = vmatprep.subr.mxu0 0.0
    %762 = vmatpush1.msra.mxu0 0.0
    %763 = vmatprep.subr.mxu0 0.0
    %v764 = vand.u32 %v124, 4294901760
    %765 = vmatpush1.msra.mxu0 %v764
    %766 = vmatprep.subr.mxu0 0.0
    %v767 = vand.u32 %v71, 4294901760
    %768 = vmatpush1.msra.mxu0 %v767
    %769 = vmatprep.subr.mxu0 0.0
    %v770 = vand.u32 %v70, 4294901760
    %771 = vmatpush1.msra.mxu0 %v770
    %772 = vmatprep.subr.mxu0 0.0
    %v773 = vand.u32 %v69, 4294901760
    %774 = vmatpush1.msra.mxu0 %v773
    %775 = vmatprep.subr.mxu0 0.0
    %v776 = vand.u32 %v68, 4294901760
    %777 = vmatpush1.msra.mxu0 %v776
    %778 = vmatprep.subr.mxu0 0.0
    %v779 = vand.u32 %v67, 4294901760
    %780 = vmatpush1.msra.mxu0 %v779
    %781 = vmatprep.subr.mxu0 0.0
    %v782 = vand.u32 %v66, 4294901760
    %783 = vmatpush1.msra.mxu0 %v782
    %784 = vmatprep.subr.mxu0 0.0
    %785 = vmatpush2.msra.mxu0 0.0
    %786 = vmatprep.subr.mxu0 0.0
    %787 = vmatpush2.msra.mxu0 0.0
    %788 = vmatprep.subr.mxu0 0.0
    %789 = vmatpush2.msra.mxu0 0.0
    %790 = vmatprep.subr.mxu0 0.0
    %791 = vmatpush2.msra.mxu0 0.0
    %792 = vmatprep.subr.mxu0 0.0
    %793 = vmatpush2.msra.mxu0 0.0
    %794 = vmatprep.subr.mxu0 0.0
    %795 = vmatpush2.msra.mxu0 0.0
    %796 = vmatprep.subr.mxu0 0.0
    %797 = vmatpush2.msra.mxu0 0.0
    %798 = vmatprep.subr.mxu0 0.0
    %799 = vmatpush2.msra.mxu0 0.0
    %800 = vmatprep.subr.mxu0 0.0
    %801 = vmatpush2.msra.mxu0 0.0
    %802 = vmatprep.subr.mxu0 0.0
    %803 = vmatpush2.msra.mxu0 0.0
    %804 = vmatprep.subr.mxu0 0.0
    %805 = vmatpush2.msra.mxu0 0.0
    %806 = vmatprep.subr.mxu0 0.0
    %807 = vmatpush2.msra.mxu0 0.0
    %808 = vmatprep.subr.mxu0 0.0
    %809 = vmatpush2.msra.mxu0 0.0
    %810 = vmatprep.subr.mxu0 0.0
    %811 = vmatpush2.msra.mxu0 0.0
    %812 = vmatprep.subr.mxu0 0.0
    %813 = vmatpush2.msra.mxu0 0.0
    %814 = vmatprep.subr.mxu0 0.0
    %815 = vmatpush2.msra.mxu0 0.0
    %816 = vmatprep.mubr.f32.mxu0 0.0
    %v817 = vand.u32 %v75, 4294901760
    %v818 = vsub.f32 %v75, %v817
    %v819 = vand.u32 %v818, 4294901760
    %820 = vmatmul.mubr.f32.gmra.mxu0 %v819
    %v821 = vpop.f32.mrf.mxu0
    %v822 = vadd.f32 %v637, %v821
    %v823 = vpop.f32.mrf.mxu0
    %824 = vmatprep.mubr.f32.mxu0 0.0
    %v825 = vand.u32 %v78, 4294901760
    %v826 = vsub.f32 %v78, %v825
    %v827 = vand.u32 %v826, 4294901760
    %828 = vmatmul.mubr.f32.gmra.mxu0 %v827
    %v829 = vpop.f32.mrf.mxu0
    %v830 = vadd.f32 %v644, %v829
    %v831 = vpop.f32.mrf.mxu0
    %832 = vmatprep.mubr.f32.mxu0 0.0
    %v833 = vand.u32 %v81, 4294901760
    %v834 = vsub.f32 %v81, %v833
    %v835 = vand.u32 %v834, 4294901760
    %836 = vmatmul.mubr.f32.gmra.mxu0 %v835
    %v837 = vpop.f32.mrf.mxu0
    %v838 = vadd.f32 %v651, %v837
    %v839 = vpop.f32.mrf.mxu0
    %840 = vmatprep.mubr.f32.mxu0 0.0
    %v841 = vand.u32 %v84, 4294901760
    %v842 = vsub.f32 %v84, %v841
    %v843 = vand.u32 %v842, 4294901760
    %844 = vmatmul.mubr.f32.gmra.mxu0 %v843
    %v845 = vpop.f32.mrf.mxu0
    %v846 = vadd.f32 %v658, %v845
    %v847 = vpop.f32.mrf.mxu0
    %848 = vmatprep.mubr.f32.mxu0 0.0
    %v849 = vand.u32 %v87, 4294901760
    %v850 = vsub.f32 %v87, %v849
    %v851 = vand.u32 %v850, 4294901760
    %852 = vmatmul.mubr.f32.gmra.mxu0 %v851
    %v853 = vpop.f32.mrf.mxu0
    %v854 = vadd.f32 %v665, %v853
    %v855 = vpop.f32.mrf.mxu0
    %856 = vmatprep.mubr.f32.mxu0 0.0
    %v857 = vand.u32 %v90, 4294901760
    %v858 = vsub.f32 %v90, %v857
    %v859 = vand.u32 %v858, 4294901760
    %860 = vmatmul.mubr.f32.gmra.mxu0 %v859
    %v861 = vpop.f32.mrf.mxu0
    %v862 = vadd.f32 %v672, %v861
    %v863 = vpop.f32.mrf.mxu0
    %864 = vmatprep.mubr.f32.mxu0 0.0
    %v865 = vand.u32 %v93, 4294901760
    %v866 = vsub.f32 %v93, %v865
    %v867 = vand.u32 %v866, 4294901760
    %868 = vmatmul.mubr.f32.gmra.mxu0 %v867
    %v869 = vpop.f32.mrf.mxu0
    %v870 = vadd.f32 %v679, %v869
    %v871 = vpop.f32.mrf.mxu0
    %872 = vmatprep.mubr.f32.mxu0 0.0
    %v873 = vand.u32 %v96, 4294901760
    %v874 = vsub.f32 %v96, %v873
    %v875 = vand.u32 %v874, 4294901760
    %876 = vmatmul.mubr.f32.gmra.mxu0 %v875
    %v877 = vpop.f32.mrf.mxu0
    %v878 = vadd.f32 %v686, %v877
    %v879 = vpop.f32.mrf.mxu0
    %880 = vmatprep.mubr.f32.mxu0 0.0
    %v881 = vand.u32 %v99, 4294901760
    %v882 = vsub.f32 %v99, %v881
    %v883 = vand.u32 %v882, 4294901760
    %884 = vmatmul.mubr.f32.gmra.mxu0 %v883
    %v885 = vpop.f32.mrf.mxu0
    %v886 = vadd.f32 %v693, %v885
    %v887 = vpop.f32.mrf.mxu0
    %888 = vmatprep.mubr.f32.mxu0 0.0
    %v889 = vand.u32 %v102, 4294901760
    %v890 = vsub.f32 %v102, %v889
    %v891 = vand.u32 %v890, 4294901760
    %892 = vmatmul.mubr.f32.gmra.mxu0 %v891
    %v893 = vpop.f32.mrf.mxu0
    %v894 = vadd.f32 %v700, %v893
    %v895 = vpop.f32.mrf.mxu0
    %896 = vmatprep.mubr.f32.mxu0 0.0
    %v897 = vand.u32 %v105, 4294901760
    %v898 = vsub.f32 %v105, %v897
    %v899 = vand.u32 %v898, 4294901760
    %900 = vmatmul.mubr.f32.gmra.mxu0 %v899
    %v901 = vpop.f32.mrf.mxu0
    %v902 = vadd.f32 %v707, %v901
    %v903 = vpop.f32.mrf.mxu0
    %904 = vmatprep.mubr.f32.mxu0 0.0
    %v905 = vand.u32 %v108, 4294901760
    %v906 = vsub.f32 %v108, %v905
    %v907 = vand.u32 %v906, 4294901760
    %908 = vmatmul.mubr.f32.gmra.mxu0 %v907
    %v909 = vpop.f32.mrf.mxu0
    %v910 = vadd.f32 %v714, %v909
    %v911 = vpop.f32.mrf.mxu0
    %912 = vmatprep.mubr.f32.mxu0 0.0
    %v913 = vand.u32 %v111, 4294901760
    %v914 = vsub.f32 %v111, %v913
    %v915 = vand.u32 %v914, 4294901760
    %916 = vmatmul.mubr.f32.gmra.mxu0 %v915
    %v917 = vpop.f32.mrf.mxu0
    %v918 = vadd.f32 %v721, %v917
    %v919 = vpop.f32.mrf.mxu0
    %920 = vmatprep.mubr.f32.mxu0 0.0
    %v921 = vand.u32 %v114, 4294901760
    %v922 = vsub.f32 %v114, %v921
    %v923 = vand.u32 %v922, 4294901760
    %924 = vmatmul.mubr.f32.gmra.mxu0 %v923
    %v925 = vpop.f32.mrf.mxu0
    %v926 = vadd.f32 %v728, %v925
    %v927 = vpop.f32.mrf.mxu0
    %928 = vmatprep.mubr.f32.mxu0 0.0
    %v929 = vand.u32 %v117, 4294901760
    %v930 = vsub.f32 %v117, %v929
    %v931 = vand.u32 %v930, 4294901760
    %932 = vmatmul.mubr.f32.gmra.mxu0 %v931
    %v933 = vpop.f32.mrf.mxu0
    %v934 = vadd.f32 %v735, %v933
    %v935 = vpop.f32.mrf.mxu0
    %936 = vmatprep.mubr.f32.mxu0 0.0
    %v937 = vand.u32 %v120, 4294901760
    %v938 = vsub.f32 %v120, %v937
    %v939 = vand.u32 %v938, 4294901760
    %940 = vmatmul.mubr.f32.gmra.mxu0 %v939
    %v941 = vpop.f32.mrf.mxu0
    %v942 = vadd.f32 %v742, %v941
    %v943 = vpop.f32.mrf.mxu0
    %944 = vdwg.mxu0
    %945 = vmatprep.subr.mxu0 0.0
    %946 = vmatpush1.msra.mxu0 0.0
    %947 = vmatprep.subr.mxu0 0.0
    %948 = vmatpush1.msra.mxu0 0.0
    %949 = vmatprep.subr.mxu0 0.0
    %950 = vmatpush1.msra.mxu0 0.0
    %951 = vmatprep.subr.mxu0 0.0
    %952 = vmatpush1.msra.mxu0 0.0
    %953 = vmatprep.subr.mxu0 0.0
    %954 = vmatpush1.msra.mxu0 0.0
    %955 = vmatprep.subr.mxu0 0.0
    %956 = vmatpush1.msra.mxu0 0.0
    %957 = vmatprep.subr.mxu0 0.0
    %958 = vmatpush1.msra.mxu0 0.0
    %959 = vmatprep.subr.mxu0 0.0
    %960 = vmatpush1.msra.mxu0 0.0
    %961 = vmatprep.subr.mxu0 0.0
    %962 = vmatpush1.msra.mxu0 0.0
    %963 = vmatprep.subr.mxu0 0.0
    %v964 = vand.u32 %v124, 4294901760
    %v965 = vsub.f32 %v124, %v964
    %v966 = vand.u32 %v965, 4294901760
    %967 = vmatpush1.msra.mxu0 %v966
    %968 = vmatprep.subr.mxu0 0.0
    %v969 = vand.u32 %v71, 4294901760
    %v970 = vsub.f32 %v71, %v969
    %v971 = vand.u32 %v970, 4294901760
    %972 = vmatpush1.msra.mxu0 %v971
    %973 = vmatprep.subr.mxu0 0.0
    %v974 = vand.u32 %v70, 4294901760
    %v975 = vsub.f32 %v70, %v974
    %v976 = vand.u32 %v975, 4294901760
    %977 = vmatpush1.msra.mxu0 %v976
    %978 = vmatprep.subr.mxu0 0.0
    %v979 = vand.u32 %v69, 4294901760
    %v980 = vsub.f32 %v69, %v979
    %v981 = vand.u32 %v980, 4294901760
    %982 = vmatpush1.msra.mxu0 %v981
    %983 = vmatprep.subr.mxu0 0.0
    %v984 = vand.u32 %v68, 4294901760
    %v985 = vsub.f32 %v68, %v984
    %v986 = vand.u32 %v985, 4294901760
    %987 = vmatpush1.msra.mxu0 %v986
    %988 = vmatprep.subr.mxu0 0.0
    %v989 = vand.u32 %v67, 4294901760
    %v990 = vsub.f32 %v67, %v989
    %v991 = vand.u32 %v990, 4294901760
    %992 = vmatpush1.msra.mxu0 %v991
    %993 = vmatprep.subr.mxu0 0.0
    %v994 = vand.u32 %v66, 4294901760
    %v995 = vsub.f32 %v66, %v994
    %v996 = vand.u32 %v995, 4294901760
    %997 = vmatpush1.msra.mxu0 %v996
    %998 = vmatprep.subr.mxu0 0.0
    %999 = vmatpush2.msra.mxu0 0.0
    %1000 = vmatprep.subr.mxu0 0.0
    %1001 = vmatpush2.msra.mxu0 0.0
    %1002 = vmatprep.subr.mxu0 0.0
    %1003 = vmatpush2.msra.mxu0 0.0
    %1004 = vmatprep.subr.mxu0 0.0
    %1005 = vmatpush2.msra.mxu0 0.0
    %1006 = vmatprep.subr.mxu0 0.0
    %1007 = vmatpush2.msra.mxu0 0.0
    %1008 = vmatprep.subr.mxu0 0.0
    %1009 = vmatpush2.msra.mxu0 0.0
    %1010 = vmatprep.subr.mxu0 0.0
    %1011 = vmatpush2.msra.mxu0 0.0
    %1012 = vmatprep.subr.mxu0 0.0
    %1013 = vmatpush2.msra.mxu0 0.0
    %1014 = vmatprep.subr.mxu0 0.0
    %1015 = vmatpush2.msra.mxu0 0.0
    %1016 = vmatprep.subr.mxu0 0.0
    %1017 = vmatpush2.msra.mxu0 0.0
    %1018 = vmatprep.subr.mxu0 0.0
    %1019 = vmatpush2.msra.mxu0 0.0
    %1020 = vmatprep.subr.mxu0 0.0
    %1021 = vmatpush2.msra.mxu0 0.0
    %1022 = vmatprep.subr.mxu0 0.0
    %1023 = vmatpush2.msra.mxu0 0.0
    %1024 = vmatprep.subr.mxu0 0.0
    %1025 = vmatpush2.msra.mxu0 0.0
    %1026 = vmatprep.subr.mxu0 0.0
    %1027 = vmatpush2.msra.mxu0 0.0
    %1028 = vmatprep.subr.mxu0 0.0
    %1029 = vmatpush2.msra.mxu0 0.0
    %1030 = vmatprep.mubr.f32.mxu0 0.0
    %v1031 = vand.u32 %v75, 4294901760
    %1032 = vmatmul.mubr.f32.gmra.mxu0 %v1031
    %v1033 = vpop.f32.mrf.mxu0
    %v1034 = vadd.f32 %v822, %v1033
    %v1035 = vpop.f32.mrf.mxu0
    %1036 = vmatprep.mubr.f32.mxu0 0.0
    %v1037 = vand.u32 %v78, 4294901760
    %1038 = vmatmul.mubr.f32.gmra.mxu0 %v1037
    %v1039 = vpop.f32.mrf.mxu0
    %v1040 = vadd.f32 %v830, %v1039
    %v1041 = vpop.f32.mrf.mxu0
    %1042 = vmatprep.mubr.f32.mxu0 0.0
    %v1043 = vand.u32 %v81, 4294901760
    %1044 = vmatmul.mubr.f32.gmra.mxu0 %v1043
    %v1045 = vpop.f32.mrf.mxu0
    %v1046 = vadd.f32 %v838, %v1045
    %v1047 = vpop.f32.mrf.mxu0
    %1048 = vmatprep.mubr.f32.mxu0 0.0
    %v1049 = vand.u32 %v84, 4294901760
    %1050 = vmatmul.mubr.f32.gmra.mxu0 %v1049
    %v1051 = vpop.f32.mrf.mxu0
    %v1052 = vadd.f32 %v846, %v1051
    %v1053 = vpop.f32.mrf.mxu0
    %1054 = vmatprep.mubr.f32.mxu0 0.0
    %v1055 = vand.u32 %v87, 4294901760
    %1056 = vmatmul.mubr.f32.gmra.mxu0 %v1055
    %v1057 = vpop.f32.mrf.mxu0
    %v1058 = vadd.f32 %v854, %v1057
    %v1059 = vpop.f32.mrf.mxu0
    %1060 = vmatprep.mubr.f32.mxu0 0.0
    %v1061 = vand.u32 %v90, 4294901760
    %1062 = vmatmul.mubr.f32.gmra.mxu0 %v1061
    %v1063 = vpop.f32.mrf.mxu0
    %v1064 = vadd.f32 %v862, %v1063
    %v1065 = vpop.f32.mrf.mxu0
    %1066 = vmatprep.mubr.f32.mxu0 0.0
    %v1067 = vand.u32 %v93, 4294901760
    %1068 = vmatmul.mubr.f32.gmra.mxu0 %v1067
    %v1069 = vpop.f32.mrf.mxu0
    %v1070 = vadd.f32 %v870, %v1069
    %v1071 = vpop.f32.mrf.mxu0
    %1072 = vmatprep.mubr.f32.mxu0 0.0
    %v1073 = vand.u32 %v96, 4294901760
    %1074 = vmatmul.mubr.f32.gmra.mxu0 %v1073
    %v1075 = vpop.f32.mrf.mxu0
    %v1076 = vadd.f32 %v878, %v1075
    %v1077 = vpop.f32.mrf.mxu0
    %1078 = vmatprep.mubr.f32.mxu0 0.0
    %v1079 = vand.u32 %v99, 4294901760
    %1080 = vmatmul.mubr.f32.gmra.mxu0 %v1079
    %v1081 = vpop.f32.mrf.mxu0
    %v1082 = vadd.f32 %v886, %v1081
    %v1083 = vpop.f32.mrf.mxu0
    %1084 = vmatprep.mubr.f32.mxu0 0.0
    %v1085 = vand.u32 %v102, 4294901760
    %1086 = vmatmul.mubr.f32.gmra.mxu0 %v1085
    %v1087 = vpop.f32.mrf.mxu0
    %v1088 = vadd.f32 %v894, %v1087
    %v1089 = vpop.f32.mrf.mxu0
    %1090 = vmatprep.mubr.f32.mxu0 0.0
    %v1091 = vand.u32 %v105, 4294901760
    %1092 = vmatmul.mubr.f32.gmra.mxu0 %v1091
    %v1093 = vpop.f32.mrf.mxu0
    %v1094 = vadd.f32 %v902, %v1093
    %v1095 = vpop.f32.mrf.mxu0
    %1096 = vmatprep.mubr.f32.mxu0 0.0
    %v1097 = vand.u32 %v108, 4294901760
    %1098 = vmatmul.mubr.f32.gmra.mxu0 %v1097
    %v1099 = vpop.f32.mrf.mxu0
    %v1100 = vadd.f32 %v910, %v1099
    %v1101 = vpop.f32.mrf.mxu0
    %1102 = vmatprep.mubr.f32.mxu0 0.0
    %v1103 = vand.u32 %v111, 4294901760
    %1104 = vmatmul.mubr.f32.gmra.mxu0 %v1103
    %v1105 = vpop.f32.mrf.mxu0
    %v1106 = vadd.f32 %v918, %v1105
    %v1107 = vpop.f32.mrf.mxu0
    %1108 = vmatprep.mubr.f32.mxu0 0.0
    %v1109 = vand.u32 %v114, 4294901760
    %1110 = vmatmul.mubr.f32.gmra.mxu0 %v1109
    %v1111 = vpop.f32.mrf.mxu0
    %v1112 = vadd.f32 %v926, %v1111
    %v1113 = vpop.f32.mrf.mxu0
    %1114 = vmatprep.mubr.f32.mxu0 0.0
    %v1115 = vand.u32 %v117, 4294901760
    %1116 = vmatmul.mubr.f32.gmra.mxu0 %v1115
    %v1117 = vpop.f32.mrf.mxu0
    %v1118 = vadd.f32 %v934, %v1117
    %v1119 = vpop.f32.mrf.mxu0
    %1120 = vmatprep.mubr.f32.mxu0 0.0
    %v1121 = vand.u32 %v120, 4294901760
    %1122 = vmatmul.mubr.f32.gmra.mxu0 %v1121
    %v1123 = vpop.f32.mrf.mxu0
    %v1124 = vadd.f32 %v942, %v1123
    %v1125 = vpop.f32.mrf.mxu0
    %1126 = vdwg.mxu0
    %1127 = vmatprep.subr.mxu0 0.0
    %1128 = vmatpush1.msra.mxu0 0.0
    %1129 = vmatprep.subr.mxu0 0.0
    %1130 = vmatpush1.msra.mxu0 0.0
    %1131 = vmatprep.subr.mxu0 0.0
    %1132 = vmatpush1.msra.mxu0 0.0
    %1133 = vmatprep.subr.mxu0 0.0
    %1134 = vmatpush1.msra.mxu0 0.0
    %1135 = vmatprep.subr.mxu0 0.0
    %1136 = vmatpush1.msra.mxu0 0.0
    %1137 = vmatprep.subr.mxu0 0.0
    %1138 = vmatpush1.msra.mxu0 0.0
    %1139 = vmatprep.subr.mxu0 0.0
    %1140 = vmatpush1.msra.mxu0 0.0
    %1141 = vmatprep.subr.mxu0 0.0
    %1142 = vmatpush1.msra.mxu0 0.0
    %1143 = vmatprep.subr.mxu0 0.0
    %1144 = vmatpush1.msra.mxu0 0.0
    %1145 = vmatprep.subr.mxu0 0.0
    %v1146 = vand.u32 %v124, 4294901760
    %1147 = vmatpush1.msra.mxu0 %v1146
    %1148 = vmatprep.subr.mxu0 0.0
    %v1149 = vand.u32 %v71, 4294901760
    %1150 = vmatpush1.msra.mxu0 %v1149
    %1151 = vmatprep.subr.mxu0 0.0
    %v1152 = vand.u32 %v70, 4294901760
    %1153 = vmatpush1.msra.mxu0 %v1152
    %1154 = vmatprep.subr.mxu0 0.0
    %v1155 = vand.u32 %v69, 4294901760
    %1156 = vmatpush1.msra.mxu0 %v1155
    %1157 = vmatprep.subr.mxu0 0.0
    %v1158 = vand.u32 %v68, 4294901760
    %1159 = vmatpush1.msra.mxu0 %v1158
    %1160 = vmatprep.subr.mxu0 0.0
    %v1161 = vand.u32 %v67, 4294901760
    %1162 = vmatpush1.msra.mxu0 %v1161
    %1163 = vmatprep.subr.mxu0 0.0
    %v1164 = vand.u32 %v66, 4294901760
    %1165 = vmatpush1.msra.mxu0 %v1164
    %1166 = vmatprep.subr.mxu0 0.0
    %1167 = vmatpush2.msra.mxu0 0.0
    %1168 = vmatprep.subr.mxu0 0.0
    %1169 = vmatpush2.msra.mxu0 0.0
    %1170 = vmatprep.subr.mxu0 0.0
    %1171 = vmatpush2.msra.mxu0 0.0
    %1172 = vmatprep.subr.mxu0 0.0
    %1173 = vmatpush2.msra.mxu0 0.0
    %1174 = vmatprep.subr.mxu0 0.0
    %1175 = vmatpush2.msra.mxu0 0.0
    %1176 = vmatprep.subr.mxu0 0.0
    %1177 = vmatpush2.msra.mxu0 0.0
    %1178 = vmatprep.subr.mxu0 0.0
    %1179 = vmatpush2.msra.mxu0 0.0
    %1180 = vmatprep.subr.mxu0 0.0
    %1181 = vmatpush2.msra.mxu0 0.0
    %1182 = vmatprep.subr.mxu0 0.0
    %1183 = vmatpush2.msra.mxu0 0.0
    %1184 = vmatprep.subr.mxu0 0.0
    %1185 = vmatpush2.msra.mxu0 0.0
    %1186 = vmatprep.subr.mxu0 0.0
    %1187 = vmatpush2.msra.mxu0 0.0
    %1188 = vmatprep.subr.mxu0 0.0
    %1189 = vmatpush2.msra.mxu0 0.0
    %1190 = vmatprep.subr.mxu0 0.0
    %1191 = vmatpush2.msra.mxu0 0.0
    %1192 = vmatprep.subr.mxu0 0.0
    %1193 = vmatpush2.msra.mxu0 0.0
    %1194 = vmatprep.subr.mxu0 0.0
    %1195 = vmatpush2.msra.mxu0 0.0
    %1196 = vmatprep.subr.mxu0 0.0
    %1197 = vmatpush2.msra.mxu0 0.0
    %1198 = vmatprep.mubr.f32.mxu0 0.0
    %v1199 = vand.u32 %v75, 4294901760
    %1200 = vmatmul.mubr.f32.gmra.mxu0 %v1199
    %v1201 = vpop.f32.mrf.mxu0
    %v1202 = vadd.f32 %v1034, %v1201
    %v1203 = vpop.f32.mrf.mxu0
    %1204 = vmatprep.mubr.f32.mxu0 0.0
    %v1205 = vand.u32 %v78, 4294901760
    %1206 = vmatmul.mubr.f32.gmra.mxu0 %v1205
    %v1207 = vpop.f32.mrf.mxu0
    %v1208 = vadd.f32 %v1040, %v1207
    %v1209 = vpop.f32.mrf.mxu0
    %1210 = vmatprep.mubr.f32.mxu0 0.0
    %v1211 = vand.u32 %v81, 4294901760
    %1212 = vmatmul.mubr.f32.gmra.mxu0 %v1211
    %v1213 = vpop.f32.mrf.mxu0
    %v1214 = vadd.f32 %v1046, %v1213
    %v1215 = vpop.f32.mrf.mxu0
    %1216 = vmatprep.mubr.f32.mxu0 0.0
    %v1217 = vand.u32 %v84, 4294901760
    %1218 = vmatmul.mubr.f32.gmra.mxu0 %v1217
    %v1219 = vpop.f32.mrf.mxu0
    %v1220 = vadd.f32 %v1052, %v1219
    %v1221 = vpop.f32.mrf.mxu0
    %1222 = vmatprep.mubr.f32.mxu0 0.0
    %v1223 = vand.u32 %v87, 4294901760
    %1224 = vmatmul.mubr.f32.gmra.mxu0 %v1223
    %v1225 = vpop.f32.mrf.mxu0
    %v1226 = vadd.f32 %v1058, %v1225
    %v1227 = vpop.f32.mrf.mxu0
    %1228 = vmatprep.mubr.f32.mxu0 0.0
    %v1229 = vand.u32 %v90, 4294901760
    %1230 = vmatmul.mubr.f32.gmra.mxu0 %v1229
    %v1231 = vpop.f32.mrf.mxu0
    %v1232 = vadd.f32 %v1064, %v1231
    %v1233 = vpop.f32.mrf.mxu0
    %1234 = vmatprep.mubr.f32.mxu0 0.0
    %v1235 = vand.u32 %v93, 4294901760
    %1236 = vmatmul.mubr.f32.gmra.mxu0 %v1235
    %v1237 = vpop.f32.mrf.mxu0
    %v1238 = vadd.f32 %v1070, %v1237
    %v1239 = vpop.f32.mrf.mxu0
    %1240 = vmatprep.mubr.f32.mxu0 0.0
    %v1241 = vand.u32 %v96, 4294901760
    %1242 = vmatmul.mubr.f32.gmra.mxu0 %v1241
    %v1243 = vpop.f32.mrf.mxu0
    %v1244 = vadd.f32 %v1076, %v1243
    %v1245 = vpop.f32.mrf.mxu0
    %1246 = vmatprep.mubr.f32.mxu0 0.0
    %v1247 = vand.u32 %v99, 4294901760
    %1248 = vmatmul.mubr.f32.gmra.mxu0 %v1247
    %v1249 = vpop.f32.mrf.mxu0
    %v1250 = vadd.f32 %v1082, %v1249
    %v1251 = vpop.f32.mrf.mxu0
    %1252 = vmatprep.mubr.f32.mxu0 0.0
    %v1253 = vand.u32 %v102, 4294901760
    %1254 = vmatmul.mubr.f32.gmra.mxu0 %v1253
    %v1255 = vpop.f32.mrf.mxu0
    %v1256 = vadd.f32 %v1088, %v1255
    %v1257 = vpop.f32.mrf.mxu0
    %1258 = vmatprep.mubr.f32.mxu0 0.0
    %v1259 = vand.u32 %v105, 4294901760
    %1260 = vmatmul.mubr.f32.gmra.mxu0 %v1259
    %v1261 = vpop.f32.mrf.mxu0
    %v1262 = vadd.f32 %v1094, %v1261
    %v1263 = vpop.f32.mrf.mxu0
    %1264 = vmatprep.mubr.f32.mxu0 0.0
    %v1265 = vand.u32 %v108, 4294901760
    %1266 = vmatmul.mubr.f32.gmra.mxu0 %v1265
    %v1267 = vpop.f32.mrf.mxu0
    %v1268 = vadd.f32 %v1100, %v1267
    %v1269 = vpop.f32.mrf.mxu0
    %1270 = vmatprep.mubr.f32.mxu0 0.0
    %v1271 = vand.u32 %v111, 4294901760
    %1272 = vmatmul.mubr.f32.gmra.mxu0 %v1271
    %v1273 = vpop.f32.mrf.mxu0
    %v1274 = vadd.f32 %v1106, %v1273
    %v1275 = vpop.f32.mrf.mxu0
    %1276 = vmatprep.mubr.f32.mxu0 0.0
    %v1277 = vand.u32 %v114, 4294901760
    %1278 = vmatmul.mubr.f32.gmra.mxu0 %v1277
    %v1279 = vpop.f32.mrf.mxu0
    %v1280 = vadd.f32 %v1112, %v1279
    %v1281 = vpop.f32.mrf.mxu0
    %1282 = vmatprep.mubr.f32.mxu0 0.0
    %v1283 = vand.u32 %v117, 4294901760
    %1284 = vmatmul.mubr.f32.gmra.mxu0 %v1283
    %v1285 = vpop.f32.mrf.mxu0
    %v1286 = vadd.f32 %v1118, %v1285
    %v1287 = vpop.f32.mrf.mxu0
    %1288 = vmatprep.mubr.f32.mxu0 0.0
    %v1289 = vand.u32 %v120, 4294901760
    %1290 = vmatmul.mubr.f32.gmra.mxu0 %v1289
    %v1291 = vpop.f32.mrf.mxu0
    %v1292 = vadd.f32 %v1124, %v1291
    %v1293 = vpop.f32.mrf.mxu0
    %1294 = vdwg.mxu0
    %v1295 = vld [vmem:[%s3] sm:$0xff]
    %v1296 = vld [vmem:[%s3 + $0x8] sm:$0xff]
    %v1297 = vld [vmem:[%s3 + $0x10] sm:$0xff]
    %v1298 = vld [vmem:[%s3 + $0x18] sm:$0xff]
    %v1299 = vld [vmem:[%s3 + $0x20] sm:$0xff]
    %v1300 = vld [vmem:[%s3 + $0x28] sm:$0xff]
    %v1301 = vld [vmem:[%s3 + $0x30] sm:$0x3]
    %v1303 = vsel %vm73, %v34, 0
    %v1306 = vsel %vm73, %v35, 0
    %v1309 = vsel %vm73, %v36, 0
    %v1312 = vsel %vm73, %v37, 0
    %v1315 = vsel %vm73, %v38, 0
    %v1318 = vsel %vm73, %v39, 0
    %v1321 = vsel %vm73, %v40, 0
    %v1324 = vsel %vm73, %v41, 0
    %v1327 = vsel %vm73, %v42, 0
    %v1330 = vsel %vm73, %v43, 0
    %v1333 = vsel %vm73, %v44, 0
    %v1336 = vsel %vm73, %v45, 0
    %v1339 = vsel %vm73, %v46, 0
    %v1342 = vsel %vm73, %v47, 0
    %v1345 = vsel %vm73, %v48, 0
    %v1348 = vsel %vm73, %v49, 0
    %v1351 = vsel %vm122, %v1301, 0
    %1353 = vmatprep.subr.mxu0 0.0
    %1354 = vmatpush1.msra.mxu0 0.0
    %1355 = vmatprep.subr.mxu0 0.0
    %1356 = vmatpush1.msra.mxu0 0.0
    %1357 = vmatprep.subr.mxu0 0.0
    %1358 = vmatpush1.msra.mxu0 0.0
    %1359 = vmatprep.subr.mxu0 0.0
    %1360 = vmatpush1.msra.mxu0 0.0
    %1361 = vmatprep.subr.mxu0 0.0
    %1362 = vmatpush1.msra.mxu0 0.0
    %1363 = vmatprep.subr.mxu0 0.0
    %1364 = vmatpush1.msra.mxu0 0.0
    %1365 = vmatprep.subr.mxu0 0.0
    %1366 = vmatpush1.msra.mxu0 0.0
    %1367 = vmatprep.subr.mxu0 0.0
    %1368 = vmatpush1.msra.mxu0 0.0
    %1369 = vmatprep.subr.mxu0 0.0
    %1370 = vmatpush1.msra.mxu0 0.0
    %1371 = vmatprep.subr.mxu0 0.0
    %v1372 = vand.u32 %v1351, 4294901760
    %1373 = vmatpush1.msra.mxu0 %v1372
    %1374 = vmatprep.subr.mxu0 0.0
    %v1375 = vand.u32 %v1300, 4294901760
    %1376 = vmatpush1.msra.mxu0 %v1375
    %1377 = vmatprep.subr.mxu0 0.0
    %v1378 = vand.u32 %v1299, 4294901760
    %1379 = vmatpush1.msra.mxu0 %v1378
    %1380 = vmatprep.subr.mxu0 0.0
    %v1381 = vand.u32 %v1298, 4294901760
    %1382 = vmatpush1.msra.mxu0 %v1381
    %1383 = vmatprep.subr.mxu0 0.0
    %v1384 = vand.u32 %v1297, 4294901760
    %1385 = vmatpush1.msra.mxu0 %v1384
    %1386 = vmatprep.subr.mxu0 0.0
    %v1387 = vand.u32 %v1296, 4294901760
    %1388 = vmatpush1.msra.mxu0 %v1387
    %1389 = vmatprep.subr.mxu0 0.0
    %v1390 = vand.u32 %v1295, 4294901760
    %1391 = vmatpush1.msra.mxu0 %v1390
    %1392 = vmatprep.subr.mxu0 0.0
    %1393 = vmatpush2.msra.mxu0 0.0
    %1394 = vmatprep.subr.mxu0 0.0
    %1395 = vmatpush2.msra.mxu0 0.0
    %1396 = vmatprep.subr.mxu0 0.0
    %1397 = vmatpush2.msra.mxu0 0.0
    %1398 = vmatprep.subr.mxu0 0.0
    %1399 = vmatpush2.msra.mxu0 0.0
    %1400 = vmatprep.subr.mxu0 0.0
    %1401 = vmatpush2.msra.mxu0 0.0
    %1402 = vmatprep.subr.mxu0 0.0
    %1403 = vmatpush2.msra.mxu0 0.0
    %1404 = vmatprep.subr.mxu0 0.0
    %1405 = vmatpush2.msra.mxu0 0.0
    %1406 = vmatprep.subr.mxu0 0.0
    %1407 = vmatpush2.msra.mxu0 0.0
    %1408 = vmatprep.subr.mxu0 0.0
    %1409 = vmatpush2.msra.mxu0 0.0
    %1410 = vmatprep.subr.mxu0 0.0
    %1411 = vmatpush2.msra.mxu0 0.0
    %1412 = vmatprep.subr.mxu0 0.0
    %1413 = vmatpush2.msra.mxu0 0.0
    %1414 = vmatprep.subr.mxu0 0.0
    %1415 = vmatpush2.msra.mxu0 0.0
    %1416 = vmatprep.subr.mxu0 0.0
    %1417 = vmatpush2.msra.mxu0 0.0
    %1418 = vmatprep.subr.mxu0 0.0
    %1419 = vmatpush2.msra.mxu0 0.0
    %1420 = vmatprep.subr.mxu0 0.0
    %1421 = vmatpush2.msra.mxu0 0.0
    %1422 = vmatprep.subr.mxu0 0.0
    %1423 = vmatpush2.msra.mxu0 0.0
    %1424 = vmatprep.mubr.f32.mxu0 0.0
    %v1425 = vand.u32 %v1303, 4294901760
    %v1426 = vsub.f32 %v1303, %v1425
    %v1427 = vand.u32 %v1426, 4294901760
    %v1428 = vsub.f32 %v1426, %v1427
    %v1429 = vand.u32 %v1428, 4294901760
    %1430 = vmatmul.mubr.f32.gmra.mxu0 %v1429
    %v1431 = vpop.f32.mrf.mxu0
    %v1432 = vadd.f32 0.0, %v1431
    %v1433 = vpop.f32.mrf.mxu0
    %1434 = vmatprep.mubr.f32.mxu0 0.0
    %v1435 = vand.u32 %v1306, 4294901760
    %v1436 = vsub.f32 %v1306, %v1435
    %v1437 = vand.u32 %v1436, 4294901760
    %v1438 = vsub.f32 %v1436, %v1437
    %v1439 = vand.u32 %v1438, 4294901760
    %1440 = vmatmul.mubr.f32.gmra.mxu0 %v1439
    %v1441 = vpop.f32.mrf.mxu0
    %v1442 = vadd.f32 0.0, %v1441
    %v1443 = vpop.f32.mrf.mxu0
    %1444 = vmatprep.mubr.f32.mxu0 0.0
    %v1445 = vand.u32 %v1309, 4294901760
    %v1446 = vsub.f32 %v1309, %v1445
    %v1447 = vand.u32 %v1446, 4294901760
    %v1448 = vsub.f32 %v1446, %v1447
    %v1449 = vand.u32 %v1448, 4294901760
    %1450 = vmatmul.mubr.f32.gmra.mxu0 %v1449
    %v1451 = vpop.f32.mrf.mxu0
    %v1452 = vadd.f32 0.0, %v1451
    %v1453 = vpop.f32.mrf.mxu0
    %1454 = vmatprep.mubr.f32.mxu0 0.0
    %v1455 = vand.u32 %v1312, 4294901760
    %v1456 = vsub.f32 %v1312, %v1455
    %v1457 = vand.u32 %v1456, 4294901760
    %v1458 = vsub.f32 %v1456, %v1457
    %v1459 = vand.u32 %v1458, 4294901760
    %1460 = vmatmul.mubr.f32.gmra.mxu0 %v1459
    %v1461 = vpop.f32.mrf.mxu0
    %v1462 = vadd.f32 0.0, %v1461
    %v1463 = vpop.f32.mrf.mxu0
    %1464 = vmatprep.mubr.f32.mxu0 0.0
    %v1465 = vand.u32 %v1315, 4294901760
    %v1466 = vsub.f32 %v1315, %v1465
    %v1467 = vand.u32 %v1466, 4294901760
    %v1468 = vsub.f32 %v1466, %v1467
    %v1469 = vand.u32 %v1468, 4294901760
    %1470 = vmatmul.mubr.f32.gmra.mxu0 %v1469
    %v1471 = vpop.f32.mrf.mxu0
    %v1472 = vadd.f32 0.0, %v1471
    %v1473 = vpop.f32.mrf.mxu0
    %1474 = vmatprep.mubr.f32.mxu0 0.0
    %v1475 = vand.u32 %v1318, 4294901760
    %v1476 = vsub.f32 %v1318, %v1475
    %v1477 = vand.u32 %v1476, 4294901760
    %v1478 = vsub.f32 %v1476, %v1477
    %v1479 = vand.u32 %v1478, 4294901760
    %1480 = vmatmul.mubr.f32.gmra.mxu0 %v1479
    %v1481 = vpop.f32.mrf.mxu0
    %v1482 = vadd.f32 0.0, %v1481
    %v1483 = vpop.f32.mrf.mxu0
    %1484 = vmatprep.mubr.f32.mxu0 0.0
    %v1485 = vand.u32 %v1321, 4294901760
    %v1486 = vsub.f32 %v1321, %v1485
    %v1487 = vand.u32 %v1486, 4294901760
    %v1488 = vsub.f32 %v1486, %v1487
    %v1489 = vand.u32 %v1488, 4294901760
    %1490 = vmatmul.mubr.f32.gmra.mxu0 %v1489
    %v1491 = vpop.f32.mrf.mxu0
    %v1492 = vadd.f32 0.0, %v1491
    %v1493 = vpop.f32.mrf.mxu0
    %1494 = vmatprep.mubr.f32.mxu0 0.0
    %v1495 = vand.u32 %v1324, 4294901760
    %v1496 = vsub.f32 %v1324, %v1495
    %v1497 = vand.u32 %v1496, 4294901760
    %v1498 = vsub.f32 %v1496, %v1497
    %v1499 = vand.u32 %v1498, 4294901760
    %1500 = vmatmul.mubr.f32.gmra.mxu0 %v1499
    %v1501 = vpop.f32.mrf.mxu0
    %v1502 = vadd.f32 0.0, %v1501
    %v1503 = vpop.f32.mrf.mxu0
    %1504 = vmatprep.mubr.f32.mxu0 0.0
    %v1505 = vand.u32 %v1327, 4294901760
    %v1506 = vsub.f32 %v1327, %v1505
    %v1507 = vand.u32 %v1506, 4294901760
    %v1508 = vsub.f32 %v1506, %v1507
    %v1509 = vand.u32 %v1508, 4294901760
    %1510 = vmatmul.mubr.f32.gmra.mxu0 %v1509
    %v1511 = vpop.f32.mrf.mxu0
    %v1512 = vadd.f32 0.0, %v1511
    %v1513 = vpop.f32.mrf.mxu0
    %1514 = vmatprep.mubr.f32.mxu0 0.0
    %v1515 = vand.u32 %v1330, 4294901760
    %v1516 = vsub.f32 %v1330, %v1515
    %v1517 = vand.u32 %v1516, 4294901760
    %v1518 = vsub.f32 %v1516, %v1517
    %v1519 = vand.u32 %v1518, 4294901760
    %1520 = vmatmul.mubr.f32.gmra.mxu0 %v1519
    %v1521 = vpop.f32.mrf.mxu0
    %v1522 = vadd.f32 0.0, %v1521
    %v1523 = vpop.f32.mrf.mxu0
    %1524 = vmatprep.mubr.f32.mxu0 0.0
    %v1525 = vand.u32 %v1333, 4294901760
    %v1526 = vsub.f32 %v1333, %v1525
    %v1527 = vand.u32 %v1526, 4294901760
    %v1528 = vsub.f32 %v1526, %v1527
    %v1529 = vand.u32 %v1528, 4294901760
    %1530 = vmatmul.mubr.f32.gmra.mxu0 %v1529
    %v1531 = vpop.f32.mrf.mxu0
    %v1532 = vadd.f32 0.0, %v1531
    %v1533 = vpop.f32.mrf.mxu0
    %1534 = vmatprep.mubr.f32.mxu0 0.0
    %v1535 = vand.u32 %v1336, 4294901760
    %v1536 = vsub.f32 %v1336, %v1535
    %v1537 = vand.u32 %v1536, 4294901760
    %v1538 = vsub.f32 %v1536, %v1537
    %v1539 = vand.u32 %v1538, 4294901760
    %1540 = vmatmul.mubr.f32.gmra.mxu0 %v1539
    %v1541 = vpop.f32.mrf.mxu0
    %v1542 = vadd.f32 0.0, %v1541
    %v1543 = vpop.f32.mrf.mxu0
    %1544 = vmatprep.mubr.f32.mxu0 0.0
    %v1545 = vand.u32 %v1339, 4294901760
    %v1546 = vsub.f32 %v1339, %v1545
    %v1547 = vand.u32 %v1546, 4294901760
    %v1548 = vsub.f32 %v1546, %v1547
    %v1549 = vand.u32 %v1548, 4294901760
    %1550 = vmatmul.mubr.f32.gmra.mxu0 %v1549
    %v1551 = vpop.f32.mrf.mxu0
    %v1552 = vadd.f32 0.0, %v1551
    %v1553 = vpop.f32.mrf.mxu0
    %1554 = vmatprep.mubr.f32.mxu0 0.0
    %v1555 = vand.u32 %v1342, 4294901760
    %v1556 = vsub.f32 %v1342, %v1555
    %v1557 = vand.u32 %v1556, 4294901760
    %v1558 = vsub.f32 %v1556, %v1557
    %v1559 = vand.u32 %v1558, 4294901760
    %1560 = vmatmul.mubr.f32.gmra.mxu0 %v1559
    %v1561 = vpop.f32.mrf.mxu0
    %v1562 = vadd.f32 0.0, %v1561
    %v1563 = vpop.f32.mrf.mxu0
    %1564 = vmatprep.mubr.f32.mxu0 0.0
    %v1565 = vand.u32 %v1345, 4294901760
    %v1566 = vsub.f32 %v1345, %v1565
    %v1567 = vand.u32 %v1566, 4294901760
    %v1568 = vsub.f32 %v1566, %v1567
    %v1569 = vand.u32 %v1568, 4294901760
    %1570 = vmatmul.mubr.f32.gmra.mxu0 %v1569
    %v1571 = vpop.f32.mrf.mxu0
    %v1572 = vadd.f32 0.0, %v1571
    %v1573 = vpop.f32.mrf.mxu0
    %1574 = vmatprep.mubr.f32.mxu0 0.0
    %v1575 = vand.u32 %v1348, 4294901760
    %v1576 = vsub.f32 %v1348, %v1575
    %v1577 = vand.u32 %v1576, 4294901760
    %v1578 = vsub.f32 %v1576, %v1577
    %v1579 = vand.u32 %v1578, 4294901760
    %1580 = vmatmul.mubr.f32.gmra.mxu0 %v1579
    %v1581 = vpop.f32.mrf.mxu0
    %v1582 = vadd.f32 0.0, %v1581
    %v1583 = vpop.f32.mrf.mxu0
    %1584 = vdwg.mxu0
    %1585 = vmatprep.subr.mxu0 0.0
    %1586 = vmatpush1.msra.mxu0 0.0
    %1587 = vmatprep.subr.mxu0 0.0
    %1588 = vmatpush1.msra.mxu0 0.0
    %1589 = vmatprep.subr.mxu0 0.0
    %1590 = vmatpush1.msra.mxu0 0.0
    %1591 = vmatprep.subr.mxu0 0.0
    %1592 = vmatpush1.msra.mxu0 0.0
    %1593 = vmatprep.subr.mxu0 0.0
    %1594 = vmatpush1.msra.mxu0 0.0
    %1595 = vmatprep.subr.mxu0 0.0
    %1596 = vmatpush1.msra.mxu0 0.0
    %1597 = vmatprep.subr.mxu0 0.0
    %1598 = vmatpush1.msra.mxu0 0.0
    %1599 = vmatprep.subr.mxu0 0.0
    %1600 = vmatpush1.msra.mxu0 0.0
    %1601 = vmatprep.subr.mxu0 0.0
    %1602 = vmatpush1.msra.mxu0 0.0
    %1603 = vmatprep.subr.mxu0 0.0
    %v1604 = vand.u32 %v1351, 4294901760
    %v1605 = vsub.f32 %v1351, %v1604
    %v1606 = vand.u32 %v1605, 4294901760
    %v1607 = vsub.f32 %v1605, %v1606
    %v1608 = vand.u32 %v1607, 4294901760
    %1609 = vmatpush1.msra.mxu0 %v1608
    %1610 = vmatprep.subr.mxu0 0.0
    %v1611 = vand.u32 %v1300, 4294901760
    %v1612 = vsub.f32 %v1300, %v1611
    %v1613 = vand.u32 %v1612, 4294901760
    %v1614 = vsub.f32 %v1612, %v1613
    %v1615 = vand.u32 %v1614, 4294901760
    %1616 = vmatpush1.msra.mxu0 %v1615
    %1617 = vmatprep.subr.mxu0 0.0
    %v1618 = vand.u32 %v1299, 4294901760
    %v1619 = vsub.f32 %v1299, %v1618
    %v1620 = vand.u32 %v1619, 4294901760
    %v1621 = vsub.f32 %v1619, %v1620
    %v1622 = vand.u32 %v1621, 4294901760
    %1623 = vmatpush1.msra.mxu0 %v1622
    %1624 = vmatprep.subr.mxu0 0.0
    %v1625 = vand.u32 %v1298, 4294901760
    %v1626 = vsub.f32 %v1298, %v1625
    %v1627 = vand.u32 %v1626, 4294901760
    %v1628 = vsub.f32 %v1626, %v1627
    %v1629 = vand.u32 %v1628, 4294901760
    %1630 = vmatpush1.msra.mxu0 %v1629
    %1631 = vmatprep.subr.mxu0 0.0
    %v1632 = vand.u32 %v1297, 4294901760
    %v1633 = vsub.f32 %v1297, %v1632
    %v1634 = vand.u32 %v1633, 4294901760
    %v1635 = vsub.f32 %v1633, %v1634
    %v1636 = vand.u32 %v1635, 4294901760
    %1637 = vmatpush1.msra.mxu0 %v1636
    %1638 = vmatprep.subr.mxu0 0.0
    %v1639 = vand.u32 %v1296, 4294901760
    %v1640 = vsub.f32 %v1296, %v1639
    %v1641 = vand.u32 %v1640, 4294901760
    %v1642 = vsub.f32 %v1640, %v1641
    %v1643 = vand.u32 %v1642, 4294901760
    %1644 = vmatpush1.msra.mxu0 %v1643
    %1645 = vmatprep.subr.mxu0 0.0
    %v1646 = vand.u32 %v1295, 4294901760
    %v1647 = vsub.f32 %v1295, %v1646
    %v1648 = vand.u32 %v1647, 4294901760
    %v1649 = vsub.f32 %v1647, %v1648
    %v1650 = vand.u32 %v1649, 4294901760
    %1651 = vmatpush1.msra.mxu0 %v1650
    %1652 = vmatprep.subr.mxu0 0.0
    %1653 = vmatpush2.msra.mxu0 0.0
    %1654 = vmatprep.subr.mxu0 0.0
    %1655 = vmatpush2.msra.mxu0 0.0
    %1656 = vmatprep.subr.mxu0 0.0
    %1657 = vmatpush2.msra.mxu0 0.0
    %1658 = vmatprep.subr.mxu0 0.0
    %1659 = vmatpush2.msra.mxu0 0.0
    %1660 = vmatprep.subr.mxu0 0.0
    %1661 = vmatpush2.msra.mxu0 0.0
    %1662 = vmatprep.subr.mxu0 0.0
    %1663 = vmatpush2.msra.mxu0 0.0
    %1664 = vmatprep.subr.mxu0 0.0
    %1665 = vmatpush2.msra.mxu0 0.0
    %1666 = vmatprep.subr.mxu0 0.0
    %1667 = vmatpush2.msra.mxu0 0.0
    %1668 = vmatprep.subr.mxu0 0.0
    %1669 = vmatpush2.msra.mxu0 0.0
    %1670 = vmatprep.subr.mxu0 0.0
    %1671 = vmatpush2.msra.mxu0 0.0
    %1672 = vmatprep.subr.mxu0 0.0
    %1673 = vmatpush2.msra.mxu0 0.0
    %1674 = vmatprep.subr.mxu0 0.0
    %1675 = vmatpush2.msra.mxu0 0.0
    %1676 = vmatprep.subr.mxu0 0.0
    %1677 = vmatpush2.msra.mxu0 0.0
    %1678 = vmatprep.subr.mxu0 0.0
    %1679 = vmatpush2.msra.mxu0 0.0
    %1680 = vmatprep.subr.mxu0 0.0
    %1681 = vmatpush2.msra.mxu0 0.0
    %1682 = vmatprep.subr.mxu0 0.0
    %1683 = vmatpush2.msra.mxu0 0.0
    %1684 = vmatprep.mubr.f32.mxu0 0.0
    %v1685 = vand.u32 %v1303, 4294901760
    %1686 = vmatmul.mubr.f32.gmra.mxu0 %v1685
    %v1687 = vpop.f32.mrf.mxu0
    %v1688 = vadd.f32 %v1432, %v1687
    %v1689 = vpop.f32.mrf.mxu0
    %1690 = vmatprep.mubr.f32.mxu0 0.0
    %v1691 = vand.u32 %v1306, 4294901760
    %1692 = vmatmul.mubr.f32.gmra.mxu0 %v1691
    %v1693 = vpop.f32.mrf.mxu0
    %v1694 = vadd.f32 %v1442, %v1693
    %v1695 = vpop.f32.mrf.mxu0
    %1696 = vmatprep.mubr.f32.mxu0 0.0
    %v1697 = vand.u32 %v1309, 4294901760
    %1698 = vmatmul.mubr.f32.gmra.mxu0 %v1697
    %v1699 = vpop.f32.mrf.mxu0
    %v1700 = vadd.f32 %v1452, %v1699
    %v1701 = vpop.f32.mrf.mxu0
    %1702 = vmatprep.mubr.f32.mxu0 0.0
    %v1703 = vand.u32 %v1312, 4294901760
    %1704 = vmatmul.mubr.f32.gmra.mxu0 %v1703
    %v1705 = vpop.f32.mrf.mxu0
    %v1706 = vadd.f32 %v1462, %v1705
    %v1707 = vpop.f32.mrf.mxu0
    %1708 = vmatprep.mubr.f32.mxu0 0.0
    %v1709 = vand.u32 %v1315, 4294901760
    %1710 = vmatmul.mubr.f32.gmra.mxu0 %v1709
    %v1711 = vpop.f32.mrf.mxu0
    %v1712 = vadd.f32 %v1472, %v1711
    %v1713 = vpop.f32.mrf.mxu0
    %1714 = vmatprep.mubr.f32.mxu0 0.0
    %v1715 = vand.u32 %v1318, 4294901760
    %1716 = vmatmul.mubr.f32.gmra.mxu0 %v1715
    %v1717 = vpop.f32.mrf.mxu0
    %v1718 = vadd.f32 %v1482, %v1717
    %v1719 = vpop.f32.mrf.mxu0
    %1720 = vmatprep.mubr.f32.mxu0 0.0
    %v1721 = vand.u32 %v1321, 4294901760
    %1722 = vmatmul.mubr.f32.gmra.mxu0 %v1721
    %v1723 = vpop.f32.mrf.mxu0
    %v1724 = vadd.f32 %v1492, %v1723
    %v1725 = vpop.f32.mrf.mxu0
    %1726 = vmatprep.mubr.f32.mxu0 0.0
    %v1727 = vand.u32 %v1324, 4294901760
    %1728 = vmatmul.mubr.f32.gmra.mxu0 %v1727
    %v1729 = vpop.f32.mrf.mxu0
    %v1730 = vadd.f32 %v1502, %v1729
    %v1731 = vpop.f32.mrf.mxu0
    %1732 = vmatprep.mubr.f32.mxu0 0.0
    %v1733 = vand.u32 %v1327, 4294901760
    %1734 = vmatmul.mubr.f32.gmra.mxu0 %v1733
    %v1735 = vpop.f32.mrf.mxu0
    %v1736 = vadd.f32 %v1512, %v1735
    %v1737 = vpop.f32.mrf.mxu0
    %1738 = vmatprep.mubr.f32.mxu0 0.0
    %v1739 = vand.u32 %v1330, 4294901760
    %1740 = vmatmul.mubr.f32.gmra.mxu0 %v1739
    %v1741 = vpop.f32.mrf.mxu0
    %v1742 = vadd.f32 %v1522, %v1741
    %v1743 = vpop.f32.mrf.mxu0
    %1744 = vmatprep.mubr.f32.mxu0 0.0
    %v1745 = vand.u32 %v1333, 4294901760
    %1746 = vmatmul.mubr.f32.gmra.mxu0 %v1745
    %v1747 = vpop.f32.mrf.mxu0
    %v1748 = vadd.f32 %v1532, %v1747
    %v1749 = vpop.f32.mrf.mxu0
    %1750 = vmatprep.mubr.f32.mxu0 0.0
    %v1751 = vand.u32 %v1336, 4294901760
    %1752 = vmatmul.mubr.f32.gmra.mxu0 %v1751
    %v1753 = vpop.f32.mrf.mxu0
    %v1754 = vadd.f32 %v1542, %v1753
    %v1755 = vpop.f32.mrf.mxu0
    %1756 = vmatprep.mubr.f32.mxu0 0.0
    %v1757 = vand.u32 %v1339, 4294901760
    %1758 = vmatmul.mubr.f32.gmra.mxu0 %v1757
    %v1759 = vpop.f32.mrf.mxu0
    %v1760 = vadd.f32 %v1552, %v1759
    %v1761 = vpop.f32.mrf.mxu0
    %1762 = vmatprep.mubr.f32.mxu0 0.0
    %v1763 = vand.u32 %v1342, 4294901760
    %1764 = vmatmul.mubr.f32.gmra.mxu0 %v1763
    %v1765 = vpop.f32.mrf.mxu0
    %v1766 = vadd.f32 %v1562, %v1765
    %v1767 = vpop.f32.mrf.mxu0
    %1768 = vmatprep.mubr.f32.mxu0 0.0
    %v1769 = vand.u32 %v1345, 4294901760
    %1770 = vmatmul.mubr.f32.gmra.mxu0 %v1769
    %v1771 = vpop.f32.mrf.mxu0
    %v1772 = vadd.f32 %v1572, %v1771
    %v1773 = vpop.f32.mrf.mxu0
    %1774 = vmatprep.mubr.f32.mxu0 0.0
    %v1775 = vand.u32 %v1348, 4294901760
    %1776 = vmatmul.mubr.f32.gmra.mxu0 %v1775
    %v1777 = vpop.f32.mrf.mxu0
    %v1778 = vadd.f32 %v1582, %v1777
    %v1779 = vpop.f32.mrf.mxu0
    %1780 = vdwg.mxu0
    %1781 = vmatprep.subr.mxu0 0.0
    %1782 = vmatpush1.msra.mxu0 0.0
    %1783 = vmatprep.subr.mxu0 0.0
    %1784 = vmatpush1.msra.mxu0 0.0
    %1785 = vmatprep.subr.mxu0 0.0
    %1786 = vmatpush1.msra.mxu0 0.0
    %1787 = vmatprep.subr.mxu0 0.0
    %1788 = vmatpush1.msra.mxu0 0.0
    %1789 = vmatprep.subr.mxu0 0.0
    %1790 = vmatpush1.msra.mxu0 0.0
    %1791 = vmatprep.subr.mxu0 0.0
    %1792 = vmatpush1.msra.mxu0 0.0
    %1793 = vmatprep.subr.mxu0 0.0
    %1794 = vmatpush1.msra.mxu0 0.0
    %1795 = vmatprep.subr.mxu0 0.0
    %1796 = vmatpush1.msra.mxu0 0.0
    %1797 = vmatprep.subr.mxu0 0.0
    %1798 = vmatpush1.msra.mxu0 0.0
    %1799 = vmatprep.subr.mxu0 0.0
    %v1800 = vand.u32 %v1351, 4294901760
    %v1801 = vsub.f32 %v1351, %v1800
    %1802 = vmatpush1.msra.mxu0 %v1801
    %1803 = vmatprep.subr.mxu0 0.0
    %v1804 = vand.u32 %v1300, 4294901760
    %v1805 = vsub.f32 %v1300, %v1804
    %1806 = vmatpush1.msra.mxu0 %v1805
    %1807 = vmatprep.subr.mxu0 0.0
    %v1808 = vand.u32 %v1299, 4294901760
    %v1809 = vsub.f32 %v1299, %v1808
    %1810 = vmatpush1.msra.mxu0 %v1809
    %1811 = vmatprep.subr.mxu0 0.0
    %v1812 = vand.u32 %v1298, 4294901760
    %v1813 = vsub.f32 %v1298, %v1812
    %1814 = vmatpush1.msra.mxu0 %v1813
    %1815 = vmatprep.subr.mxu0 0.0
    %v1816 = vand.u32 %v1297, 4294901760
    %v1817 = vsub.f32 %v1297, %v1816
    %1818 = vmatpush1.msra.mxu0 %v1817
    %1819 = vmatprep.subr.mxu0 0.0
    %v1820 = vand.u32 %v1296, 4294901760
    %v1821 = vsub.f32 %v1296, %v1820
    %1822 = vmatpush1.msra.mxu0 %v1821
    %1823 = vmatprep.subr.mxu0 0.0
    %v1824 = vand.u32 %v1295, 4294901760
    %v1825 = vsub.f32 %v1295, %v1824
    %1826 = vmatpush1.msra.mxu0 %v1825
    %1827 = vmatprep.subr.mxu0 0.0
    %1828 = vmatpush2.msra.mxu0 0.0
    %1829 = vmatprep.subr.mxu0 0.0
    %1830 = vmatpush2.msra.mxu0 0.0
    %1831 = vmatprep.subr.mxu0 0.0
    %1832 = vmatpush2.msra.mxu0 0.0
    %1833 = vmatprep.subr.mxu0 0.0
    %1834 = vmatpush2.msra.mxu0 0.0
    %1835 = vmatprep.subr.mxu0 0.0
    %1836 = vmatpush2.msra.mxu0 0.0
    %1837 = vmatprep.subr.mxu0 0.0
    %1838 = vmatpush2.msra.mxu0 0.0
    %1839 = vmatprep.subr.mxu0 0.0
    %1840 = vmatpush2.msra.mxu0 0.0
    %1841 = vmatprep.subr.mxu0 0.0
    %1842 = vmatpush2.msra.mxu0 0.0
    %1843 = vmatprep.subr.mxu0 0.0
    %1844 = vmatpush2.msra.mxu0 0.0
    %1845 = vmatprep.subr.mxu0 0.0
    %1846 = vmatpush2.msra.mxu0 0.0
    %1847 = vmatprep.subr.mxu0 0.0
    %1848 = vmatpush2.msra.mxu0 0.0
    %1849 = vmatprep.subr.mxu0 0.0
    %1850 = vmatpush2.msra.mxu0 0.0
    %1851 = vmatprep.subr.mxu0 0.0
    %1852 = vmatpush2.msra.mxu0 0.0
    %1853 = vmatprep.subr.mxu0 0.0
    %1854 = vmatpush2.msra.mxu0 0.0
    %1855 = vmatprep.subr.mxu0 0.0
    %1856 = vmatpush2.msra.mxu0 0.0
    %1857 = vmatprep.subr.mxu0 0.0
    %1858 = vmatpush2.msra.mxu0 0.0
    %1859 = vmatprep.mubr.f32.mxu0 0.0
    %v1860 = vand.u32 %v1303, 4294901760
    %v1861 = vsub.f32 %v1303, %v1860
    %1862 = vmatmul.mubr.f32.gmra.mxu0 %v1861
    %v1863 = vpop.f32.mrf.mxu0
    %v1864 = vadd.f32 %v1688, %v1863
    %v1865 = vpop.f32.mrf.mxu0
    %1866 = vmatprep.mubr.f32.mxu0 0.0
    %v1867 = vand.u32 %v1306, 4294901760
    %v1868 = vsub.f32 %v1306, %v1867
    %1869 = vmatmul.mubr.f32.gmra.mxu0 %v1868
    %v1870 = vpop.f32.mrf.mxu0
    %v1871 = vadd.f32 %v1694, %v1870
    %v1872 = vpop.f32.mrf.mxu0
    %1873 = vmatprep.mubr.f32.mxu0 0.0
    %v1874 = vand.u32 %v1309, 4294901760
    %v1875 = vsub.f32 %v1309, %v1874
    %1876 = vmatmul.mubr.f32.gmra.mxu0 %v1875
    %v1877 = vpop.f32.mrf.mxu0
    %v1878 = vadd.f32 %v1700, %v1877
    %v1879 = vpop.f32.mrf.mxu0
    %1880 = vmatprep.mubr.f32.mxu0 0.0
    %v1881 = vand.u32 %v1312, 4294901760
    %v1882 = vsub.f32 %v1312, %v1881
    %1883 = vmatmul.mubr.f32.gmra.mxu0 %v1882
    %v1884 = vpop.f32.mrf.mxu0
    %v1885 = vadd.f32 %v1706, %v1884
    %v1886 = vpop.f32.mrf.mxu0
    %1887 = vmatprep.mubr.f32.mxu0 0.0
    %v1888 = vand.u32 %v1315, 4294901760
    %v1889 = vsub.f32 %v1315, %v1888
    %1890 = vmatmul.mubr.f32.gmra.mxu0 %v1889
    %v1891 = vpop.f32.mrf.mxu0
    %v1892 = vadd.f32 %v1712, %v1891
    %v1893 = vpop.f32.mrf.mxu0
    %1894 = vmatprep.mubr.f32.mxu0 0.0
    %v1895 = vand.u32 %v1318, 4294901760
    %v1896 = vsub.f32 %v1318, %v1895
    %1897 = vmatmul.mubr.f32.gmra.mxu0 %v1896
    %v1898 = vpop.f32.mrf.mxu0
    %v1899 = vadd.f32 %v1718, %v1898
    %v1900 = vpop.f32.mrf.mxu0
    %1901 = vmatprep.mubr.f32.mxu0 0.0
    %v1902 = vand.u32 %v1321, 4294901760
    %v1903 = vsub.f32 %v1321, %v1902
    %1904 = vmatmul.mubr.f32.gmra.mxu0 %v1903
    %v1905 = vpop.f32.mrf.mxu0
    %v1906 = vadd.f32 %v1724, %v1905
    %v1907 = vpop.f32.mrf.mxu0
    %1908 = vmatprep.mubr.f32.mxu0 0.0
    %v1909 = vand.u32 %v1324, 4294901760
    %v1910 = vsub.f32 %v1324, %v1909
    %1911 = vmatmul.mubr.f32.gmra.mxu0 %v1910
    %v1912 = vpop.f32.mrf.mxu0
    %v1913 = vadd.f32 %v1730, %v1912
    %v1914 = vpop.f32.mrf.mxu0
    %1915 = vmatprep.mubr.f32.mxu0 0.0
    %v1916 = vand.u32 %v1327, 4294901760
    %v1917 = vsub.f32 %v1327, %v1916
    %1918 = vmatmul.mubr.f32.gmra.mxu0 %v1917
    %v1919 = vpop.f32.mrf.mxu0
    %v1920 = vadd.f32 %v1736, %v1919
    %v1921 = vpop.f32.mrf.mxu0
    %1922 = vmatprep.mubr.f32.mxu0 0.0
    %v1923 = vand.u32 %v1330, 4294901760
    %v1924 = vsub.f32 %v1330, %v1923
    %1925 = vmatmul.mubr.f32.gmra.mxu0 %v1924
    %v1926 = vpop.f32.mrf.mxu0
    %v1927 = vadd.f32 %v1742, %v1926
    %v1928 = vpop.f32.mrf.mxu0
    %1929 = vmatprep.mubr.f32.mxu0 0.0
    %v1930 = vand.u32 %v1333, 4294901760
    %v1931 = vsub.f32 %v1333, %v1930
    %1932 = vmatmul.mubr.f32.gmra.mxu0 %v1931
    %v1933 = vpop.f32.mrf.mxu0
    %v1934 = vadd.f32 %v1748, %v1933
    %v1935 = vpop.f32.mrf.mxu0
    %1936 = vmatprep.mubr.f32.mxu0 0.0
    %v1937 = vand.u32 %v1336, 4294901760
    %v1938 = vsub.f32 %v1336, %v1937
    %1939 = vmatmul.mubr.f32.gmra.mxu0 %v1938
    %v1940 = vpop.f32.mrf.mxu0
    %v1941 = vadd.f32 %v1754, %v1940
    %v1942 = vpop.f32.mrf.mxu0
    %1943 = vmatprep.mubr.f32.mxu0 0.0
    %v1944 = vand.u32 %v1339, 4294901760
    %v1945 = vsub.f32 %v1339, %v1944
    %1946 = vmatmul.mubr.f32.gmra.mxu0 %v1945
    %v1947 = vpop.f32.mrf.mxu0
    %v1948 = vadd.f32 %v1760, %v1947
    %v1949 = vpop.f32.mrf.mxu0
    %1950 = vmatprep.mubr.f32.mxu0 0.0
    %v1951 = vand.u32 %v1342, 4294901760
    %v1952 = vsub.f32 %v1342, %v1951
    %1953 = vmatmul.mubr.f32.gmra.mxu0 %v1952
    %v1954 = vpop.f32.mrf.mxu0
    %v1955 = vadd.f32 %v1766, %v1954
    %v1956 = vpop.f32.mrf.mxu0
    %1957 = vmatprep.mubr.f32.mxu0 0.0
    %v1958 = vand.u32 %v1345, 4294901760
    %v1959 = vsub.f32 %v1345, %v1958
    %1960 = vmatmul.mubr.f32.gmra.mxu0 %v1959
    %v1961 = vpop.f32.mrf.mxu0
    %v1962 = vadd.f32 %v1772, %v1961
    %v1963 = vpop.f32.mrf.mxu0
    %1964 = vmatprep.mubr.f32.mxu0 0.0
    %v1965 = vand.u32 %v1348, 4294901760
    %v1966 = vsub.f32 %v1348, %v1965
    %1967 = vmatmul.mubr.f32.gmra.mxu0 %v1966
    %v1968 = vpop.f32.mrf.mxu0
    %v1969 = vadd.f32 %v1778, %v1968
    %v1970 = vpop.f32.mrf.mxu0
    %1971 = vdwg.mxu0
    %1972 = vmatprep.subr.mxu0 0.0
    %1973 = vmatpush1.msra.mxu0 0.0
    %1974 = vmatprep.subr.mxu0 0.0
    %1975 = vmatpush1.msra.mxu0 0.0
    %1976 = vmatprep.subr.mxu0 0.0
    %1977 = vmatpush1.msra.mxu0 0.0
    %1978 = vmatprep.subr.mxu0 0.0
    %1979 = vmatpush1.msra.mxu0 0.0
    %1980 = vmatprep.subr.mxu0 0.0
    %1981 = vmatpush1.msra.mxu0 0.0
    %1982 = vmatprep.subr.mxu0 0.0
    %1983 = vmatpush1.msra.mxu0 0.0
    %1984 = vmatprep.subr.mxu0 0.0
    %1985 = vmatpush1.msra.mxu0 0.0
    %1986 = vmatprep.subr.mxu0 0.0
    %1987 = vmatpush1.msra.mxu0 0.0
    %1988 = vmatprep.subr.mxu0 0.0
    %1989 = vmatpush1.msra.mxu0 0.0
    %1990 = vmatprep.subr.mxu0 0.0
    %v1991 = vand.u32 %v1351, 4294901760
    %1992 = vmatpush1.msra.mxu0 %v1991
    %1993 = vmatprep.subr.mxu0 0.0
    %v1994 = vand.u32 %v1300, 4294901760
    %1995 = vmatpush1.msra.mxu0 %v1994
    %1996 = vmatprep.subr.mxu0 0.0
    %v1997 = vand.u32 %v1299, 4294901760
    %1998 = vmatpush1.msra.mxu0 %v1997
    %1999 = vmatprep.subr.mxu0 0.0
    %v2000 = vand.u32 %v1298, 4294901760
    %2001 = vmatpush1.msra.mxu0 %v2000
    %2002 = vmatprep.subr.mxu0 0.0
    %v2003 = vand.u32 %v1297, 4294901760
    %2004 = vmatpush1.msra.mxu0 %v2003
    %2005 = vmatprep.subr.mxu0 0.0
    %v2006 = vand.u32 %v1296, 4294901760
    %2007 = vmatpush1.msra.mxu0 %v2006
    %2008 = vmatprep.subr.mxu0 0.0
    %v2009 = vand.u32 %v1295, 4294901760
    %2010 = vmatpush1.msra.mxu0 %v2009
    %2011 = vmatprep.subr.mxu0 0.0
    %2012 = vmatpush2.msra.mxu0 0.0
    %2013 = vmatprep.subr.mxu0 0.0
    %2014 = vmatpush2.msra.mxu0 0.0
    %2015 = vmatprep.subr.mxu0 0.0
    %2016 = vmatpush2.msra.mxu0 0.0
    %2017 = vmatprep.subr.mxu0 0.0
    %2018 = vmatpush2.msra.mxu0 0.0
    %2019 = vmatprep.subr.mxu0 0.0
    %2020 = vmatpush2.msra.mxu0 0.0
    %2021 = vmatprep.subr.mxu0 0.0
    %2022 = vmatpush2.msra.mxu0 0.0
    %2023 = vmatprep.subr.mxu0 0.0
    %2024 = vmatpush2.msra.mxu0 0.0
    %2025 = vmatprep.subr.mxu0 0.0
    %2026 = vmatpush2.msra.mxu0 0.0
    %2027 = vmatprep.subr.mxu0 0.0
    %2028 = vmatpush2.msra.mxu0 0.0
    %2029 = vmatprep.subr.mxu0 0.0
    %2030 = vmatpush2.msra.mxu0 0.0
    %2031 = vmatprep.subr.mxu0 0.0
    %2032 = vmatpush2.msra.mxu0 0.0
    %2033 = vmatprep.subr.mxu0 0.0
    %2034 = vmatpush2.msra.mxu0 0.0
    %2035 = vmatprep.subr.mxu0 0.0
    %2036 = vmatpush2.msra.mxu0 0.0
    %2037 = vmatprep.subr.mxu0 0.0
    %2038 = vmatpush2.msra.mxu0 0.0
    %2039 = vmatprep.subr.mxu0 0.0
    %2040 = vmatpush2.msra.mxu0 0.0
    %2041 = vmatprep.subr.mxu0 0.0
    %2042 = vmatpush2.msra.mxu0 0.0
    %2043 = vmatprep.mubr.f32.mxu0 0.0
    %v2044 = vand.u32 %v1303, 4294901760
    %v2045 = vsub.f32 %v1303, %v2044
    %v2046 = vand.u32 %v2045, 4294901760
    %2047 = vmatmul.mubr.f32.gmra.mxu0 %v2046
    %v2048 = vpop.f32.mrf.mxu0
    %v2049 = vadd.f32 %v1864, %v2048
    %v2050 = vpop.f32.mrf.mxu0
    %2051 = vmatprep.mubr.f32.mxu0 0.0
    %v2052 = vand.u32 %v1306, 4294901760
    %v2053 = vsub.f32 %v1306, %v2052
    %v2054 = vand.u32 %v2053, 4294901760
    %2055 = vmatmul.mubr.f32.gmra.mxu0 %v2054
    %v2056 = vpop.f32.mrf.mxu0
    %v2057 = vadd.f32 %v1871, %v2056
    %v2058 = vpop.f32.mrf.mxu0
    %2059 = vmatprep.mubr.f32.mxu0 0.0
    %v2060 = vand.u32 %v1309, 4294901760
    %v2061 = vsub.f32 %v1309, %v2060
    %v2062 = vand.u32 %v2061, 4294901760
    %2063 = vmatmul.mubr.f32.gmra.mxu0 %v2062
    %v2064 = vpop.f32.mrf.mxu0
    %v2065 = vadd.f32 %v1878, %v2064
    %v2066 = vpop.f32.mrf.mxu0
    %2067 = vmatprep.mubr.f32.mxu0 0.0
    %v2068 = vand.u32 %v1312, 4294901760
    %v2069 = vsub.f32 %v1312, %v2068
    %v2070 = vand.u32 %v2069, 4294901760
    %2071 = vmatmul.mubr.f32.gmra.mxu0 %v2070
    %v2072 = vpop.f32.mrf.mxu0
    %v2073 = vadd.f32 %v1885, %v2072
    %v2074 = vpop.f32.mrf.mxu0
    %2075 = vmatprep.mubr.f32.mxu0 0.0
    %v2076 = vand.u32 %v1315, 4294901760
    %v2077 = vsub.f32 %v1315, %v2076
    %v2078 = vand.u32 %v2077, 4294901760
    %2079 = vmatmul.mubr.f32.gmra.mxu0 %v2078
    %v2080 = vpop.f32.mrf.mxu0
    %v2081 = vadd.f32 %v1892, %v2080
    %v2082 = vpop.f32.mrf.mxu0
    %2083 = vmatprep.mubr.f32.mxu0 0.0
    %v2084 = vand.u32 %v1318, 4294901760
    %v2085 = vsub.f32 %v1318, %v2084
    %v2086 = vand.u32 %v2085, 4294901760
    %2087 = vmatmul.mubr.f32.gmra.mxu0 %v2086
    %v2088 = vpop.f32.mrf.mxu0
    %v2089 = vadd.f32 %v1899, %v2088
    %v2090 = vpop.f32.mrf.mxu0
    %2091 = vmatprep.mubr.f32.mxu0 0.0
    %v2092 = vand.u32 %v1321, 4294901760
    %v2093 = vsub.f32 %v1321, %v2092
    %v2094 = vand.u32 %v2093, 4294901760
    %2095 = vmatmul.mubr.f32.gmra.mxu0 %v2094
    %v2096 = vpop.f32.mrf.mxu0
    %v2097 = vadd.f32 %v1906, %v2096
    %v2098 = vpop.f32.mrf.mxu0
    %2099 = vmatprep.mubr.f32.mxu0 0.0
    %v2100 = vand.u32 %v1324, 4294901760
    %v2101 = vsub.f32 %v1324, %v2100
    %v2102 = vand.u32 %v2101, 4294901760
    %2103 = vmatmul.mubr.f32.gmra.mxu0 %v2102
    %v2104 = vpop.f32.mrf.mxu0
    %v2105 = vadd.f32 %v1913, %v2104
    %v2106 = vpop.f32.mrf.mxu0
    %2107 = vmatprep.mubr.f32.mxu0 0.0
    %v2108 = vand.u32 %v1327, 4294901760
    %v2109 = vsub.f32 %v1327, %v2108
    %v2110 = vand.u32 %v2109, 4294901760
    %2111 = vmatmul.mubr.f32.gmra.mxu0 %v2110
    %v2112 = vpop.f32.mrf.mxu0
    %v2113 = vadd.f32 %v1920, %v2112
    %v2114 = vpop.f32.mrf.mxu0
    %2115 = vmatprep.mubr.f32.mxu0 0.0
    %v2116 = vand.u32 %v1330, 4294901760
    %v2117 = vsub.f32 %v1330, %v2116
    %v2118 = vand.u32 %v2117, 4294901760
    %2119 = vmatmul.mubr.f32.gmra.mxu0 %v2118
    %v2120 = vpop.f32.mrf.mxu0
    %v2121 = vadd.f32 %v1927, %v2120
    %v2122 = vpop.f32.mrf.mxu0
    %2123 = vmatprep.mubr.f32.mxu0 0.0
    %v2124 = vand.u32 %v1333, 4294901760
    %v2125 = vsub.f32 %v1333, %v2124
    %v2126 = vand.u32 %v2125, 4294901760
    %2127 = vmatmul.mubr.f32.gmra.mxu0 %v2126
    %v2128 = vpop.f32.mrf.mxu0
    %v2129 = vadd.f32 %v1934, %v2128
    %v2130 = vpop.f32.mrf.mxu0
    %2131 = vmatprep.mubr.f32.mxu0 0.0
    %v2132 = vand.u32 %v1336, 4294901760
    %v2133 = vsub.f32 %v1336, %v2132
    %v2134 = vand.u32 %v2133, 4294901760
    %2135 = vmatmul.mubr.f32.gmra.mxu0 %v2134
    %v2136 = vpop.f32.mrf.mxu0
    %v2137 = vadd.f32 %v1941, %v2136
    %v2138 = vpop.f32.mrf.mxu0
    %2139 = vmatprep.mubr.f32.mxu0 0.0
    %v2140 = vand.u32 %v1339, 4294901760
    %v2141 = vsub.f32 %v1339, %v2140
    %v2142 = vand.u32 %v2141, 4294901760
    %2143 = vmatmul.mubr.f32.gmra.mxu0 %v2142
    %v2144 = vpop.f32.mrf.mxu0
    %v2145 = vadd.f32 %v1948, %v2144
    %v2146 = vpop.f32.mrf.mxu0
    %2147 = vmatprep.mubr.f32.mxu0 0.0
    %v2148 = vand.u32 %v1342, 4294901760
    %v2149 = vsub.f32 %v1342, %v2148
    %v2150 = vand.u32 %v2149, 4294901760
    %2151 = vmatmul.mubr.f32.gmra.mxu0 %v2150
    %v2152 = vpop.f32.mrf.mxu0
    %v2153 = vadd.f32 %v1955, %v2152
    %v2154 = vpop.f32.mrf.mxu0
    %2155 = vmatprep.mubr.f32.mxu0 0.0
    %v2156 = vand.u32 %v1345, 4294901760
    %v2157 = vsub.f32 %v1345, %v2156
    %v2158 = vand.u32 %v2157, 4294901760
    %2159 = vmatmul.mubr.f32.gmra.mxu0 %v2158
    %v2160 = vpop.f32.mrf.mxu0
    %v2161 = vadd.f32 %v1962, %v2160
    %v2162 = vpop.f32.mrf.mxu0
    %2163 = vmatprep.mubr.f32.mxu0 0.0
    %v2164 = vand.u32 %v1348, 4294901760
    %v2165 = vsub.f32 %v1348, %v2164
    %v2166 = vand.u32 %v2165, 4294901760
    %2167 = vmatmul.mubr.f32.gmra.mxu0 %v2166
    %v2168 = vpop.f32.mrf.mxu0
    %v2169 = vadd.f32 %v1969, %v2168
    %v2170 = vpop.f32.mrf.mxu0
    %2171 = vdwg.mxu0
    %2172 = vmatprep.subr.mxu0 0.0
    %2173 = vmatpush1.msra.mxu0 0.0
    %2174 = vmatprep.subr.mxu0 0.0
    %2175 = vmatpush1.msra.mxu0 0.0
    %2176 = vmatprep.subr.mxu0 0.0
    %2177 = vmatpush1.msra.mxu0 0.0
    %2178 = vmatprep.subr.mxu0 0.0
    %2179 = vmatpush1.msra.mxu0 0.0
    %2180 = vmatprep.subr.mxu0 0.0
    %2181 = vmatpush1.msra.mxu0 0.0
    %2182 = vmatprep.subr.mxu0 0.0
    %2183 = vmatpush1.msra.mxu0 0.0
    %2184 = vmatprep.subr.mxu0 0.0
    %2185 = vmatpush1.msra.mxu0 0.0
    %2186 = vmatprep.subr.mxu0 0.0
    %2187 = vmatpush1.msra.mxu0 0.0
    %2188 = vmatprep.subr.mxu0 0.0
    %2189 = vmatpush1.msra.mxu0 0.0
    %2190 = vmatprep.subr.mxu0 0.0
    %v2191 = vand.u32 %v1351, 4294901760
    %v2192 = vsub.f32 %v1351, %v2191
    %v2193 = vand.u32 %v2192, 4294901760
    %2194 = vmatpush1.msra.mxu0 %v2193
    %2195 = vmatprep.subr.mxu0 0.0
    %v2196 = vand.u32 %v1300, 4294901760
    %v2197 = vsub.f32 %v1300, %v2196
    %v2198 = vand.u32 %v2197, 4294901760
    %2199 = vmatpush1.msra.mxu0 %v2198
    %2200 = vmatprep.subr.mxu0 0.0
    %v2201 = vand.u32 %v1299, 4294901760
    %v2202 = vsub.f32 %v1299, %v2201
    %v2203 = vand.u32 %v2202, 4294901760
    %2204 = vmatpush1.msra.mxu0 %v2203
    %2205 = vmatprep.subr.mxu0 0.0
    %v2206 = vand.u32 %v1298, 4294901760
    %v2207 = vsub.f32 %v1298, %v2206
    %v2208 = vand.u32 %v2207, 4294901760
    %2209 = vmatpush1.msra.mxu0 %v2208
    %2210 = vmatprep.subr.mxu0 0.0
    %v2211 = vand.u32 %v1297, 4294901760
    %v2212 = vsub.f32 %v1297, %v2211
    %v2213 = vand.u32 %v2212, 4294901760
    %2214 = vmatpush1.msra.mxu0 %v2213
    %2215 = vmatprep.subr.mxu0 0.0
    %v2216 = vand.u32 %v1296, 4294901760
    %v2217 = vsub.f32 %v1296, %v2216
    %v2218 = vand.u32 %v2217, 4294901760
    %2219 = vmatpush1.msra.mxu0 %v2218
    %2220 = vmatprep.subr.mxu0 0.0
    %v2221 = vand.u32 %v1295, 4294901760
    %v2222 = vsub.f32 %v1295, %v2221
    %v2223 = vand.u32 %v2222, 4294901760
    %2224 = vmatpush1.msra.mxu0 %v2223
    %2225 = vmatprep.subr.mxu0 0.0
    %2226 = vmatpush2.msra.mxu0 0.0
    %2227 = vmatprep.subr.mxu0 0.0
    %2228 = vmatpush2.msra.mxu0 0.0
    %2229 = vmatprep.subr.mxu0 0.0
    %2230 = vmatpush2.msra.mxu0 0.0
    %2231 = vmatprep.subr.mxu0 0.0
    %2232 = vmatpush2.msra.mxu0 0.0
    %2233 = vmatprep.subr.mxu0 0.0
    %2234 = vmatpush2.msra.mxu0 0.0
    %2235 = vmatprep.subr.mxu0 0.0
    %2236 = vmatpush2.msra.mxu0 0.0
    %2237 = vmatprep.subr.mxu0 0.0
    %2238 = vmatpush2.msra.mxu0 0.0
    %2239 = vmatprep.subr.mxu0 0.0
    %2240 = vmatpush2.msra.mxu0 0.0
    %2241 = vmatprep.subr.mxu0 0.0
    %2242 = vmatpush2.msra.mxu0 0.0
    %2243 = vmatprep.subr.mxu0 0.0
    %2244 = vmatpush2.msra.mxu0 0.0
    %2245 = vmatprep.subr.mxu0 0.0
    %2246 = vmatpush2.msra.mxu0 0.0
    %2247 = vmatprep.subr.mxu0 0.0
    %2248 = vmatpush2.msra.mxu0 0.0
    %2249 = vmatprep.subr.mxu0 0.0
    %2250 = vmatpush2.msra.mxu0 0.0
    %2251 = vmatprep.subr.mxu0 0.0
    %2252 = vmatpush2.msra.mxu0 0.0
    %2253 = vmatprep.subr.mxu0 0.0
    %2254 = vmatpush2.msra.mxu0 0.0
    %2255 = vmatprep.subr.mxu0 0.0
    %2256 = vmatpush2.msra.mxu0 0.0
    %2257 = vmatprep.mubr.f32.mxu0 0.0
    %v2258 = vand.u32 %v1303, 4294901760
    %2259 = vmatmul.mubr.f32.gmra.mxu0 %v2258
    %v2260 = vpop.f32.mrf.mxu0
    %v2261 = vadd.f32 %v2049, %v2260
    %v2262 = vpop.f32.mrf.mxu0
    %2263 = vmatprep.mubr.f32.mxu0 0.0
    %v2264 = vand.u32 %v1306, 4294901760
    %2265 = vmatmul.mubr.f32.gmra.mxu0 %v2264
    %v2266 = vpop.f32.mrf.mxu0
    %v2267 = vadd.f32 %v2057, %v2266
    %v2268 = vpop.f32.mrf.mxu0
    %2269 = vmatprep.mubr.f32.mxu0 0.0
    %v2270 = vand.u32 %v1309, 4294901760
    %2271 = vmatmul.mubr.f32.gmra.mxu0 %v2270
    %v2272 = vpop.f32.mrf.mxu0
    %v2273 = vadd.f32 %v2065, %v2272
    %v2274 = vpop.f32.mrf.mxu0
    %2275 = vmatprep.mubr.f32.mxu0 0.0
    %v2276 = vand.u32 %v1312, 4294901760
    %2277 = vmatmul.mubr.f32.gmra.mxu0 %v2276
    %v2278 = vpop.f32.mrf.mxu0
    %v2279 = vadd.f32 %v2073, %v2278
    %v2280 = vpop.f32.mrf.mxu0
    %2281 = vmatprep.mubr.f32.mxu0 0.0
    %v2282 = vand.u32 %v1315, 4294901760
    %2283 = vmatmul.mubr.f32.gmra.mxu0 %v2282
    %v2284 = vpop.f32.mrf.mxu0
    %v2285 = vadd.f32 %v2081, %v2284
    %v2286 = vpop.f32.mrf.mxu0
    %2287 = vmatprep.mubr.f32.mxu0 0.0
    %v2288 = vand.u32 %v1318, 4294901760
    %2289 = vmatmul.mubr.f32.gmra.mxu0 %v2288
    %v2290 = vpop.f32.mrf.mxu0
    %v2291 = vadd.f32 %v2089, %v2290
    %v2292 = vpop.f32.mrf.mxu0
    %2293 = vmatprep.mubr.f32.mxu0 0.0
    %v2294 = vand.u32 %v1321, 4294901760
    %2295 = vmatmul.mubr.f32.gmra.mxu0 %v2294
    %v2296 = vpop.f32.mrf.mxu0
    %v2297 = vadd.f32 %v2097, %v2296
    %v2298 = vpop.f32.mrf.mxu0
    %2299 = vmatprep.mubr.f32.mxu0 0.0
    %v2300 = vand.u32 %v1324, 4294901760
    %2301 = vmatmul.mubr.f32.gmra.mxu0 %v2300
    %v2302 = vpop.f32.mrf.mxu0
    %v2303 = vadd.f32 %v2105, %v2302
    %v2304 = vpop.f32.mrf.mxu0
    %2305 = vmatprep.mubr.f32.mxu0 0.0
    %v2306 = vand.u32 %v1327, 4294901760
    %2307 = vmatmul.mubr.f32.gmra.mxu0 %v2306
    %v2308 = vpop.f32.mrf.mxu0
    %v2309 = vadd.f32 %v2113, %v2308
    %v2310 = vpop.f32.mrf.mxu0
    %2311 = vmatprep.mubr.f32.mxu0 0.0
    %v2312 = vand.u32 %v1330, 4294901760
    %2313 = vmatmul.mubr.f32.gmra.mxu0 %v2312
    %v2314 = vpop.f32.mrf.mxu0
    %v2315 = vadd.f32 %v2121, %v2314
    %v2316 = vpop.f32.mrf.mxu0
    %2317 = vmatprep.mubr.f32.mxu0 0.0
    %v2318 = vand.u32 %v1333, 4294901760
    %2319 = vmatmul.mubr.f32.gmra.mxu0 %v2318
    %v2320 = vpop.f32.mrf.mxu0
    %v2321 = vadd.f32 %v2129, %v2320
    %v2322 = vpop.f32.mrf.mxu0
    %2323 = vmatprep.mubr.f32.mxu0 0.0
    %v2324 = vand.u32 %v1336, 4294901760
    %2325 = vmatmul.mubr.f32.gmra.mxu0 %v2324
    %v2326 = vpop.f32.mrf.mxu0
    %v2327 = vadd.f32 %v2137, %v2326
    %v2328 = vpop.f32.mrf.mxu0
    %2329 = vmatprep.mubr.f32.mxu0 0.0
    %v2330 = vand.u32 %v1339, 4294901760
    %2331 = vmatmul.mubr.f32.gmra.mxu0 %v2330
    %v2332 = vpop.f32.mrf.mxu0
    %v2333 = vadd.f32 %v2145, %v2332
    %v2334 = vpop.f32.mrf.mxu0
    %2335 = vmatprep.mubr.f32.mxu0 0.0
    %v2336 = vand.u32 %v1342, 4294901760
    %2337 = vmatmul.mubr.f32.gmra.mxu0 %v2336
    %v2338 = vpop.f32.mrf.mxu0
    %v2339 = vadd.f32 %v2153, %v2338
    %v2340 = vpop.f32.mrf.mxu0
    %2341 = vmatprep.mubr.f32.mxu0 0.0
    %v2342 = vand.u32 %v1345, 4294901760
    %2343 = vmatmul.mubr.f32.gmra.mxu0 %v2342
    %v2344 = vpop.f32.mrf.mxu0
    %v2345 = vadd.f32 %v2161, %v2344
    %v2346 = vpop.f32.mrf.mxu0
    %2347 = vmatprep.mubr.f32.mxu0 0.0
    %v2348 = vand.u32 %v1348, 4294901760
    %2349 = vmatmul.mubr.f32.gmra.mxu0 %v2348
    %v2350 = vpop.f32.mrf.mxu0
    %v2351 = vadd.f32 %v2169, %v2350
    %v2352 = vpop.f32.mrf.mxu0
    %2353 = vdwg.mxu0
    %2354 = vmatprep.subr.mxu0 0.0
    %2355 = vmatpush1.msra.mxu0 0.0
    %2356 = vmatprep.subr.mxu0 0.0
    %2357 = vmatpush1.msra.mxu0 0.0
    %2358 = vmatprep.subr.mxu0 0.0
    %2359 = vmatpush1.msra.mxu0 0.0
    %2360 = vmatprep.subr.mxu0 0.0
    %2361 = vmatpush1.msra.mxu0 0.0
    %2362 = vmatprep.subr.mxu0 0.0
    %2363 = vmatpush1.msra.mxu0 0.0
    %2364 = vmatprep.subr.mxu0 0.0
    %2365 = vmatpush1.msra.mxu0 0.0
    %2366 = vmatprep.subr.mxu0 0.0
    %2367 = vmatpush1.msra.mxu0 0.0
    %2368 = vmatprep.subr.mxu0 0.0
    %2369 = vmatpush1.msra.mxu0 0.0
    %2370 = vmatprep.subr.mxu0 0.0
    %2371 = vmatpush1.msra.mxu0 0.0
    %2372 = vmatprep.subr.mxu0 0.0
    %v2373 = vand.u32 %v1351, 4294901760
    %2374 = vmatpush1.msra.mxu0 %v2373
    %2375 = vmatprep.subr.mxu0 0.0
    %v2376 = vand.u32 %v1300, 4294901760
    %2377 = vmatpush1.msra.mxu0 %v2376
    %2378 = vmatprep.subr.mxu0 0.0
    %v2379 = vand.u32 %v1299, 4294901760
    %2380 = vmatpush1.msra.mxu0 %v2379
    %2381 = vmatprep.subr.mxu0 0.0
    %v2382 = vand.u32 %v1298, 4294901760
    %2383 = vmatpush1.msra.mxu0 %v2382
    %2384 = vmatprep.subr.mxu0 0.0
    %v2385 = vand.u32 %v1297, 4294901760
    %2386 = vmatpush1.msra.mxu0 %v2385
    %2387 = vmatprep.subr.mxu0 0.0
    %v2388 = vand.u32 %v1296, 4294901760
    %2389 = vmatpush1.msra.mxu0 %v2388
    %2390 = vmatprep.subr.mxu0 0.0
    %v2391 = vand.u32 %v1295, 4294901760
    %2392 = vmatpush1.msra.mxu0 %v2391
    %2393 = vmatprep.subr.mxu0 0.0
    %2394 = vmatpush2.msra.mxu0 0.0
    %2395 = vmatprep.subr.mxu0 0.0
    %2396 = vmatpush2.msra.mxu0 0.0
    %2397 = vmatprep.subr.mxu0 0.0
    %2398 = vmatpush2.msra.mxu0 0.0
    %2399 = vmatprep.subr.mxu0 0.0
    %2400 = vmatpush2.msra.mxu0 0.0
    %2401 = vmatprep.subr.mxu0 0.0
    %2402 = vmatpush2.msra.mxu0 0.0
    %2403 = vmatprep.subr.mxu0 0.0
    %2404 = vmatpush2.msra.mxu0 0.0
    %2405 = vmatprep.subr.mxu0 0.0
    %2406 = vmatpush2.msra.mxu0 0.0
    %2407 = vmatprep.subr.mxu0 0.0
    %2408 = vmatpush2.msra.mxu0 0.0
    %2409 = vmatprep.subr.mxu0 0.0
    %2410 = vmatpush2.msra.mxu0 0.0
    %2411 = vmatprep.subr.mxu0 0.0
    %2412 = vmatpush2.msra.mxu0 0.0
    %2413 = vmatprep.subr.mxu0 0.0
    %2414 = vmatpush2.msra.mxu0 0.0
    %2415 = vmatprep.subr.mxu0 0.0
    %2416 = vmatpush2.msra.mxu0 0.0
    %2417 = vmatprep.subr.mxu0 0.0
    %2418 = vmatpush2.msra.mxu0 0.0
    %2419 = vmatprep.subr.mxu0 0.0
    %2420 = vmatpush2.msra.mxu0 0.0
    %2421 = vmatprep.subr.mxu0 0.0
    %2422 = vmatpush2.msra.mxu0 0.0
    %2423 = vmatprep.subr.mxu0 0.0
    %2424 = vmatpush2.msra.mxu0 0.0
    %2425 = vmatprep.mubr.f32.mxu0 0.0
    %v2426 = vand.u32 %v1303, 4294901760
    %2427 = vmatmul.mubr.f32.gmra.mxu0 %v2426
    %v2428 = vpop.f32.mrf.mxu0
    %v2429 = vadd.f32 %v2261, %v2428
    %v2430 = vpop.f32.mrf.mxu0
    %2431 = vmatprep.mubr.f32.mxu0 0.0
    %v2432 = vand.u32 %v1306, 4294901760
    %2433 = vmatmul.mubr.f32.gmra.mxu0 %v2432
    %v2434 = vpop.f32.mrf.mxu0
    %v2435 = vadd.f32 %v2267, %v2434
    %v2436 = vpop.f32.mrf.mxu0
    %2437 = vmatprep.mubr.f32.mxu0 0.0
    %v2438 = vand.u32 %v1309, 4294901760
    %2439 = vmatmul.mubr.f32.gmra.mxu0 %v2438
    %v2440 = vpop.f32.mrf.mxu0
    %v2441 = vadd.f32 %v2273, %v2440
    %v2442 = vpop.f32.mrf.mxu0
    %2443 = vmatprep.mubr.f32.mxu0 0.0
    %v2444 = vand.u32 %v1312, 4294901760
    %2445 = vmatmul.mubr.f32.gmra.mxu0 %v2444
    %v2446 = vpop.f32.mrf.mxu0
    %v2447 = vadd.f32 %v2279, %v2446
    %v2448 = vpop.f32.mrf.mxu0
    %2449 = vmatprep.mubr.f32.mxu0 0.0
    %v2450 = vand.u32 %v1315, 4294901760
    %2451 = vmatmul.mubr.f32.gmra.mxu0 %v2450
    %v2452 = vpop.f32.mrf.mxu0
    %v2453 = vadd.f32 %v2285, %v2452
    %v2454 = vpop.f32.mrf.mxu0
    %2455 = vmatprep.mubr.f32.mxu0 0.0
    %v2456 = vand.u32 %v1318, 4294901760
    %2457 = vmatmul.mubr.f32.gmra.mxu0 %v2456
    %v2458 = vpop.f32.mrf.mxu0
    %v2459 = vadd.f32 %v2291, %v2458
    %v2460 = vpop.f32.mrf.mxu0
    %2461 = vmatprep.mubr.f32.mxu0 0.0
    %v2462 = vand.u32 %v1321, 4294901760
    %2463 = vmatmul.mubr.f32.gmra.mxu0 %v2462
    %v2464 = vpop.f32.mrf.mxu0
    %v2465 = vadd.f32 %v2297, %v2464
    %v2466 = vpop.f32.mrf.mxu0
    %2467 = vmatprep.mubr.f32.mxu0 0.0
    %v2468 = vand.u32 %v1324, 4294901760
    %2469 = vmatmul.mubr.f32.gmra.mxu0 %v2468
    %v2470 = vpop.f32.mrf.mxu0
    %v2471 = vadd.f32 %v2303, %v2470
    %v2472 = vpop.f32.mrf.mxu0
    %2473 = vmatprep.mubr.f32.mxu0 0.0
    %v2474 = vand.u32 %v1327, 4294901760
    %2475 = vmatmul.mubr.f32.gmra.mxu0 %v2474
    %v2476 = vpop.f32.mrf.mxu0
    %v2477 = vadd.f32 %v2309, %v2476
    %v2478 = vpop.f32.mrf.mxu0
    %2479 = vmatprep.mubr.f32.mxu0 0.0
    %v2480 = vand.u32 %v1330, 4294901760
    %2481 = vmatmul.mubr.f32.gmra.mxu0 %v2480
    %v2482 = vpop.f32.mrf.mxu0
    %v2483 = vadd.f32 %v2315, %v2482
    %v2484 = vpop.f32.mrf.mxu0
    %2485 = vmatprep.mubr.f32.mxu0 0.0
    %v2486 = vand.u32 %v1333, 4294901760
    %2487 = vmatmul.mubr.f32.gmra.mxu0 %v2486
    %v2488 = vpop.f32.mrf.mxu0
    %v2489 = vadd.f32 %v2321, %v2488
    %v2490 = vpop.f32.mrf.mxu0
    %2491 = vmatprep.mubr.f32.mxu0 0.0
    %v2492 = vand.u32 %v1336, 4294901760
    %2493 = vmatmul.mubr.f32.gmra.mxu0 %v2492
    %v2494 = vpop.f32.mrf.mxu0
    %v2495 = vadd.f32 %v2327, %v2494
    %v2496 = vpop.f32.mrf.mxu0
    %2497 = vmatprep.mubr.f32.mxu0 0.0
    %v2498 = vand.u32 %v1339, 4294901760
    %2499 = vmatmul.mubr.f32.gmra.mxu0 %v2498
    %v2500 = vpop.f32.mrf.mxu0
    %v2501 = vadd.f32 %v2333, %v2500
    %v2502 = vpop.f32.mrf.mxu0
    %2503 = vmatprep.mubr.f32.mxu0 0.0
    %v2504 = vand.u32 %v1342, 4294901760
    %2505 = vmatmul.mubr.f32.gmra.mxu0 %v2504
    %v2506 = vpop.f32.mrf.mxu0
    %v2507 = vadd.f32 %v2339, %v2506
    %v2508 = vpop.f32.mrf.mxu0
    %2509 = vmatprep.mubr.f32.mxu0 0.0
    %v2510 = vand.u32 %v1345, 4294901760
    %2511 = vmatmul.mubr.f32.gmra.mxu0 %v2510
    %v2512 = vpop.f32.mrf.mxu0
    %v2513 = vadd.f32 %v2345, %v2512
    %v2514 = vpop.f32.mrf.mxu0
    %2515 = vmatprep.mubr.f32.mxu0 0.0
    %v2516 = vand.u32 %v1348, 4294901760
    %2517 = vmatmul.mubr.f32.gmra.mxu0 %v2516
    %v2518 = vpop.f32.mrf.mxu0
    %v2519 = vadd.f32 %v2351, %v2518
    %v2520 = vpop.f32.mrf.mxu0
    %2521 = vdwg.mxu0
    %v2522 = vld [vmem:[%s4] sm:$0xff]
    %v2523 = vld [vmem:[%s4 + $0x8] sm:$0xff]
    %v2524 = vld [vmem:[%s4 + $0x10] sm:$0xff]
    %v2525 = vld [vmem:[%s4 + $0x18] sm:$0xff]
    %v2526 = vld [vmem:[%s4 + $0x20] sm:$0xff]
    %v2527 = vld [vmem:[%s4 + $0x28] sm:$0xff]
    %v2528 = vld [vmem:[%s4 + $0x30] sm:$0x3]
    %v2530 = vsel %vm122, %v2528, 0
    %2532 = vmatprep.subr.mxu0 0.0
    %2533 = vmatpush1.msra.mxu0 0.0
    %2534 = vmatprep.subr.mxu0 0.0
    %2535 = vmatpush1.msra.mxu0 0.0
    %2536 = vmatprep.subr.mxu0 0.0
    %2537 = vmatpush1.msra.mxu0 0.0
    %2538 = vmatprep.subr.mxu0 0.0
    %2539 = vmatpush1.msra.mxu0 0.0
    %2540 = vmatprep.subr.mxu0 0.0
    %2541 = vmatpush1.msra.mxu0 0.0
    %2542 = vmatprep.subr.mxu0 0.0
    %2543 = vmatpush1.msra.mxu0 0.0
    %2544 = vmatprep.subr.mxu0 0.0
    %2545 = vmatpush1.msra.mxu0 0.0
    %2546 = vmatprep.subr.mxu0 0.0
    %2547 = vmatpush1.msra.mxu0 0.0
    %2548 = vmatprep.subr.mxu0 0.0
    %2549 = vmatpush1.msra.mxu0 0.0
    %2550 = vmatprep.subr.mxu0 0.0
    %v2551 = vand.u32 %v2530, 4294901760
    %2552 = vmatpush1.msra.mxu0 %v2551
    %2553 = vmatprep.subr.mxu0 0.0
    %v2554 = vand.u32 %v2527, 4294901760
    %2555 = vmatpush1.msra.mxu0 %v2554
    %2556 = vmatprep.subr.mxu0 0.0
    %v2557 = vand.u32 %v2526, 4294901760
    %2558 = vmatpush1.msra.mxu0 %v2557
    %2559 = vmatprep.subr.mxu0 0.0
    %v2560 = vand.u32 %v2525, 4294901760
    %2561 = vmatpush1.msra.mxu0 %v2560
    %2562 = vmatprep.subr.mxu0 0.0
    %v2563 = vand.u32 %v2524, 4294901760
    %2564 = vmatpush1.msra.mxu0 %v2563
    %2565 = vmatprep.subr.mxu0 0.0
    %v2566 = vand.u32 %v2523, 4294901760
    %2567 = vmatpush1.msra.mxu0 %v2566
    %2568 = vmatprep.subr.mxu0 0.0
    %v2569 = vand.u32 %v2522, 4294901760
    %2570 = vmatpush1.msra.mxu0 %v2569
    %2571 = vmatprep.subr.mxu0 0.0
    %2572 = vmatpush2.msra.mxu0 0.0
    %2573 = vmatprep.subr.mxu0 0.0
    %2574 = vmatpush2.msra.mxu0 0.0
    %2575 = vmatprep.subr.mxu0 0.0
    %2576 = vmatpush2.msra.mxu0 0.0
    %2577 = vmatprep.subr.mxu0 0.0
    %2578 = vmatpush2.msra.mxu0 0.0
    %2579 = vmatprep.subr.mxu0 0.0
    %2580 = vmatpush2.msra.mxu0 0.0
    %2581 = vmatprep.subr.mxu0 0.0
    %2582 = vmatpush2.msra.mxu0 0.0
    %2583 = vmatprep.subr.mxu0 0.0
    %2584 = vmatpush2.msra.mxu0 0.0
    %2585 = vmatprep.subr.mxu0 0.0
    %2586 = vmatpush2.msra.mxu0 0.0
    %2587 = vmatprep.subr.mxu0 0.0
    %2588 = vmatpush2.msra.mxu0 0.0
    %2589 = vmatprep.subr.mxu0 0.0
    %2590 = vmatpush2.msra.mxu0 0.0
    %2591 = vmatprep.subr.mxu0 0.0
    %2592 = vmatpush2.msra.mxu0 0.0
    %2593 = vmatprep.subr.mxu0 0.0
    %2594 = vmatpush2.msra.mxu0 0.0
    %2595 = vmatprep.subr.mxu0 0.0
    %2596 = vmatpush2.msra.mxu0 0.0
    %2597 = vmatprep.subr.mxu0 0.0
    %2598 = vmatpush2.msra.mxu0 0.0
    %2599 = vmatprep.subr.mxu0 0.0
    %2600 = vmatpush2.msra.mxu0 0.0
    %2601 = vmatprep.subr.mxu0 0.0
    %2602 = vmatpush2.msra.mxu0 0.0
    %2603 = vmatprep.mubr.f32.mxu0 0.0
    %v2604 = vand.u32 %v1303, 4294901760
    %v2605 = vsub.f32 %v1303, %v2604
    %v2606 = vand.u32 %v2605, 4294901760
    %v2607 = vsub.f32 %v2605, %v2606
    %v2608 = vand.u32 %v2607, 4294901760
    %2609 = vmatmul.mubr.f32.gmra.mxu0 %v2608
    %v2610 = vpop.f32.mrf.mxu0
    %v2611 = vadd.f32 0.0, %v2610
    %v2612 = vpop.f32.mrf.mxu0
    %2613 = vmatprep.mubr.f32.mxu0 0.0
    %v2614 = vand.u32 %v1306, 4294901760
    %v2615 = vsub.f32 %v1306, %v2614
    %v2616 = vand.u32 %v2615, 4294901760
    %v2617 = vsub.f32 %v2615, %v2616
    %v2618 = vand.u32 %v2617, 4294901760
    %2619 = vmatmul.mubr.f32.gmra.mxu0 %v2618
    %v2620 = vpop.f32.mrf.mxu0
    %v2621 = vadd.f32 0.0, %v2620
    %v2622 = vpop.f32.mrf.mxu0
    %2623 = vmatprep.mubr.f32.mxu0 0.0
    %v2624 = vand.u32 %v1309, 4294901760
    %v2625 = vsub.f32 %v1309, %v2624
    %v2626 = vand.u32 %v2625, 4294901760
    %v2627 = vsub.f32 %v2625, %v2626
    %v2628 = vand.u32 %v2627, 4294901760
    %2629 = vmatmul.mubr.f32.gmra.mxu0 %v2628
    %v2630 = vpop.f32.mrf.mxu0
    %v2631 = vadd.f32 0.0, %v2630
    %v2632 = vpop.f32.mrf.mxu0
    %2633 = vmatprep.mubr.f32.mxu0 0.0
    %v2634 = vand.u32 %v1312, 4294901760
    %v2635 = vsub.f32 %v1312, %v2634
    %v2636 = vand.u32 %v2635, 4294901760
    %v2637 = vsub.f32 %v2635, %v2636
    %v2638 = vand.u32 %v2637, 4294901760
    %2639 = vmatmul.mubr.f32.gmra.mxu0 %v2638
    %v2640 = vpop.f32.mrf.mxu0
    %v2641 = vadd.f32 0.0, %v2640
    %v2642 = vpop.f32.mrf.mxu0
    %2643 = vmatprep.mubr.f32.mxu0 0.0
    %v2644 = vand.u32 %v1315, 4294901760
    %v2645 = vsub.f32 %v1315, %v2644
    %v2646 = vand.u32 %v2645, 4294901760
    %v2647 = vsub.f32 %v2645, %v2646
    %v2648 = vand.u32 %v2647, 4294901760
    %2649 = vmatmul.mubr.f32.gmra.mxu0 %v2648
    %v2650 = vpop.f32.mrf.mxu0
    %v2651 = vadd.f32 0.0, %v2650
    %v2652 = vpop.f32.mrf.mxu0
    %2653 = vmatprep.mubr.f32.mxu0 0.0
    %v2654 = vand.u32 %v1318, 4294901760
    %v2655 = vsub.f32 %v1318, %v2654
    %v2656 = vand.u32 %v2655, 4294901760
    %v2657 = vsub.f32 %v2655, %v2656
    %v2658 = vand.u32 %v2657, 4294901760
    %2659 = vmatmul.mubr.f32.gmra.mxu0 %v2658
    %v2660 = vpop.f32.mrf.mxu0
    %v2661 = vadd.f32 0.0, %v2660
    %v2662 = vpop.f32.mrf.mxu0
    %2663 = vmatprep.mubr.f32.mxu0 0.0
    %v2664 = vand.u32 %v1321, 4294901760
    %v2665 = vsub.f32 %v1321, %v2664
    %v2666 = vand.u32 %v2665, 4294901760
    %v2667 = vsub.f32 %v2665, %v2666
    %v2668 = vand.u32 %v2667, 4294901760
    %2669 = vmatmul.mubr.f32.gmra.mxu0 %v2668
    %v2670 = vpop.f32.mrf.mxu0
    %v2671 = vadd.f32 0.0, %v2670
    %v2672 = vpop.f32.mrf.mxu0
    %2673 = vmatprep.mubr.f32.mxu0 0.0
    %v2674 = vand.u32 %v1324, 4294901760
    %v2675 = vsub.f32 %v1324, %v2674
    %v2676 = vand.u32 %v2675, 4294901760
    %v2677 = vsub.f32 %v2675, %v2676
    %v2678 = vand.u32 %v2677, 4294901760
    %2679 = vmatmul.mubr.f32.gmra.mxu0 %v2678
    %v2680 = vpop.f32.mrf.mxu0
    %v2681 = vadd.f32 0.0, %v2680
    %v2682 = vpop.f32.mrf.mxu0
    %2683 = vmatprep.mubr.f32.mxu0 0.0
    %v2684 = vand.u32 %v1327, 4294901760
    %v2685 = vsub.f32 %v1327, %v2684
    %v2686 = vand.u32 %v2685, 4294901760
    %v2687 = vsub.f32 %v2685, %v2686
    %v2688 = vand.u32 %v2687, 4294901760
    %2689 = vmatmul.mubr.f32.gmra.mxu0 %v2688
    %v2690 = vpop.f32.mrf.mxu0
    %v2691 = vadd.f32 0.0, %v2690
    %v2692 = vpop.f32.mrf.mxu0
    %2693 = vmatprep.mubr.f32.mxu0 0.0
    %v2694 = vand.u32 %v1330, 4294901760
    %v2695 = vsub.f32 %v1330, %v2694
    %v2696 = vand.u32 %v2695, 4294901760
    %v2697 = vsub.f32 %v2695, %v2696
    %v2698 = vand.u32 %v2697, 4294901760
    %2699 = vmatmul.mubr.f32.gmra.mxu0 %v2698
    %v2700 = vpop.f32.mrf.mxu0
    %v2701 = vadd.f32 0.0, %v2700
    %v2702 = vpop.f32.mrf.mxu0
    %2703 = vmatprep.mubr.f32.mxu0 0.0
    %v2704 = vand.u32 %v1333, 4294901760
    %v2705 = vsub.f32 %v1333, %v2704
    %v2706 = vand.u32 %v2705, 4294901760
    %v2707 = vsub.f32 %v2705, %v2706
    %v2708 = vand.u32 %v2707, 4294901760
    %2709 = vmatmul.mubr.f32.gmra.mxu0 %v2708
    %v2710 = vpop.f32.mrf.mxu0
    %v2711 = vadd.f32 0.0, %v2710
    %v2712 = vpop.f32.mrf.mxu0
    %2713 = vmatprep.mubr.f32.mxu0 0.0
    %v2714 = vand.u32 %v1336, 4294901760
    %v2715 = vsub.f32 %v1336, %v2714
    %v2716 = vand.u32 %v2715, 4294901760
    %v2717 = vsub.f32 %v2715, %v2716
    %v2718 = vand.u32 %v2717, 4294901760
    %2719 = vmatmul.mubr.f32.gmra.mxu0 %v2718
    %v2720 = vpop.f32.mrf.mxu0
    %v2721 = vadd.f32 0.0, %v2720
    %v2722 = vpop.f32.mrf.mxu0
    %2723 = vmatprep.mubr.f32.mxu0 0.0
    %v2724 = vand.u32 %v1339, 4294901760
    %v2725 = vsub.f32 %v1339, %v2724
    %v2726 = vand.u32 %v2725, 4294901760
    %v2727 = vsub.f32 %v2725, %v2726
    %v2728 = vand.u32 %v2727, 4294901760
    %2729 = vmatmul.mubr.f32.gmra.mxu0 %v2728
    %v2730 = vpop.f32.mrf.mxu0
    %v2731 = vadd.f32 0.0, %v2730
    %v2732 = vpop.f32.mrf.mxu0
    %2733 = vmatprep.mubr.f32.mxu0 0.0
    %v2734 = vand.u32 %v1342, 4294901760
    %v2735 = vsub.f32 %v1342, %v2734
    %v2736 = vand.u32 %v2735, 4294901760
    %v2737 = vsub.f32 %v2735, %v2736
    %v2738 = vand.u32 %v2737, 4294901760
    %2739 = vmatmul.mubr.f32.gmra.mxu0 %v2738
    %v2740 = vpop.f32.mrf.mxu0
    %v2741 = vadd.f32 0.0, %v2740
    %v2742 = vpop.f32.mrf.mxu0
    %2743 = vmatprep.mubr.f32.mxu0 0.0
    %v2744 = vand.u32 %v1345, 4294901760
    %v2745 = vsub.f32 %v1345, %v2744
    %v2746 = vand.u32 %v2745, 4294901760
    %v2747 = vsub.f32 %v2745, %v2746
    %v2748 = vand.u32 %v2747, 4294901760
    %2749 = vmatmul.mubr.f32.gmra.mxu0 %v2748
    %v2750 = vpop.f32.mrf.mxu0
    %v2751 = vadd.f32 0.0, %v2750
    %v2752 = vpop.f32.mrf.mxu0
    %2753 = vmatprep.mubr.f32.mxu0 0.0
    %v2754 = vand.u32 %v1348, 4294901760
    %v2755 = vsub.f32 %v1348, %v2754
    %v2756 = vand.u32 %v2755, 4294901760
    %v2757 = vsub.f32 %v2755, %v2756
    %v2758 = vand.u32 %v2757, 4294901760
    %2759 = vmatmul.mubr.f32.gmra.mxu0 %v2758
    %v2760 = vpop.f32.mrf.mxu0
    %v2761 = vadd.f32 0.0, %v2760
    %v2762 = vpop.f32.mrf.mxu0
    %2763 = vdwg.mxu0
    %2764 = vmatprep.subr.mxu0 0.0
    %2765 = vmatpush1.msra.mxu0 0.0
    %2766 = vmatprep.subr.mxu0 0.0
    %2767 = vmatpush1.msra.mxu0 0.0
    %2768 = vmatprep.subr.mxu0 0.0
    %2769 = vmatpush1.msra.mxu0 0.0
    %2770 = vmatprep.subr.mxu0 0.0
    %2771 = vmatpush1.msra.mxu0 0.0
    %2772 = vmatprep.subr.mxu0 0.0
    %2773 = vmatpush1.msra.mxu0 0.0
    %2774 = vmatprep.subr.mxu0 0.0
    %2775 = vmatpush1.msra.mxu0 0.0
    %2776 = vmatprep.subr.mxu0 0.0
    %2777 = vmatpush1.msra.mxu0 0.0
    %2778 = vmatprep.subr.mxu0 0.0
    %2779 = vmatpush1.msra.mxu0 0.0
    %2780 = vmatprep.subr.mxu0 0.0
    %2781 = vmatpush1.msra.mxu0 0.0
    %2782 = vmatprep.subr.mxu0 0.0
    %v2783 = vand.u32 %v2530, 4294901760
    %v2784 = vsub.f32 %v2530, %v2783
    %v2785 = vand.u32 %v2784, 4294901760
    %v2786 = vsub.f32 %v2784, %v2785
    %v2787 = vand.u32 %v2786, 4294901760
    %2788 = vmatpush1.msra.mxu0 %v2787
    %2789 = vmatprep.subr.mxu0 0.0
    %v2790 = vand.u32 %v2527, 4294901760
    %v2791 = vsub.f32 %v2527, %v2790
    %v2792 = vand.u32 %v2791, 4294901760
    %v2793 = vsub.f32 %v2791, %v2792
    %v2794 = vand.u32 %v2793, 4294901760
    %2795 = vmatpush1.msra.mxu0 %v2794
    %2796 = vmatprep.subr.mxu0 0.0
    %v2797 = vand.u32 %v2526, 4294901760
    %v2798 = vsub.f32 %v2526, %v2797
    %v2799 = vand.u32 %v2798, 4294901760
    %v2800 = vsub.f32 %v2798, %v2799
    %v2801 = vand.u32 %v2800, 4294901760
    %2802 = vmatpush1.msra.mxu0 %v2801
    %2803 = vmatprep.subr.mxu0 0.0
    %v2804 = vand.u32 %v2525, 4294901760
    %v2805 = vsub.f32 %v2525, %v2804
    %v2806 = vand.u32 %v2805, 4294901760
    %v2807 = vsub.f32 %v2805, %v2806
    %v2808 = vand.u32 %v2807, 4294901760
    %2809 = vmatpush1.msra.mxu0 %v2808
    %2810 = vmatprep.subr.mxu0 0.0
    %v2811 = vand.u32 %v2524, 4294901760
    %v2812 = vsub.f32 %v2524, %v2811
    %v2813 = vand.u32 %v2812, 4294901760
    %v2814 = vsub.f32 %v2812, %v2813
    %v2815 = vand.u32 %v2814, 4294901760
    %2816 = vmatpush1.msra.mxu0 %v2815
    %2817 = vmatprep.subr.mxu0 0.0
    %v2818 = vand.u32 %v2523, 4294901760
    %v2819 = vsub.f32 %v2523, %v2818
    %v2820 = vand.u32 %v2819, 4294901760
    %v2821 = vsub.f32 %v2819, %v2820
    %v2822 = vand.u32 %v2821, 4294901760
    %2823 = vmatpush1.msra.mxu0 %v2822
    %2824 = vmatprep.subr.mxu0 0.0
    %v2825 = vand.u32 %v2522, 4294901760
    %v2826 = vsub.f32 %v2522, %v2825
    %v2827 = vand.u32 %v2826, 4294901760
    %v2828 = vsub.f32 %v2826, %v2827
    %v2829 = vand.u32 %v2828, 4294901760
    %2830 = vmatpush1.msra.mxu0 %v2829
    %2831 = vmatprep.subr.mxu0 0.0
    %2832 = vmatpush2.msra.mxu0 0.0
    %2833 = vmatprep.subr.mxu0 0.0
    %2834 = vmatpush2.msra.mxu0 0.0
    %2835 = vmatprep.subr.mxu0 0.0
    %2836 = vmatpush2.msra.mxu0 0.0
    %2837 = vmatprep.subr.mxu0 0.0
    %2838 = vmatpush2.msra.mxu0 0.0
    %2839 = vmatprep.subr.mxu0 0.0
    %2840 = vmatpush2.msra.mxu0 0.0
    %2841 = vmatprep.subr.mxu0 0.0
    %2842 = vmatpush2.msra.mxu0 0.0
    %2843 = vmatprep.subr.mxu0 0.0
    %2844 = vmatpush2.msra.mxu0 0.0
    %2845 = vmatprep.subr.mxu0 0.0
    %2846 = vmatpush2.msra.mxu0 0.0
    %2847 = vmatprep.subr.mxu0 0.0
    %2848 = vmatpush2.msra.mxu0 0.0
    %2849 = vmatprep.subr.mxu0 0.0
    %2850 = vmatpush2.msra.mxu0 0.0
    %2851 = vmatprep.subr.mxu0 0.0
    %2852 = vmatpush2.msra.mxu0 0.0
    %2853 = vmatprep.subr.mxu0 0.0
    %2854 = vmatpush2.msra.mxu0 0.0
    %2855 = vmatprep.subr.mxu0 0.0
    %2856 = vmatpush2.msra.mxu0 0.0
    %2857 = vmatprep.subr.mxu0 0.0
    %2858 = vmatpush2.msra.mxu0 0.0
    %2859 = vmatprep.subr.mxu0 0.0
    %2860 = vmatpush2.msra.mxu0 0.0
    %2861 = vmatprep.subr.mxu0 0.0
    %2862 = vmatpush2.msra.mxu0 0.0
    %2863 = vmatprep.mubr.f32.mxu0 0.0
    %v2864 = vand.u32 %v1303, 4294901760
    %2865 = vmatmul.mubr.f32.gmra.mxu0 %v2864
    %v2866 = vpop.f32.mrf.mxu0
    %v2867 = vadd.f32 %v2611, %v2866
    %v2868 = vpop.f32.mrf.mxu0
    %2869 = vmatprep.mubr.f32.mxu0 0.0
    %v2870 = vand.u32 %v1306, 4294901760
    %2871 = vmatmul.mubr.f32.gmra.mxu0 %v2870
    %v2872 = vpop.f32.mrf.mxu0
    %v2873 = vadd.f32 %v2621, %v2872
    %v2874 = vpop.f32.mrf.mxu0
    %2875 = vmatprep.mubr.f32.mxu0 0.0
    %v2876 = vand.u32 %v1309, 4294901760
    %2877 = vmatmul.mubr.f32.gmra.mxu0 %v2876
    %v2878 = vpop.f32.mrf.mxu0
    %v2879 = vadd.f32 %v2631, %v2878
    %v2880 = vpop.f32.mrf.mxu0
    %2881 = vmatprep.mubr.f32.mxu0 0.0
    %v2882 = vand.u32 %v1312, 4294901760
    %2883 = vmatmul.mubr.f32.gmra.mxu0 %v2882
    %v2884 = vpop.f32.mrf.mxu0
    %v2885 = vadd.f32 %v2641, %v2884
    %v2886 = vpop.f32.mrf.mxu0
    %2887 = vmatprep.mubr.f32.mxu0 0.0
    %v2888 = vand.u32 %v1315, 4294901760
    %2889 = vmatmul.mubr.f32.gmra.mxu0 %v2888
    %v2890 = vpop.f32.mrf.mxu0
    %v2891 = vadd.f32 %v2651, %v2890
    %v2892 = vpop.f32.mrf.mxu0
    %2893 = vmatprep.mubr.f32.mxu0 0.0
    %v2894 = vand.u32 %v1318, 4294901760
    %2895 = vmatmul.mubr.f32.gmra.mxu0 %v2894
    %v2896 = vpop.f32.mrf.mxu0
    %v2897 = vadd.f32 %v2661, %v2896
    %v2898 = vpop.f32.mrf.mxu0
    %2899 = vmatprep.mubr.f32.mxu0 0.0
    %v2900 = vand.u32 %v1321, 4294901760
    %2901 = vmatmul.mubr.f32.gmra.mxu0 %v2900
    %v2902 = vpop.f32.mrf.mxu0
    %v2903 = vadd.f32 %v2671, %v2902
    %v2904 = vpop.f32.mrf.mxu0
    %2905 = vmatprep.mubr.f32.mxu0 0.0
    %v2906 = vand.u32 %v1324, 4294901760
    %2907 = vmatmul.mubr.f32.gmra.mxu0 %v2906
    %v2908 = vpop.f32.mrf.mxu0
    %v2909 = vadd.f32 %v2681, %v2908
    %v2910 = vpop.f32.mrf.mxu0
    %2911 = vmatprep.mubr.f32.mxu0 0.0
    %v2912 = vand.u32 %v1327, 4294901760
    %2913 = vmatmul.mubr.f32.gmra.mxu0 %v2912
    %v2914 = vpop.f32.mrf.mxu0
    %v2915 = vadd.f32 %v2691, %v2914
    %v2916 = vpop.f32.mrf.mxu0
    %2917 = vmatprep.mubr.f32.mxu0 0.0
    %v2918 = vand.u32 %v1330, 4294901760
    %2919 = vmatmul.mubr.f32.gmra.mxu0 %v2918
    %v2920 = vpop.f32.mrf.mxu0
    %v2921 = vadd.f32 %v2701, %v2920
    %v2922 = vpop.f32.mrf.mxu0
    %2923 = vmatprep.mubr.f32.mxu0 0.0
    %v2924 = vand.u32 %v1333, 4294901760
    %2925 = vmatmul.mubr.f32.gmra.mxu0 %v2924
    %v2926 = vpop.f32.mrf.mxu0
    %v2927 = vadd.f32 %v2711, %v2926
    %v2928 = vpop.f32.mrf.mxu0
    %2929 = vmatprep.mubr.f32.mxu0 0.0
    %v2930 = vand.u32 %v1336, 4294901760
    %2931 = vmatmul.mubr.f32.gmra.mxu0 %v2930
    %v2932 = vpop.f32.mrf.mxu0
    %v2933 = vadd.f32 %v2721, %v2932
    %v2934 = vpop.f32.mrf.mxu0
    %2935 = vmatprep.mubr.f32.mxu0 0.0
    %v2936 = vand.u32 %v1339, 4294901760
    %2937 = vmatmul.mubr.f32.gmra.mxu0 %v2936
    %v2938 = vpop.f32.mrf.mxu0
    %v2939 = vadd.f32 %v2731, %v2938
    %v2940 = vpop.f32.mrf.mxu0
    %2941 = vmatprep.mubr.f32.mxu0 0.0
    %v2942 = vand.u32 %v1342, 4294901760
    %2943 = vmatmul.mubr.f32.gmra.mxu0 %v2942
    %v2944 = vpop.f32.mrf.mxu0
    %v2945 = vadd.f32 %v2741, %v2944
    %v2946 = vpop.f32.mrf.mxu0
    %2947 = vmatprep.mubr.f32.mxu0 0.0
    %v2948 = vand.u32 %v1345, 4294901760
    %2949 = vmatmul.mubr.f32.gmra.mxu0 %v2948
    %v2950 = vpop.f32.mrf.mxu0
    %v2951 = vadd.f32 %v2751, %v2950
    %v2952 = vpop.f32.mrf.mxu0
    %2953 = vmatprep.mubr.f32.mxu0 0.0
    %v2954 = vand.u32 %v1348, 4294901760
    %2955 = vmatmul.mubr.f32.gmra.mxu0 %v2954
    %v2956 = vpop.f32.mrf.mxu0
    %v2957 = vadd.f32 %v2761, %v2956
    %v2958 = vpop.f32.mrf.mxu0
    %2959 = vdwg.mxu0
    %2960 = vmatprep.subr.mxu0 0.0
    %2961 = vmatpush1.msra.mxu0 0.0
    %2962 = vmatprep.subr.mxu0 0.0
    %2963 = vmatpush1.msra.mxu0 0.0
    %2964 = vmatprep.subr.mxu0 0.0
    %2965 = vmatpush1.msra.mxu0 0.0
    %2966 = vmatprep.subr.mxu0 0.0
    %2967 = vmatpush1.msra.mxu0 0.0
    %2968 = vmatprep.subr.mxu0 0.0
    %2969 = vmatpush1.msra.mxu0 0.0
    %2970 = vmatprep.subr.mxu0 0.0
    %2971 = vmatpush1.msra.mxu0 0.0
    %2972 = vmatprep.subr.mxu0 0.0
    %2973 = vmatpush1.msra.mxu0 0.0
    %2974 = vmatprep.subr.mxu0 0.0
    %2975 = vmatpush1.msra.mxu0 0.0
    %2976 = vmatprep.subr.mxu0 0.0
    %2977 = vmatpush1.msra.mxu0 0.0
    %2978 = vmatprep.subr.mxu0 0.0
    %v2979 = vand.u32 %v2530, 4294901760
    %v2980 = vsub.f32 %v2530, %v2979
    %2981 = vmatpush1.msra.mxu0 %v2980
    %2982 = vmatprep.subr.mxu0 0.0
    %v2983 = vand.u32 %v2527, 4294901760
    %v2984 = vsub.f32 %v2527, %v2983
    %2985 = vmatpush1.msra.mxu0 %v2984
    %2986 = vmatprep.subr.mxu0 0.0
    %v2987 = vand.u32 %v2526, 4294901760
    %v2988 = vsub.f32 %v2526, %v2987
    %2989 = vmatpush1.msra.mxu0 %v2988
    %2990 = vmatprep.subr.mxu0 0.0
    %v2991 = vand.u32 %v2525, 4294901760
    %v2992 = vsub.f32 %v2525, %v2991
    %2993 = vmatpush1.msra.mxu0 %v2992
    %2994 = vmatprep.subr.mxu0 0.0
    %v2995 = vand.u32 %v2524, 4294901760
    %v2996 = vsub.f32 %v2524, %v2995
    %2997 = vmatpush1.msra.mxu0 %v2996
    %2998 = vmatprep.subr.mxu0 0.0
    %v2999 = vand.u32 %v2523, 4294901760
    %v3000 = vsub.f32 %v2523, %v2999
    %3001 = vmatpush1.msra.mxu0 %v3000
    %3002 = vmatprep.subr.mxu0 0.0
    %v3003 = vand.u32 %v2522, 4294901760
    %v3004 = vsub.f32 %v2522, %v3003
    %3005 = vmatpush1.msra.mxu0 %v3004
    %3006 = vmatprep.subr.mxu0 0.0
    %3007 = vmatpush2.msra.mxu0 0.0
    %3008 = vmatprep.subr.mxu0 0.0
    %3009 = vmatpush2.msra.mxu0 0.0
    %3010 = vmatprep.subr.mxu0 0.0
    %3011 = vmatpush2.msra.mxu0 0.0
    %3012 = vmatprep.subr.mxu0 0.0
    %3013 = vmatpush2.msra.mxu0 0.0
    %3014 = vmatprep.subr.mxu0 0.0
    %3015 = vmatpush2.msra.mxu0 0.0
    %3016 = vmatprep.subr.mxu0 0.0
    %3017 = vmatpush2.msra.mxu0 0.0
    %3018 = vmatprep.subr.mxu0 0.0
    %3019 = vmatpush2.msra.mxu0 0.0
    %3020 = vmatprep.subr.mxu0 0.0
    %3021 = vmatpush2.msra.mxu0 0.0
    %3022 = vmatprep.subr.mxu0 0.0
    %3023 = vmatpush2.msra.mxu0 0.0
    %3024 = vmatprep.subr.mxu0 0.0
    %3025 = vmatpush2.msra.mxu0 0.0
    %3026 = vmatprep.subr.mxu0 0.0
    %3027 = vmatpush2.msra.mxu0 0.0
    %3028 = vmatprep.subr.mxu0 0.0
    %3029 = vmatpush2.msra.mxu0 0.0
    %3030 = vmatprep.subr.mxu0 0.0
    %3031 = vmatpush2.msra.mxu0 0.0
    %3032 = vmatprep.subr.mxu0 0.0
    %3033 = vmatpush2.msra.mxu0 0.0
    %3034 = vmatprep.subr.mxu0 0.0
    %3035 = vmatpush2.msra.mxu0 0.0
    %3036 = vmatprep.subr.mxu0 0.0
    %3037 = vmatpush2.msra.mxu0 0.0
    %3038 = vmatprep.mubr.f32.mxu0 0.0
    %v3039 = vand.u32 %v1303, 4294901760
    %v3040 = vsub.f32 %v1303, %v3039
    %3041 = vmatmul.mubr.f32.gmra.mxu0 %v3040
    %v3042 = vpop.f32.mrf.mxu0
    %v3043 = vadd.f32 %v2867, %v3042
    %v3044 = vpop.f32.mrf.mxu0
    %3045 = vmatprep.mubr.f32.mxu0 0.0
    %v3046 = vand.u32 %v1306, 4294901760
    %v3047 = vsub.f32 %v1306, %v3046
    %3048 = vmatmul.mubr.f32.gmra.mxu0 %v3047
    %v3049 = vpop.f32.mrf.mxu0
    %v3050 = vadd.f32 %v2873, %v3049
    %v3051 = vpop.f32.mrf.mxu0
    %3052 = vmatprep.mubr.f32.mxu0 0.0
    %v3053 = vand.u32 %v1309, 4294901760
    %v3054 = vsub.f32 %v1309, %v3053
    %3055 = vmatmul.mubr.f32.gmra.mxu0 %v3054
    %v3056 = vpop.f32.mrf.mxu0
    %v3057 = vadd.f32 %v2879, %v3056
    %v3058 = vpop.f32.mrf.mxu0
    %3059 = vmatprep.mubr.f32.mxu0 0.0
    %v3060 = vand.u32 %v1312, 4294901760
    %v3061 = vsub.f32 %v1312, %v3060
    %3062 = vmatmul.mubr.f32.gmra.mxu0 %v3061
    %v3063 = vpop.f32.mrf.mxu0
    %v3064 = vadd.f32 %v2885, %v3063
    %v3065 = vpop.f32.mrf.mxu0
    %3066 = vmatprep.mubr.f32.mxu0 0.0
    %v3067 = vand.u32 %v1315, 4294901760
    %v3068 = vsub.f32 %v1315, %v3067
    %3069 = vmatmul.mubr.f32.gmra.mxu0 %v3068
    %v3070 = vpop.f32.mrf.mxu0
    %v3071 = vadd.f32 %v2891, %v3070
    %v3072 = vpop.f32.mrf.mxu0
    %3073 = vmatprep.mubr.f32.mxu0 0.0
    %v3074 = vand.u32 %v1318, 4294901760
    %v3075 = vsub.f32 %v1318, %v3074
    %3076 = vmatmul.mubr.f32.gmra.mxu0 %v3075
    %v3077 = vpop.f32.mrf.mxu0
    %v3078 = vadd.f32 %v2897, %v3077
    %v3079 = vpop.f32.mrf.mxu0
    %3080 = vmatprep.mubr.f32.mxu0 0.0
    %v3081 = vand.u32 %v1321, 4294901760
    %v3082 = vsub.f32 %v1321, %v3081
    %3083 = vmatmul.mubr.f32.gmra.mxu0 %v3082
    %v3084 = vpop.f32.mrf.mxu0
    %v3085 = vadd.f32 %v2903, %v3084
    %v3086 = vpop.f32.mrf.mxu0
    %3087 = vmatprep.mubr.f32.mxu0 0.0
    %v3088 = vand.u32 %v1324, 4294901760
    %v3089 = vsub.f32 %v1324, %v3088
    %3090 = vmatmul.mubr.f32.gmra.mxu0 %v3089
    %v3091 = vpop.f32.mrf.mxu0
    %v3092 = vadd.f32 %v2909, %v3091
    %v3093 = vpop.f32.mrf.mxu0
    %3094 = vmatprep.mubr.f32.mxu0 0.0
    %v3095 = vand.u32 %v1327, 4294901760
    %v3096 = vsub.f32 %v1327, %v3095
    %3097 = vmatmul.mubr.f32.gmra.mxu0 %v3096
    %v3098 = vpop.f32.mrf.mxu0
    %v3099 = vadd.f32 %v2915, %v3098
    %v3100 = vpop.f32.mrf.mxu0
    %3101 = vmatprep.mubr.f32.mxu0 0.0
    %v3102 = vand.u32 %v1330, 4294901760
    %v3103 = vsub.f32 %v1330, %v3102
    %3104 = vmatmul.mubr.f32.gmra.mxu0 %v3103
    %v3105 = vpop.f32.mrf.mxu0
    %v3106 = vadd.f32 %v2921, %v3105
    %v3107 = vpop.f32.mrf.mxu0
    %3108 = vmatprep.mubr.f32.mxu0 0.0
    %v3109 = vand.u32 %v1333, 4294901760
    %v3110 = vsub.f32 %v1333, %v3109
    %3111 = vmatmul.mubr.f32.gmra.mxu0 %v3110
    %v3112 = vpop.f32.mrf.mxu0
    %v3113 = vadd.f32 %v2927, %v3112
    %v3114 = vpop.f32.mrf.mxu0
    %3115 = vmatprep.mubr.f32.mxu0 0.0
    %v3116 = vand.u32 %v1336, 4294901760
    %v3117 = vsub.f32 %v1336, %v3116
    %3118 = vmatmul.mubr.f32.gmra.mxu0 %v3117
    %v3119 = vpop.f32.mrf.mxu0
    %v3120 = vadd.f32 %v2933, %v3119
    %v3121 = vpop.f32.mrf.mxu0
    %3122 = vmatprep.mubr.f32.mxu0 0.0
    %v3123 = vand.u32 %v1339, 4294901760
    %v3124 = vsub.f32 %v1339, %v3123
    %3125 = vmatmul.mubr.f32.gmra.mxu0 %v3124
    %v3126 = vpop.f32.mrf.mxu0
    %v3127 = vadd.f32 %v2939, %v3126
    %v3128 = vpop.f32.mrf.mxu0
    %3129 = vmatprep.mubr.f32.mxu0 0.0
    %v3130 = vand.u32 %v1342, 4294901760
    %v3131 = vsub.f32 %v1342, %v3130
    %3132 = vmatmul.mubr.f32.gmra.mxu0 %v3131
    %v3133 = vpop.f32.mrf.mxu0
    %v3134 = vadd.f32 %v2945, %v3133
    %v3135 = vpop.f32.mrf.mxu0
    %3136 = vmatprep.mubr.f32.mxu0 0.0
    %v3137 = vand.u32 %v1345, 4294901760
    %v3138 = vsub.f32 %v1345, %v3137
    %3139 = vmatmul.mubr.f32.gmra.mxu0 %v3138
    %v3140 = vpop.f32.mrf.mxu0
    %v3141 = vadd.f32 %v2951, %v3140
    %v3142 = vpop.f32.mrf.mxu0
    %3143 = vmatprep.mubr.f32.mxu0 0.0
    %v3144 = vand.u32 %v1348, 4294901760
    %v3145 = vsub.f32 %v1348, %v3144
    %3146 = vmatmul.mubr.f32.gmra.mxu0 %v3145
    %v3147 = vpop.f32.mrf.mxu0
    %v3148 = vadd.f32 %v2957, %v3147
    %v3149 = vpop.f32.mrf.mxu0
    %3150 = vdwg.mxu0
    %3151 = vmatprep.subr.mxu0 0.0
    %3152 = vmatpush1.msra.mxu0 0.0
    %3153 = vmatprep.subr.mxu0 0.0
    %3154 = vmatpush1.msra.mxu0 0.0
    %3155 = vmatprep.subr.mxu0 0.0
    %3156 = vmatpush1.msra.mxu0 0.0
    %3157 = vmatprep.subr.mxu0 0.0
    %3158 = vmatpush1.msra.mxu0 0.0
    %3159 = vmatprep.subr.mxu0 0.0
    %3160 = vmatpush1.msra.mxu0 0.0
    %3161 = vmatprep.subr.mxu0 0.0
    %3162 = vmatpush1.msra.mxu0 0.0
    %3163 = vmatprep.subr.mxu0 0.0
    %3164 = vmatpush1.msra.mxu0 0.0
    %3165 = vmatprep.subr.mxu0 0.0
    %3166 = vmatpush1.msra.mxu0 0.0
    %3167 = vmatprep.subr.mxu0 0.0
    %3168 = vmatpush1.msra.mxu0 0.0
    %3169 = vmatprep.subr.mxu0 0.0
    %v3170 = vand.u32 %v2530, 4294901760
    %3171 = vmatpush1.msra.mxu0 %v3170
    %3172 = vmatprep.subr.mxu0 0.0
    %v3173 = vand.u32 %v2527, 4294901760
    %3174 = vmatpush1.msra.mxu0 %v3173
    %3175 = vmatprep.subr.mxu0 0.0
    %v3176 = vand.u32 %v2526, 4294901760
    %3177 = vmatpush1.msra.mxu0 %v3176
    %3178 = vmatprep.subr.mxu0 0.0
    %v3179 = vand.u32 %v2525, 4294901760
    %3180 = vmatpush1.msra.mxu0 %v3179
    %3181 = vmatprep.subr.mxu0 0.0
    %v3182 = vand.u32 %v2524, 4294901760
    %3183 = vmatpush1.msra.mxu0 %v3182
    %3184 = vmatprep.subr.mxu0 0.0
    %v3185 = vand.u32 %v2523, 4294901760
    %3186 = vmatpush1.msra.mxu0 %v3185
    %3187 = vmatprep.subr.mxu0 0.0
    %v3188 = vand.u32 %v2522, 4294901760
    %3189 = vmatpush1.msra.mxu0 %v3188
    %3190 = vmatprep.subr.mxu0 0.0
    %3191 = vmatpush2.msra.mxu0 0.0
    %3192 = vmatprep.subr.mxu0 0.0
    %3193 = vmatpush2.msra.mxu0 0.0
    %3194 = vmatprep.subr.mxu0 0.0
    %3195 = vmatpush2.msra.mxu0 0.0
    %3196 = vmatprep.subr.mxu0 0.0
    %3197 = vmatpush2.msra.mxu0 0.0
    %3198 = vmatprep.subr.mxu0 0.0
    %3199 = vmatpush2.msra.mxu0 0.0
    %3200 = vmatprep.subr.mxu0 0.0
    %3201 = vmatpush2.msra.mxu0 0.0
    %3202 = vmatprep.subr.mxu0 0.0
    %3203 = vmatpush2.msra.mxu0 0.0
    %3204 = vmatprep.subr.mxu0 0.0
    %3205 = vmatpush2.msra.mxu0 0.0
    %3206 = vmatprep.subr.mxu0 0.0
    %3207 = vmatpush2.msra.mxu0 0.0
    %3208 = vmatprep.subr.mxu0 0.0
    %3209 = vmatpush2.msra.mxu0 0.0
    %3210 = vmatprep.subr.mxu0 0.0
    %3211 = vmatpush2.msra.mxu0 0.0
    %3212 = vmatprep.subr.mxu0 0.0
    %3213 = vmatpush2.msra.mxu0 0.0
    %3214 = vmatprep.subr.mxu0 0.0
    %3215 = vmatpush2.msra.mxu0 0.0
    %3216 = vmatprep.subr.mxu0 0.0
    %3217 = vmatpush2.msra.mxu0 0.0
    %3218 = vmatprep.subr.mxu0 0.0
    %3219 = vmatpush2.msra.mxu0 0.0
    %3220 = vmatprep.subr.mxu0 0.0
    %3221 = vmatpush2.msra.mxu0 0.0
    %3222 = vmatprep.mubr.f32.mxu0 0.0
    %v3223 = vand.u32 %v1303, 4294901760
    %v3224 = vsub.f32 %v1303, %v3223
    %v3225 = vand.u32 %v3224, 4294901760
    %3226 = vmatmul.mubr.f32.gmra.mxu0 %v3225
    %v3227 = vpop.f32.mrf.mxu0
    %v3228 = vadd.f32 %v3043, %v3227
    %v3229 = vpop.f32.mrf.mxu0
    %3230 = vmatprep.mubr.f32.mxu0 0.0
    %v3231 = vand.u32 %v1306, 4294901760
    %v3232 = vsub.f32 %v1306, %v3231
    %v3233 = vand.u32 %v3232, 4294901760
    %3234 = vmatmul.mubr.f32.gmra.mxu0 %v3233
    %v3235 = vpop.f32.mrf.mxu0
    %v3236 = vadd.f32 %v3050, %v3235
    %v3237 = vpop.f32.mrf.mxu0
    %3238 = vmatprep.mubr.f32.mxu0 0.0
    %v3239 = vand.u32 %v1309, 4294901760
    %v3240 = vsub.f32 %v1309, %v3239
    %v3241 = vand.u32 %v3240, 4294901760
    %3242 = vmatmul.mubr.f32.gmra.mxu0 %v3241
    %v3243 = vpop.f32.mrf.mxu0
    %v3244 = vadd.f32 %v3057, %v3243
    %v3245 = vpop.f32.mrf.mxu0
    %3246 = vmatprep.mubr.f32.mxu0 0.0
    %v3247 = vand.u32 %v1312, 4294901760
    %v3248 = vsub.f32 %v1312, %v3247
    %v3249 = vand.u32 %v3248, 4294901760
    %3250 = vmatmul.mubr.f32.gmra.mxu0 %v3249
    %v3251 = vpop.f32.mrf.mxu0
    %v3252 = vadd.f32 %v3064, %v3251
    %v3253 = vpop.f32.mrf.mxu0
    %3254 = vmatprep.mubr.f32.mxu0 0.0
    %v3255 = vand.u32 %v1315, 4294901760
    %v3256 = vsub.f32 %v1315, %v3255
    %v3257 = vand.u32 %v3256, 4294901760
    %3258 = vmatmul.mubr.f32.gmra.mxu0 %v3257
    %v3259 = vpop.f32.mrf.mxu0
    %v3260 = vadd.f32 %v3071, %v3259
    %v3261 = vpop.f32.mrf.mxu0
    %3262 = vmatprep.mubr.f32.mxu0 0.0
    %v3263 = vand.u32 %v1318, 4294901760
    %v3264 = vsub.f32 %v1318, %v3263
    %v3265 = vand.u32 %v3264, 4294901760
    %3266 = vmatmul.mubr.f32.gmra.mxu0 %v3265
    %v3267 = vpop.f32.mrf.mxu0
    %v3268 = vadd.f32 %v3078, %v3267
    %v3269 = vpop.f32.mrf.mxu0
    %3270 = vmatprep.mubr.f32.mxu0 0.0
    %v3271 = vand.u32 %v1321, 4294901760
    %v3272 = vsub.f32 %v1321, %v3271
    %v3273 = vand.u32 %v3272, 4294901760
    %3274 = vmatmul.mubr.f32.gmra.mxu0 %v3273
    %v3275 = vpop.f32.mrf.mxu0
    %v3276 = vadd.f32 %v3085, %v3275
    %v3277 = vpop.f32.mrf.mxu0
    %3278 = vmatprep.mubr.f32.mxu0 0.0
    %v3279 = vand.u32 %v1324, 4294901760
    %v3280 = vsub.f32 %v1324, %v3279
    %v3281 = vand.u32 %v3280, 4294901760
    %3282 = vmatmul.mubr.f32.gmra.mxu0 %v3281
    %v3283 = vpop.f32.mrf.mxu0
    %v3284 = vadd.f32 %v3092, %v3283
    %v3285 = vpop.f32.mrf.mxu0
    %3286 = vmatprep.mubr.f32.mxu0 0.0
    %v3287 = vand.u32 %v1327, 4294901760
    %v3288 = vsub.f32 %v1327, %v3287
    %v3289 = vand.u32 %v3288, 4294901760
    %3290 = vmatmul.mubr.f32.gmra.mxu0 %v3289
    %v3291 = vpop.f32.mrf.mxu0
    %v3292 = vadd.f32 %v3099, %v3291
    %v3293 = vpop.f32.mrf.mxu0
    %3294 = vmatprep.mubr.f32.mxu0 0.0
    %v3295 = vand.u32 %v1330, 4294901760
    %v3296 = vsub.f32 %v1330, %v3295
    %v3297 = vand.u32 %v3296, 4294901760
    %3298 = vmatmul.mubr.f32.gmra.mxu0 %v3297
    %v3299 = vpop.f32.mrf.mxu0
    %v3300 = vadd.f32 %v3106, %v3299
    %v3301 = vpop.f32.mrf.mxu0
    %3302 = vmatprep.mubr.f32.mxu0 0.0
    %v3303 = vand.u32 %v1333, 4294901760
    %v3304 = vsub.f32 %v1333, %v3303
    %v3305 = vand.u32 %v3304, 4294901760
    %3306 = vmatmul.mubr.f32.gmra.mxu0 %v3305
    %v3307 = vpop.f32.mrf.mxu0
    %v3308 = vadd.f32 %v3113, %v3307
    %v3309 = vpop.f32.mrf.mxu0
    %3310 = vmatprep.mubr.f32.mxu0 0.0
    %v3311 = vand.u32 %v1336, 4294901760
    %v3312 = vsub.f32 %v1336, %v3311
    %v3313 = vand.u32 %v3312, 4294901760
    %3314 = vmatmul.mubr.f32.gmra.mxu0 %v3313
    %v3315 = vpop.f32.mrf.mxu0
    %v3316 = vadd.f32 %v3120, %v3315
    %v3317 = vpop.f32.mrf.mxu0
    %3318 = vmatprep.mubr.f32.mxu0 0.0
    %v3319 = vand.u32 %v1339, 4294901760
    %v3320 = vsub.f32 %v1339, %v3319
    %v3321 = vand.u32 %v3320, 4294901760
    %3322 = vmatmul.mubr.f32.gmra.mxu0 %v3321
    %v3323 = vpop.f32.mrf.mxu0
    %v3324 = vadd.f32 %v3127, %v3323
    %v3325 = vpop.f32.mrf.mxu0
    %3326 = vmatprep.mubr.f32.mxu0 0.0
    %v3327 = vand.u32 %v1342, 4294901760
    %v3328 = vsub.f32 %v1342, %v3327
    %v3329 = vand.u32 %v3328, 4294901760
    %3330 = vmatmul.mubr.f32.gmra.mxu0 %v3329
    %v3331 = vpop.f32.mrf.mxu0
    %v3332 = vadd.f32 %v3134, %v3331
    %v3333 = vpop.f32.mrf.mxu0
    %3334 = vmatprep.mubr.f32.mxu0 0.0
    %v3335 = vand.u32 %v1345, 4294901760
    %v3336 = vsub.f32 %v1345, %v3335
    %v3337 = vand.u32 %v3336, 4294901760
    %3338 = vmatmul.mubr.f32.gmra.mxu0 %v3337
    %v3339 = vpop.f32.mrf.mxu0
    %v3340 = vadd.f32 %v3141, %v3339
    %v3341 = vpop.f32.mrf.mxu0
    %3342 = vmatprep.mubr.f32.mxu0 0.0
    %v3343 = vand.u32 %v1348, 4294901760
    %v3344 = vsub.f32 %v1348, %v3343
    %v3345 = vand.u32 %v3344, 4294901760
    %3346 = vmatmul.mubr.f32.gmra.mxu0 %v3345
    %v3347 = vpop.f32.mrf.mxu0
    %v3348 = vadd.f32 %v3148, %v3347
    %v3349 = vpop.f32.mrf.mxu0
    %3350 = vdwg.mxu0
    %3351 = vmatprep.subr.mxu0 0.0
    %3352 = vmatpush1.msra.mxu0 0.0
    %3353 = vmatprep.subr.mxu0 0.0
    %3354 = vmatpush1.msra.mxu0 0.0
    %3355 = vmatprep.subr.mxu0 0.0
    %3356 = vmatpush1.msra.mxu0 0.0
    %3357 = vmatprep.subr.mxu0 0.0
    %3358 = vmatpush1.msra.mxu0 0.0
    %3359 = vmatprep.subr.mxu0 0.0
    %3360 = vmatpush1.msra.mxu0 0.0
    %3361 = vmatprep.subr.mxu0 0.0
    %3362 = vmatpush1.msra.mxu0 0.0
    %3363 = vmatprep.subr.mxu0 0.0
    %3364 = vmatpush1.msra.mxu0 0.0
    %3365 = vmatprep.subr.mxu0 0.0
    %3366 = vmatpush1.msra.mxu0 0.0
    %3367 = vmatprep.subr.mxu0 0.0
    %3368 = vmatpush1.msra.mxu0 0.0
    %3369 = vmatprep.subr.mxu0 0.0
    %v3370 = vand.u32 %v2530, 4294901760
    %v3371 = vsub.f32 %v2530, %v3370
    %v3372 = vand.u32 %v3371, 4294901760
    %3373 = vmatpush1.msra.mxu0 %v3372
    %3374 = vmatprep.subr.mxu0 0.0
    %v3375 = vand.u32 %v2527, 4294901760
    %v3376 = vsub.f32 %v2527, %v3375
    %v3377 = vand.u32 %v3376, 4294901760
    %3378 = vmatpush1.msra.mxu0 %v3377
    %3379 = vmatprep.subr.mxu0 0.0
    %v3380 = vand.u32 %v2526, 4294901760
    %v3381 = vsub.f32 %v2526, %v3380
    %v3382 = vand.u32 %v3381, 4294901760
    %3383 = vmatpush1.msra.mxu0 %v3382
    %3384 = vmatprep.subr.mxu0 0.0
    %v3385 = vand.u32 %v2525, 4294901760
    %v3386 = vsub.f32 %v2525, %v3385
    %v3387 = vand.u32 %v3386, 4294901760
    %3388 = vmatpush1.msra.mxu0 %v3387
    %3389 = vmatprep.subr.mxu0 0.0
    %v3390 = vand.u32 %v2524, 4294901760
    %v3391 = vsub.f32 %v2524, %v3390
    %v3392 = vand.u32 %v3391, 4294901760
    %3393 = vmatpush1.msra.mxu0 %v3392
    %3394 = vmatprep.subr.mxu0 0.0
    %v3395 = vand.u32 %v2523, 4294901760
    %v3396 = vsub.f32 %v2523, %v3395
    %v3397 = vand.u32 %v3396, 4294901760
    %3398 = vmatpush1.msra.mxu0 %v3397
    %3399 = vmatprep.subr.mxu0 0.0
    %v3400 = vand.u32 %v2522, 4294901760
    %v3401 = vsub.f32 %v2522, %v3400
    %v3402 = vand.u32 %v3401, 4294901760
    %3403 = vmatpush1.msra.mxu0 %v3402
    %3404 = vmatprep.subr.mxu0 0.0
    %3405 = vmatpush2.msra.mxu0 0.0
    %3406 = vmatprep.subr.mxu0 0.0
    %3407 = vmatpush2.msra.mxu0 0.0
    %3408 = vmatprep.subr.mxu0 0.0
    %3409 = vmatpush2.msra.mxu0 0.0
    %3410 = vmatprep.subr.mxu0 0.0
    %3411 = vmatpush2.msra.mxu0 0.0
    %3412 = vmatprep.subr.mxu0 0.0
    %3413 = vmatpush2.msra.mxu0 0.0
    %3414 = vmatprep.subr.mxu0 0.0
    %3415 = vmatpush2.msra.mxu0 0.0
    %3416 = vmatprep.subr.mxu0 0.0
    %3417 = vmatpush2.msra.mxu0 0.0
    %3418 = vmatprep.subr.mxu0 0.0
    %3419 = vmatpush2.msra.mxu0 0.0
    %3420 = vmatprep.subr.mxu0 0.0
    %3421 = vmatpush2.msra.mxu0 0.0
    %3422 = vmatprep.subr.mxu0 0.0
    %3423 = vmatpush2.msra.mxu0 0.0
    %3424 = vmatprep.subr.mxu0 0.0
    %3425 = vmatpush2.msra.mxu0 0.0
    %3426 = vmatprep.subr.mxu0 0.0
    %3427 = vmatpush2.msra.mxu0 0.0
    %3428 = vmatprep.subr.mxu0 0.0
    %3429 = vmatpush2.msra.mxu0 0.0
    %3430 = vmatprep.subr.mxu0 0.0
    %3431 = vmatpush2.msra.mxu0 0.0
    %3432 = vmatprep.subr.mxu0 0.0
    %3433 = vmatpush2.msra.mxu0 0.0
    %3434 = vmatprep.subr.mxu0 0.0
    %3435 = vmatpush2.msra.mxu0 0.0
    %3436 = vmatprep.mubr.f32.mxu0 0.0
    %v3437 = vand.u32 %v1303, 4294901760
    %3438 = vmatmul.mubr.f32.gmra.mxu0 %v3437
    %v3439 = vpop.f32.mrf.mxu0
    %v3440 = vadd.f32 %v3228, %v3439
    %v3441 = vpop.f32.mrf.mxu0
    %3442 = vmatprep.mubr.f32.mxu0 0.0
    %v3443 = vand.u32 %v1306, 4294901760
    %3444 = vmatmul.mubr.f32.gmra.mxu0 %v3443
    %v3445 = vpop.f32.mrf.mxu0
    %v3446 = vadd.f32 %v3236, %v3445
    %v3447 = vpop.f32.mrf.mxu0
    %3448 = vmatprep.mubr.f32.mxu0 0.0
    %v3449 = vand.u32 %v1309, 4294901760
    %3450 = vmatmul.mubr.f32.gmra.mxu0 %v3449
    %v3451 = vpop.f32.mrf.mxu0
    %v3452 = vadd.f32 %v3244, %v3451
    %v3453 = vpop.f32.mrf.mxu0
    %3454 = vmatprep.mubr.f32.mxu0 0.0
    %v3455 = vand.u32 %v1312, 4294901760
    %3456 = vmatmul.mubr.f32.gmra.mxu0 %v3455
    %v3457 = vpop.f32.mrf.mxu0
    %v3458 = vadd.f32 %v3252, %v3457
    %v3459 = vpop.f32.mrf.mxu0
    %3460 = vmatprep.mubr.f32.mxu0 0.0
    %v3461 = vand.u32 %v1315, 4294901760
    %3462 = vmatmul.mubr.f32.gmra.mxu0 %v3461
    %v3463 = vpop.f32.mrf.mxu0
    %v3464 = vadd.f32 %v3260, %v3463
    %v3465 = vpop.f32.mrf.mxu0
    %3466 = vmatprep.mubr.f32.mxu0 0.0
    %v3467 = vand.u32 %v1318, 4294901760
    %3468 = vmatmul.mubr.f32.gmra.mxu0 %v3467
    %v3469 = vpop.f32.mrf.mxu0
    %v3470 = vadd.f32 %v3268, %v3469
    %v3471 = vpop.f32.mrf.mxu0
    %3472 = vmatprep.mubr.f32.mxu0 0.0
    %v3473 = vand.u32 %v1321, 4294901760
    %3474 = vmatmul.mubr.f32.gmra.mxu0 %v3473
    %v3475 = vpop.f32.mrf.mxu0
    %v3476 = vadd.f32 %v3276, %v3475
    %v3477 = vpop.f32.mrf.mxu0
    %3478 = vmatprep.mubr.f32.mxu0 0.0
    %v3479 = vand.u32 %v1324, 4294901760
    %3480 = vmatmul.mubr.f32.gmra.mxu0 %v3479
    %v3481 = vpop.f32.mrf.mxu0
    %v3482 = vadd.f32 %v3284, %v3481
    %v3483 = vpop.f32.mrf.mxu0
    %3484 = vmatprep.mubr.f32.mxu0 0.0
    %v3485 = vand.u32 %v1327, 4294901760
    %3486 = vmatmul.mubr.f32.gmra.mxu0 %v3485
    %v3487 = vpop.f32.mrf.mxu0
    %v3488 = vadd.f32 %v3292, %v3487
    %v3489 = vpop.f32.mrf.mxu0
    %3490 = vmatprep.mubr.f32.mxu0 0.0
    %v3491 = vand.u32 %v1330, 4294901760
    %3492 = vmatmul.mubr.f32.gmra.mxu0 %v3491
    %v3493 = vpop.f32.mrf.mxu0
    %v3494 = vadd.f32 %v3300, %v3493
    %v3495 = vpop.f32.mrf.mxu0
    %3496 = vmatprep.mubr.f32.mxu0 0.0
    %v3497 = vand.u32 %v1333, 4294901760
    %3498 = vmatmul.mubr.f32.gmra.mxu0 %v3497
    %v3499 = vpop.f32.mrf.mxu0
    %v3500 = vadd.f32 %v3308, %v3499
    %v3501 = vpop.f32.mrf.mxu0
    %3502 = vmatprep.mubr.f32.mxu0 0.0
    %v3503 = vand.u32 %v1336, 4294901760
    %3504 = vmatmul.mubr.f32.gmra.mxu0 %v3503
    %v3505 = vpop.f32.mrf.mxu0
    %v3506 = vadd.f32 %v3316, %v3505
    %v3507 = vpop.f32.mrf.mxu0
    %3508 = vmatprep.mubr.f32.mxu0 0.0
    %v3509 = vand.u32 %v1339, 4294901760
    %3510 = vmatmul.mubr.f32.gmra.mxu0 %v3509
    %v3511 = vpop.f32.mrf.mxu0
    %v3512 = vadd.f32 %v3324, %v3511
    %v3513 = vpop.f32.mrf.mxu0
    %3514 = vmatprep.mubr.f32.mxu0 0.0
    %v3515 = vand.u32 %v1342, 4294901760
    %3516 = vmatmul.mubr.f32.gmra.mxu0 %v3515
    %v3517 = vpop.f32.mrf.mxu0
    %v3518 = vadd.f32 %v3332, %v3517
    %v3519 = vpop.f32.mrf.mxu0
    %3520 = vmatprep.mubr.f32.mxu0 0.0
    %v3521 = vand.u32 %v1345, 4294901760
    %3522 = vmatmul.mubr.f32.gmra.mxu0 %v3521
    %v3523 = vpop.f32.mrf.mxu0
    %v3524 = vadd.f32 %v3340, %v3523
    %v3525 = vpop.f32.mrf.mxu0
    %3526 = vmatprep.mubr.f32.mxu0 0.0
    %v3527 = vand.u32 %v1348, 4294901760
    %3528 = vmatmul.mubr.f32.gmra.mxu0 %v3527
    %v3529 = vpop.f32.mrf.mxu0
    %v3530 = vadd.f32 %v3348, %v3529
    %v3531 = vpop.f32.mrf.mxu0
    %3532 = vdwg.mxu0
    %3533 = vmatprep.subr.mxu0 0.0
    %3534 = vmatpush1.msra.mxu0 0.0
    %3535 = vmatprep.subr.mxu0 0.0
    %3536 = vmatpush1.msra.mxu0 0.0
    %3537 = vmatprep.subr.mxu0 0.0
    %3538 = vmatpush1.msra.mxu0 0.0
    %3539 = vmatprep.subr.mxu0 0.0
    %3540 = vmatpush1.msra.mxu0 0.0
    %3541 = vmatprep.subr.mxu0 0.0
    %3542 = vmatpush1.msra.mxu0 0.0
    %3543 = vmatprep.subr.mxu0 0.0
    %3544 = vmatpush1.msra.mxu0 0.0
    %3545 = vmatprep.subr.mxu0 0.0
    %3546 = vmatpush1.msra.mxu0 0.0
    %3547 = vmatprep.subr.mxu0 0.0
    %3548 = vmatpush1.msra.mxu0 0.0
    %3549 = vmatprep.subr.mxu0 0.0
    %3550 = vmatpush1.msra.mxu0 0.0
    %3551 = vmatprep.subr.mxu0 0.0
    %v3552 = vand.u32 %v2530, 4294901760
    %3553 = vmatpush1.msra.mxu0 %v3552
    %3554 = vmatprep.subr.mxu0 0.0
    %v3555 = vand.u32 %v2527, 4294901760
    %3556 = vmatpush1.msra.mxu0 %v3555
    %3557 = vmatprep.subr.mxu0 0.0
    %v3558 = vand.u32 %v2526, 4294901760
    %3559 = vmatpush1.msra.mxu0 %v3558
    %3560 = vmatprep.subr.mxu0 0.0
    %v3561 = vand.u32 %v2525, 4294901760
    %3562 = vmatpush1.msra.mxu0 %v3561
    %3563 = vmatprep.subr.mxu0 0.0
    %v3564 = vand.u32 %v2524, 4294901760
    %3565 = vmatpush1.msra.mxu0 %v3564
    %3566 = vmatprep.subr.mxu0 0.0
    %v3567 = vand.u32 %v2523, 4294901760
    %3568 = vmatpush1.msra.mxu0 %v3567
    %3569 = vmatprep.subr.mxu0 0.0
    %v3570 = vand.u32 %v2522, 4294901760
    %3571 = vmatpush1.msra.mxu0 %v3570
    %3572 = vmatprep.subr.mxu0 0.0
    %3573 = vmatpush2.msra.mxu0 0.0
    %3574 = vmatprep.subr.mxu0 0.0
    %3575 = vmatpush2.msra.mxu0 0.0
    %3576 = vmatprep.subr.mxu0 0.0
    %3577 = vmatpush2.msra.mxu0 0.0
    %3578 = vmatprep.subr.mxu0 0.0
    %3579 = vmatpush2.msra.mxu0 0.0
    %3580 = vmatprep.subr.mxu0 0.0
    %3581 = vmatpush2.msra.mxu0 0.0
    %3582 = vmatprep.subr.mxu0 0.0
    %3583 = vmatpush2.msra.mxu0 0.0
    %3584 = vmatprep.subr.mxu0 0.0
    %3585 = vmatpush2.msra.mxu0 0.0
    %3586 = vmatprep.subr.mxu0 0.0
    %3587 = vmatpush2.msra.mxu0 0.0
    %3588 = vmatprep.subr.mxu0 0.0
    %3589 = vmatpush2.msra.mxu0 0.0
    %3590 = vmatprep.subr.mxu0 0.0
    %3591 = vmatpush2.msra.mxu0 0.0
    %3592 = vmatprep.subr.mxu0 0.0
    %3593 = vmatpush2.msra.mxu0 0.0
    %3594 = vmatprep.subr.mxu0 0.0
    %3595 = vmatpush2.msra.mxu0 0.0
    %3596 = vmatprep.subr.mxu0 0.0
    %3597 = vmatpush2.msra.mxu0 0.0
    %3598 = vmatprep.subr.mxu0 0.0
    %3599 = vmatpush2.msra.mxu0 0.0
    %3600 = vmatprep.subr.mxu0 0.0
    %3601 = vmatpush2.msra.mxu0 0.0
    %3602 = vmatprep.subr.mxu0 0.0
    %3603 = vmatpush2.msra.mxu0 0.0
    %3604 = vmatprep.mubr.f32.mxu0 0.0
    %v3605 = vand.u32 %v1303, 4294901760
    %3606 = vmatmul.mubr.f32.gmra.mxu0 %v3605
    %v3607 = vpop.f32.mrf.mxu0
    %v3608 = vadd.f32 %v3440, %v3607
    %v3609 = vpop.f32.mrf.mxu0
    %3610 = vmatprep.mubr.f32.mxu0 0.0
    %v3611 = vand.u32 %v1306, 4294901760
    %3612 = vmatmul.mubr.f32.gmra.mxu0 %v3611
    %v3613 = vpop.f32.mrf.mxu0
    %v3614 = vadd.f32 %v3446, %v3613
    %v3615 = vpop.f32.mrf.mxu0
    %3616 = vmatprep.mubr.f32.mxu0 0.0
    %v3617 = vand.u32 %v1309, 4294901760
    %3618 = vmatmul.mubr.f32.gmra.mxu0 %v3617
    %v3619 = vpop.f32.mrf.mxu0
    %v3620 = vadd.f32 %v3452, %v3619
    %v3621 = vpop.f32.mrf.mxu0
    %3622 = vmatprep.mubr.f32.mxu0 0.0
    %v3623 = vand.u32 %v1312, 4294901760
    %3624 = vmatmul.mubr.f32.gmra.mxu0 %v3623
    %v3625 = vpop.f32.mrf.mxu0
    %v3626 = vadd.f32 %v3458, %v3625
    %v3627 = vpop.f32.mrf.mxu0
    %3628 = vmatprep.mubr.f32.mxu0 0.0
    %v3629 = vand.u32 %v1315, 4294901760
    %3630 = vmatmul.mubr.f32.gmra.mxu0 %v3629
    %v3631 = vpop.f32.mrf.mxu0
    %v3632 = vadd.f32 %v3464, %v3631
    %v3633 = vpop.f32.mrf.mxu0
    %3634 = vmatprep.mubr.f32.mxu0 0.0
    %v3635 = vand.u32 %v1318, 4294901760
    %3636 = vmatmul.mubr.f32.gmra.mxu0 %v3635
    %v3637 = vpop.f32.mrf.mxu0
    %v3638 = vadd.f32 %v3470, %v3637
    %v3639 = vpop.f32.mrf.mxu0
    %3640 = vmatprep.mubr.f32.mxu0 0.0
    %v3641 = vand.u32 %v1321, 4294901760
    %3642 = vmatmul.mubr.f32.gmra.mxu0 %v3641
    %v3643 = vpop.f32.mrf.mxu0
    %v3644 = vadd.f32 %v3476, %v3643
    %v3645 = vpop.f32.mrf.mxu0
    %3646 = vmatprep.mubr.f32.mxu0 0.0
    %v3647 = vand.u32 %v1324, 4294901760
    %3648 = vmatmul.mubr.f32.gmra.mxu0 %v3647
    %v3649 = vpop.f32.mrf.mxu0
    %v3650 = vadd.f32 %v3482, %v3649
    %v3651 = vpop.f32.mrf.mxu0
    %3652 = vmatprep.mubr.f32.mxu0 0.0
    %v3653 = vand.u32 %v1327, 4294901760
    %3654 = vmatmul.mubr.f32.gmra.mxu0 %v3653
    %v3655 = vpop.f32.mrf.mxu0
    %v3656 = vadd.f32 %v3488, %v3655
    %v3657 = vpop.f32.mrf.mxu0
    %3658 = vmatprep.mubr.f32.mxu0 0.0
    %v3659 = vand.u32 %v1330, 4294901760
    %3660 = vmatmul.mubr.f32.gmra.mxu0 %v3659
    %v3661 = vpop.f32.mrf.mxu0
    %v3662 = vadd.f32 %v3494, %v3661
    %v3663 = vpop.f32.mrf.mxu0
    %3664 = vmatprep.mubr.f32.mxu0 0.0
    %v3665 = vand.u32 %v1333, 4294901760
    %3666 = vmatmul.mubr.f32.gmra.mxu0 %v3665
    %v3667 = vpop.f32.mrf.mxu0
    %v3668 = vadd.f32 %v3500, %v3667
    %v3669 = vpop.f32.mrf.mxu0
    %3670 = vmatprep.mubr.f32.mxu0 0.0
    %v3671 = vand.u32 %v1336, 4294901760
    %3672 = vmatmul.mubr.f32.gmra.mxu0 %v3671
    %v3673 = vpop.f32.mrf.mxu0
    %v3674 = vadd.f32 %v3506, %v3673
    %v3675 = vpop.f32.mrf.mxu0
    %3676 = vmatprep.mubr.f32.mxu0 0.0
    %v3677 = vand.u32 %v1339, 4294901760
    %3678 = vmatmul.mubr.f32.gmra.mxu0 %v3677
    %v3679 = vpop.f32.mrf.mxu0
    %v3680 = vadd.f32 %v3512, %v3679
    %v3681 = vpop.f32.mrf.mxu0
    %3682 = vmatprep.mubr.f32.mxu0 0.0
    %v3683 = vand.u32 %v1342, 4294901760
    %3684 = vmatmul.mubr.f32.gmra.mxu0 %v3683
    %v3685 = vpop.f32.mrf.mxu0
    %v3686 = vadd.f32 %v3518, %v3685
    %v3687 = vpop.f32.mrf.mxu0
    %3688 = vmatprep.mubr.f32.mxu0 0.0
    %v3689 = vand.u32 %v1345, 4294901760
    %3690 = vmatmul.mubr.f32.gmra.mxu0 %v3689
    %v3691 = vpop.f32.mrf.mxu0
    %v3692 = vadd.f32 %v3524, %v3691
    %v3693 = vpop.f32.mrf.mxu0
    %3694 = vmatprep.mubr.f32.mxu0 0.0
    %v3695 = vand.u32 %v1348, 4294901760
    %3696 = vmatmul.mubr.f32.gmra.mxu0 %v3695
    %v3697 = vpop.f32.mrf.mxu0
    %v3698 = vadd.f32 %v3530, %v3697
    %v3699 = vpop.f32.mrf.mxu0
    %3700 = vdwg.mxu0
    %v3701 = vadd.f32 %v1202, 0.0
    %v3702 = vadd.f32 %v1208, 0.0
    %v3703 = vadd.f32 %v1214, 0.0
    %v3704 = vadd.f32 %v1220, 0.0
    %v3705 = vadd.f32 %v1226, 0.0
    %v3706 = vadd.f32 %v1232, 0.0
    %v3707 = vadd.f32 %v1238, 0.0
    %v3708 = vadd.f32 %v1244, 0.0
    %v3709 = vadd.f32 %v1250, 0.0
    %v3710 = vadd.f32 %v1256, 0.0
    %v3711 = vadd.f32 %v1262, 0.0
    %v3712 = vadd.f32 %v1268, 0.0
    %v3713 = vadd.f32 %v1274, 0.0
    %v3714 = vadd.f32 %v1280, 0.0
    %v3715 = vadd.f32 %v1286, 0.0
    %v3716 = vadd.f32 %v1292, 0.0
    %v3717 = vadd.f32 %v2429, 0.0
    %v3718 = vadd.f32 %v2435, 0.0
    %v3719 = vadd.f32 %v2441, 0.0
    %v3720 = vadd.f32 %v2447, 0.0
    %v3721 = vadd.f32 %v2453, 0.0
    %v3722 = vadd.f32 %v2459, 0.0
    %v3723 = vadd.f32 %v2465, 0.0
    %v3724 = vadd.f32 %v2471, 0.0
    %v3725 = vadd.f32 %v2477, 0.0
    %v3726 = vadd.f32 %v2483, 0.0
    %v3727 = vadd.f32 %v2489, 0.0
    %v3728 = vadd.f32 %v2495, 0.0
    %v3729 = vadd.f32 %v2501, 0.0
    %v3730 = vadd.f32 %v2507, 0.0
    %v3731 = vadd.f32 %v2513, 0.0
    %v3732 = vadd.f32 %v2519, 0.0
    %v3733 = vadd.f32 %v3608, 0.0
    %v3734 = vadd.f32 %v3614, 0.0
    %v3735 = vadd.f32 %v3620, 0.0
    %v3736 = vadd.f32 %v3626, 0.0
    %v3737 = vadd.f32 %v3632, 0.0
    %v3738 = vadd.f32 %v3638, 0.0
    %v3739 = vadd.f32 %v3644, 0.0
    %v3740 = vadd.f32 %v3650, 0.0
    %v3741 = vadd.f32 %v3656, 0.0
    %v3742 = vadd.f32 %v3662, 0.0
    %v3743 = vadd.f32 %v3668, 0.0
    %v3744 = vadd.f32 %v3674, 0.0
    %v3745 = vadd.f32 %v3680, 0.0
    %v3746 = vadd.f32 %v3686, 0.0
    %v3747 = vadd.f32 %v3692, 0.0
    %v3748 = vadd.f32 %v3698, 0.0
    %s3749 = sld [smem:[#allocation2]]
    %s3750 = sld [smem:[#allocation2 + $0x1]]
    %s3751 = sld [smem:[#allocation2 + $0x2]]
    %v3752 = vadd.f32 %v3701, %v3717
    %v3753 = vadd.f32 %v3702, %v3718
    %v3754 = vadd.f32 %v3703, %v3719
    %v3755 = vadd.f32 %v3704, %v3720
    %v3756 = vadd.f32 %v3705, %v3721
    %v3757 = vadd.f32 %v3706, %v3722
    %v3758 = vadd.f32 %v3707, %v3723
    %v3759 = vadd.f32 %v3708, %v3724
    %v3760 = vadd.f32 %v3709, %v3725
    %v3761 = vadd.f32 %v3710, %v3726
    %v3762 = vadd.f32 %v3711, %v3727
    %v3763 = vadd.f32 %v3712, %v3728
    %v3764 = vadd.f32 %v3713, %v3729
    %v3765 = vadd.f32 %v3714, %v3730
    %v3766 = vadd.f32 %v3715, %v3731
    %v3767 = vadd.f32 %v3716, %v3732
    %v3768 = vstv %s3750
    %v3769 = vadd.f32 %v3752, %v3768
    %v3770 = vadd.f32 %v3753, %v3768
    %v3771 = vadd.f32 %v3754, %v3768
    %v3772 = vadd.f32 %v3755, %v3768
    %v3773 = vadd.f32 %v3756, %v3768
    %v3774 = vadd.f32 %v3757, %v3768
    %v3775 = vadd.f32 %v3758, %v3768
    %v3776 = vadd.f32 %v3759, %v3768
    %v3777 = vadd.f32 %v3760, %v3768
    %v3778 = vadd.f32 %v3761, %v3768
    %v3779 = vadd.f32 %v3762, %v3768
    %v3780 = vadd.f32 %v3763, %v3768
    %v3781 = vadd.f32 %v3764, %v3768
    %v3782 = vadd.f32 %v3765, %v3768
    %v3783 = vadd.f32 %v3766, %v3768
    %v3784 = vadd.f32 %v3767, %v3768
    %v3785 = vmax.f32 %v3769, 0.0
    %v3786 = vmax.f32 %v3770, 0.0
    %v3787 = vmax.f32 %v3771, 0.0
    %v3788 = vmax.f32 %v3772, 0.0
    %v3789 = vmax.f32 %v3773, 0.0
    %v3790 = vmax.f32 %v3774, 0.0
    %v3791 = vmax.f32 %v3775, 0.0
    %v3792 = vmax.f32 %v3776, 0.0
    %v3793 = vmax.f32 %v3777, 0.0
    %v3794 = vmax.f32 %v3778, 0.0
    %v3795 = vmax.f32 %v3779, 0.0
    %v3796 = vmax.f32 %v3780, 0.0
    %v3797 = vmax.f32 %v3781, 0.0
    %v3798 = vmax.f32 %v3782, 0.0
    %v3799 = vmax.f32 %v3783, 0.0
    %v3800 = vmax.f32 %v3784, 0.0
    %v3801 = vadd.f32 %v3701, %v3733
    %v3802 = vadd.f32 %v3702, %v3734
    %v3803 = vadd.f32 %v3703, %v3735
    %v3804 = vadd.f32 %v3704, %v3736
    %v3805 = vadd.f32 %v3705, %v3737
    %v3806 = vadd.f32 %v3706, %v3738
    %v3807 = vadd.f32 %v3707, %v3739
    %v3808 = vadd.f32 %v3708, %v3740
    %v3809 = vadd.f32 %v3709, %v3741
    %v3810 = vadd.f32 %v3710, %v3742
    %v3811 = vadd.f32 %v3711, %v3743
    %v3812 = vadd.f32 %v3712, %v3744
    %v3813 = vadd.f32 %v3713, %v3745
    %v3814 = vadd.f32 %v3714, %v3746
    %v3815 = vadd.f32 %v3715, %v3747
    %v3816 = vadd.f32 %v3716, %v3748
    %v3817 = vstv %s3751
    %v3818 = vadd.f32 %v3801, %v3817
    %v3819 = vadd.f32 %v3802, %v3817
    %v3820 = vadd.f32 %v3803, %v3817
    %v3821 = vadd.f32 %v3804, %v3817
    %v3822 = vadd.f32 %v3805, %v3817
    %v3823 = vadd.f32 %v3806, %v3817
    %v3824 = vadd.f32 %v3807, %v3817
    %v3825 = vadd.f32 %v3808, %v3817
    %v3826 = vadd.f32 %v3809, %v3817
    %v3827 = vadd.f32 %v3810, %v3817
    %v3828 = vadd.f32 %v3811, %v3817
    %v3829 = vadd.f32 %v3812, %v3817
    %v3830 = vadd.f32 %v3813, %v3817
    %v3831 = vadd.f32 %v3814, %v3817
    %v3832 = vadd.f32 %v3815, %v3817
    %v3833 = vadd.f32 %v3816, %v3817
    %v3834 = vmax.f32 %v3818, 0.0
    %v3835 = vmax.f32 %v3819, 0.0
    %v3836 = vmax.f32 %v3820, 0.0
    %v3837 = vmax.f32 %v3821, 0.0
    %v3838 = vmax.f32 %v3822, 0.0
    %v3839 = vmax.f32 %v3823, 0.0
    %v3840 = vmax.f32 %v3824, 0.0
    %v3841 = vmax.f32 %v3825, 0.0
    %v3842 = vmax.f32 %v3826, 0.0
    %v3843 = vmax.f32 %v3827, 0.0
    %v3844 = vmax.f32 %v3828, 0.0
    %v3845 = vmax.f32 %v3829, 0.0
    %v3846 = vmax.f32 %v3830, 0.0
    %v3847 = vmax.f32 %v3831, 0.0
    %v3848 = vmax.f32 %v3832, 0.0
    %v3849 = vmax.f32 %v3833, 0.0
    %v3850 = vrsqrt.pop %v3785
    %v3851 = vmul.f32 %v3785, %v3850
    %vm3852 = vcmp.eq.f32.partialorder %v3785, inf
    %v3853 = vsel %vm3852, %v3785, %v3851
    %vm3854 = vcmp.eq.f32.partialorder %v3785, 0.0
    %v3855 = vand.u32 %v3785, 2147483648
    %v3856 = vsel %vm3854, %v3855, %v3853
    %v3857 = vrsqrt.pop %v3786
    %v3858 = vmul.f32 %v3786, %v3857
    %vm3859 = vcmp.eq.f32.partialorder %v3786, inf
    %v3860 = vsel %vm3859, %v3786, %v3858
    %vm3861 = vcmp.eq.f32.partialorder %v3786, 0.0
    %v3862 = vand.u32 %v3786, 2147483648
    %v3863 = vsel %vm3861, %v3862, %v3860
    %v3864 = vrsqrt.pop %v3787
    %v3865 = vmul.f32 %v3787, %v3864
    %vm3866 = vcmp.eq.f32.partialorder %v3787, inf
    %v3867 = vsel %vm3866, %v3787, %v3865
    %vm3868 = vcmp.eq.f32.partialorder %v3787, 0.0
    %v3869 = vand.u32 %v3787, 2147483648
    %v3870 = vsel %vm3868, %v3869, %v3867
    %v3871 = vrsqrt.pop %v3788
    %v3872 = vmul.f32 %v3788, %v3871
    %vm3873 = vcmp.eq.f32.partialorder %v3788, inf
    %v3874 = vsel %vm3873, %v3788, %v3872
    %vm3875 = vcmp.eq.f32.partialorder %v3788, 0.0
    %v3876 = vand.u32 %v3788, 2147483648
    %v3877 = vsel %vm3875, %v3876, %v3874
    %v3878 = vrsqrt.pop %v3789
    %v3879 = vmul.f32 %v3789, %v3878
    %vm3880 = vcmp.eq.f32.partialorder %v3789, inf
    %v3881 = vsel %vm3880, %v3789, %v3879
    %vm3882 = vcmp.eq.f32.partialorder %v3789, 0.0
    %v3883 = vand.u32 %v3789, 2147483648
    %v3884 = vsel %vm3882, %v3883, %v3881
    %v3885 = vrsqrt.pop %v3790
    %v3886 = vmul.f32 %v3790, %v3885
    %vm3887 = vcmp.eq.f32.partialorder %v3790, inf
    %v3888 = vsel %vm3887, %v3790, %v3886
    %vm3889 = vcmp.eq.f32.partialorder %v3790, 0.0
    %v3890 = vand.u32 %v3790, 2147483648
    %v3891 = vsel %vm3889, %v3890, %v3888
    %v3892 = vrsqrt.pop %v3791
    %v3893 = vmul.f32 %v3791, %v3892
    %vm3894 = vcmp.eq.f32.partialorder %v3791, inf
    %v3895 = vsel %vm3894, %v3791, %v3893
    %vm3896 = vcmp.eq.f32.partialorder %v3791, 0.0
    %v3897 = vand.u32 %v3791, 2147483648
    %v3898 = vsel %vm3896, %v3897, %v3895
    %v3899 = vrsqrt.pop %v3792
    %v3900 = vmul.f32 %v3792, %v3899
    %vm3901 = vcmp.eq.f32.partialorder %v3792, inf
    %v3902 = vsel %vm3901, %v3792, %v3900
    %vm3903 = vcmp.eq.f32.partialorder %v3792, 0.0
    %v3904 = vand.u32 %v3792, 2147483648
    %v3905 = vsel %vm3903, %v3904, %v3902
    %v3906 = vrsqrt.pop %v3793
    %v3907 = vmul.f32 %v3793, %v3906
    %vm3908 = vcmp.eq.f32.partialorder %v3793, inf
    %v3909 = vsel %vm3908, %v3793, %v3907
    %vm3910 = vcmp.eq.f32.partialorder %v3793, 0.0
    %v3911 = vand.u32 %v3793, 2147483648
    %v3912 = vsel %vm3910, %v3911, %v3909
    %v3913 = vrsqrt.pop %v3794
    %v3914 = vmul.f32 %v3794, %v3913
    %vm3915 = vcmp.eq.f32.partialorder %v3794, inf
    %v3916 = vsel %vm3915, %v3794, %v3914
    %vm3917 = vcmp.eq.f32.partialorder %v3794, 0.0
    %v3918 = vand.u32 %v3794, 2147483648
    %v3919 = vsel %vm3917, %v3918, %v3916
    %v3920 = vrsqrt.pop %v3795
    %v3921 = vmul.f32 %v3795, %v3920
    %vm3922 = vcmp.eq.f32.partialorder %v3795, inf
    %v3923 = vsel %vm3922, %v3795, %v3921
    %vm3924 = vcmp.eq.f32.partialorder %v3795, 0.0
    %v3925 = vand.u32 %v3795, 2147483648
    %v3926 = vsel %vm3924, %v3925, %v3923
    %v3927 = vrsqrt.pop %v3796
    %v3928 = vmul.f32 %v3796, %v3927
    %vm3929 = vcmp.eq.f32.partialorder %v3796, inf
    %v3930 = vsel %vm3929, %v3796, %v3928
    %vm3931 = vcmp.eq.f32.partialorder %v3796, 0.0
    %v3932 = vand.u32 %v3796, 2147483648
    %v3933 = vsel %vm3931, %v3932, %v3930
    %v3934 = vrsqrt.pop %v3797
    %v3935 = vmul.f32 %v3797, %v3934
    %vm3936 = vcmp.eq.f32.partialorder %v3797, inf
    %v3937 = vsel %vm3936, %v3797, %v3935
    %vm3938 = vcmp.eq.f32.partialorder %v3797, 0.0
    %v3939 = vand.u32 %v3797, 2147483648
    %v3940 = vsel %vm3938, %v3939, %v3937
    %v3941 = vrsqrt.pop %v3798
    %v3942 = vmul.f32 %v3798, %v3941
    %vm3943 = vcmp.eq.f32.partialorder %v3798, inf
    %v3944 = vsel %vm3943, %v3798, %v3942
    %vm3945 = vcmp.eq.f32.partialorder %v3798, 0.0
    %v3946 = vand.u32 %v3798, 2147483648
    %v3947 = vsel %vm3945, %v3946, %v3944
    %v3948 = vrsqrt.pop %v3799
    %v3949 = vmul.f32 %v3799, %v3948
    %vm3950 = vcmp.eq.f32.partialorder %v3799, inf
    %v3951 = vsel %vm3950, %v3799, %v3949
    %vm3952 = vcmp.eq.f32.partialorder %v3799, 0.0
    %v3953 = vand.u32 %v3799, 2147483648
    %v3954 = vsel %vm3952, %v3953, %v3951
    %v3955 = vrsqrt.pop %v3800
    %v3956 = vmul.f32 %v3800, %v3955
    %vm3957 = vcmp.eq.f32.partialorder %v3800, inf
    %v3958 = vsel %vm3957, %v3800, %v3956
    %vm3959 = vcmp.eq.f32.partialorder %v3800, 0.0
    %v3960 = vand.u32 %v3800, 2147483648
    %v3961 = vsel %vm3959, %v3960, %v3958
    %v3962 = vsub.f32 0.0, %v3856
    %v3963 = vsub.f32 0.0, %v3863
    %v3964 = vsub.f32 0.0, %v3870
    %v3965 = vsub.f32 0.0, %v3877
    %v3966 = vsub.f32 0.0, %v3884
    %v3967 = vsub.f32 0.0, %v3891
    %v3968 = vsub.f32 0.0, %v3898
    %v3969 = vsub.f32 0.0, %v3905
    %v3970 = vsub.f32 0.0, %v3912
    %v3971 = vsub.f32 0.0, %v3919
    %v3972 = vsub.f32 0.0, %v3926
    %v3973 = vsub.f32 0.0, %v3933
    %v3974 = vsub.f32 0.0, %v3940
    %v3975 = vsub.f32 0.0, %v3947
    %v3976 = vsub.f32 0.0, %v3954
    %v3977 = vsub.f32 0.0, %v3961
    %v3978 = vstv %s3749
    %v3979 = vmul.f32 %v3962, %v3978
    %v3980 = vmul.f32 %v3963, %v3978
    %v3981 = vmul.f32 %v3964, %v3978
    %v3982 = vmul.f32 %v3965, %v3978
    %v3983 = vmul.f32 %v3966, %v3978
    %v3984 = vmul.f32 %v3967, %v3978
    %v3985 = vmul.f32 %v3968, %v3978
    %v3986 = vmul.f32 %v3969, %v3978
    %v3987 = vmul.f32 %v3970, %v3978
    %v3988 = vmul.f32 %v3971, %v3978
    %v3989 = vmul.f32 %v3972, %v3978
    %v3990 = vmul.f32 %v3973, %v3978
    %v3991 = vmul.f32 %v3974, %v3978
    %v3992 = vmul.f32 %v3975, %v3978
    %v3993 = vmul.f32 %v3976, %v3978
    %v3994 = vmul.f32 %v3977, %v3978
    %v3995 = vmul.f32 %v3979, 1.442695
    %v3996 = vpow.pop %v3995
    %v3997 = vmul.f32 %v3980, 1.442695
    %v3998 = vpow.pop %v3997
    %v3999 = vmul.f32 %v3981, 1.442695
    %v4000 = vpow.pop %v3999
    %v4001 = vmul.f32 %v3982, 1.442695
    %v4002 = vpow.pop %v4001
    %v4003 = vmul.f32 %v3983, 1.442695
    %v4004 = vpow.pop %v4003
    %v4005 = vmul.f32 %v3984, 1.442695
    %v4006 = vpow.pop %v4005
    %v4007 = vmul.f32 %v3985, 1.442695
    %v4008 = vpow.pop %v4007
    %v4009 = vmul.f32 %v3986, 1.442695
    %v4010 = vpow.pop %v4009
    %v4011 = vmul.f32 %v3987, 1.442695
    %v4012 = vpow.pop %v4011
    %v4013 = vmul.f32 %v3988, 1.442695
    %v4014 = vpow.pop %v4013
    %v4015 = vmul.f32 %v3989, 1.442695
    %v4016 = vpow.pop %v4015
    %v4017 = vmul.f32 %v3990, 1.442695
    %v4018 = vpow.pop %v4017
    %v4019 = vmul.f32 %v3991, 1.442695
    %v4020 = vpow.pop %v4019
    %v4021 = vmul.f32 %v3992, 1.442695
    %v4022 = vpow.pop %v4021
    %v4023 = vmul.f32 %v3993, 1.442695
    %v4024 = vpow.pop %v4023
    %v4025 = vmul.f32 %v3994, 1.442695
    %v4026 = vpow.pop %v4025
    %v4027 = vsub.f32 0.0, %v3996
    %v4028 = vsub.f32 0.0, %v3998
    %v4029 = vsub.f32 0.0, %v4000
    %v4030 = vsub.f32 0.0, %v4002
    %v4031 = vsub.f32 0.0, %v4004
    %v4032 = vsub.f32 0.0, %v4006
    %v4033 = vsub.f32 0.0, %v4008
    %v4034 = vsub.f32 0.0, %v4010
    %v4035 = vsub.f32 0.0, %v4012
    %v4036 = vsub.f32 0.0, %v4014
    %v4037 = vsub.f32 0.0, %v4016
    %v4038 = vsub.f32 0.0, %v4018
    %v4039 = vsub.f32 0.0, %v4020
    %v4040 = vsub.f32 0.0, %v4022
    %v4041 = vsub.f32 0.0, %v4024
    %v4042 = vsub.f32 0.0, %v4026
    %v4043 = vrsqrt.pop %v3834
    %v4044 = vmul.f32 %v3834, %v4043
    %vm4045 = vcmp.eq.f32.partialorder %v3834, inf
    %v4046 = vsel %vm4045, %v3834, %v4044
    %vm4047 = vcmp.eq.f32.partialorder %v3834, 0.0
    %v4048 = vand.u32 %v3834, 2147483648
    %v4049 = vsel %vm4047, %v4048, %v4046
    %v4050 = vrsqrt.pop %v3835
    %v4051 = vmul.f32 %v3835, %v4050
    %vm4052 = vcmp.eq.f32.partialorder %v3835, inf
    %v4053 = vsel %vm4052, %v3835, %v4051
    %vm4054 = vcmp.eq.f32.partialorder %v3835, 0.0
    %v4055 = vand.u32 %v3835, 2147483648
    %v4056 = vsel %vm4054, %v4055, %v4053
    %v4057 = vrsqrt.pop %v3836
    %v4058 = vmul.f32 %v3836, %v4057
    %vm4059 = vcmp.eq.f32.partialorder %v3836, inf
    %v4060 = vsel %vm4059, %v3836, %v4058
    %vm4061 = vcmp.eq.f32.partialorder %v3836, 0.0
    %v4062 = vand.u32 %v3836, 2147483648
    %v4063 = vsel %vm4061, %v4062, %v4060
    %v4064 = vrsqrt.pop %v3837
    %v4065 = vmul.f32 %v3837, %v4064
    %vm4066 = vcmp.eq.f32.partialorder %v3837, inf
    %v4067 = vsel %vm4066, %v3837, %v4065
    %vm4068 = vcmp.eq.f32.partialorder %v3837, 0.0
    %v4069 = vand.u32 %v3837, 2147483648
    %v4070 = vsel %vm4068, %v4069, %v4067
    %v4071 = vrsqrt.pop %v3838
    %v4072 = vmul.f32 %v3838, %v4071
    %vm4073 = vcmp.eq.f32.partialorder %v3838, inf
    %v4074 = vsel %vm4073, %v3838, %v4072
    %vm4075 = vcmp.eq.f32.partialorder %v3838, 0.0
    %v4076 = vand.u32 %v3838, 2147483648
    %v4077 = vsel %vm4075, %v4076, %v4074
    %v4078 = vrsqrt.pop %v3839
    %v4079 = vmul.f32 %v3839, %v4078
    %vm4080 = vcmp.eq.f32.partialorder %v3839, inf
    %v4081 = vsel %vm4080, %v3839, %v4079
    %vm4082 = vcmp.eq.f32.partialorder %v3839, 0.0
    %v4083 = vand.u32 %v3839, 2147483648
    %v4084 = vsel %vm4082, %v4083, %v4081
    %v4085 = vrsqrt.pop %v3840
    %v4086 = vmul.f32 %v3840, %v4085
    %vm4087 = vcmp.eq.f32.partialorder %v3840, inf
    %v4088 = vsel %vm4087, %v3840, %v4086
    %vm4089 = vcmp.eq.f32.partialorder %v3840, 0.0
    %v4090 = vand.u32 %v3840, 2147483648
    %v4091 = vsel %vm4089, %v4090, %v4088
    %v4092 = vrsqrt.pop %v3841
    %v4093 = vmul.f32 %v3841, %v4092
    %vm4094 = vcmp.eq.f32.partialorder %v3841, inf
    %v4095 = vsel %vm4094, %v3841, %v4093
    %vm4096 = vcmp.eq.f32.partialorder %v3841, 0.0
    %v4097 = vand.u32 %v3841, 2147483648
    %v4098 = vsel %vm4096, %v4097, %v4095
    %v4099 = vrsqrt.pop %v3842
    %v4100 = vmul.f32 %v3842, %v4099
    %vm4101 = vcmp.eq.f32.partialorder %v3842, inf
    %v4102 = vsel %vm4101, %v3842, %v4100
    %vm4103 = vcmp.eq.f32.partialorder %v3842, 0.0
    %v4104 = vand.u32 %v3842, 2147483648
    %v4105 = vsel %vm4103, %v4104, %v4102
    %v4106 = vrsqrt.pop %v3843
    %v4107 = vmul.f32 %v3843, %v4106
    %vm4108 = vcmp.eq.f32.partialorder %v3843, inf
    %v4109 = vsel %vm4108, %v3843, %v4107
    %vm4110 = vcmp.eq.f32.partialorder %v3843, 0.0
    %v4111 = vand.u32 %v3843, 2147483648
    %v4112 = vsel %vm4110, %v4111, %v4109
    %v4113 = vrsqrt.pop %v3844
    %v4114 = vmul.f32 %v3844, %v4113
    %vm4115 = vcmp.eq.f32.partialorder %v3844, inf
    %v4116 = vsel %vm4115, %v3844, %v4114
    %vm4117 = vcmp.eq.f32.partialorder %v3844, 0.0
    %v4118 = vand.u32 %v3844, 2147483648
    %v4119 = vsel %vm4117, %v4118, %v4116
    %v4120 = vrsqrt.pop %v3845
    %v4121 = vmul.f32 %v3845, %v4120
    %vm4122 = vcmp.eq.f32.partialorder %v3845, inf
    %v4123 = vsel %vm4122, %v3845, %v4121
    %vm4124 = vcmp.eq.f32.partialorder %v3845, 0.0
    %v4125 = vand.u32 %v3845, 2147483648
    %v4126 = vsel %vm4124, %v4125, %v4123
    %v4127 = vrsqrt.pop %v3846
    %v4128 = vmul.f32 %v3846, %v4127
    %vm4129 = vcmp.eq.f32.partialorder %v3846, inf
    %v4130 = vsel %vm4129, %v3846, %v4128
    %vm4131 = vcmp.eq.f32.partialorder %v3846, 0.0
    %v4132 = vand.u32 %v3846, 2147483648
    %v4133 = vsel %vm4131, %v4132, %v4130
    %v4134 = vrsqrt.pop %v3847
    %v4135 = vmul.f32 %v3847, %v4134
    %vm4136 = vcmp.eq.f32.partialorder %v3847, inf
    %v4137 = vsel %vm4136, %v3847, %v4135
    %vm4138 = vcmp.eq.f32.partialorder %v3847, 0.0
    %v4139 = vand.u32 %v3847, 2147483648
    %v4140 = vsel %vm4138, %v4139, %v4137
    %v4141 = vrsqrt.pop %v3848
    %v4142 = vmul.f32 %v3848, %v4141
    %vm4143 = vcmp.eq.f32.partialorder %v3848, inf
    %v4144 = vsel %vm4143, %v3848, %v4142
    %vm4145 = vcmp.eq.f32.partialorder %v3848, 0.0
    %v4146 = vand.u32 %v3848, 2147483648
    %v4147 = vsel %vm4145, %v4146, %v4144
    %v4148 = vrsqrt.pop %v3849
    %v4149 = vmul.f32 %v3849, %v4148
    %vm4150 = vcmp.eq.f32.partialorder %v3849, inf
    %v4151 = vsel %vm4150, %v3849, %v4149
    %vm4152 = vcmp.eq.f32.partialorder %v3849, 0.0
    %v4153 = vand.u32 %v3849, 2147483648
    %v4154 = vsel %vm4152, %v4153, %v4151
    %v4155 = vsub.f32 0.0, %v4049
    %v4156 = vsub.f32 0.0, %v4056
    %v4157 = vsub.f32 0.0, %v4063
    %v4158 = vsub.f32 0.0, %v4070
    %v4159 = vsub.f32 0.0, %v4077
    %v4160 = vsub.f32 0.0, %v4084
    %v4161 = vsub.f32 0.0, %v4091
    %v4162 = vsub.f32 0.0, %v4098
    %v4163 = vsub.f32 0.0, %v4105
    %v4164 = vsub.f32 0.0, %v4112
    %v4165 = vsub.f32 0.0, %v4119
    %v4166 = vsub.f32 0.0, %v4126
    %v4167 = vsub.f32 0.0, %v4133
    %v4168 = vsub.f32 0.0, %v4140
    %v4169 = vsub.f32 0.0, %v4147
    %v4170 = vsub.f32 0.0, %v4154
    %v4171 = vmul.f32 %v4155, %v3978
    %v4172 = vmul.f32 %v4156, %v3978
    %v4173 = vmul.f32 %v4157, %v3978
    %v4174 = vmul.f32 %v4158, %v3978
    %v4175 = vmul.f32 %v4159, %v3978
    %v4176 = vmul.f32 %v4160, %v3978
    %v4177 = vmul.f32 %v4161, %v3978
    %v4178 = vmul.f32 %v4162, %v3978
    %v4179 = vmul.f32 %v4163, %v3978
    %v4180 = vmul.f32 %v4164, %v3978
    %v4181 = vmul.f32 %v4165, %v3978
    %v4182 = vmul.f32 %v4166, %v3978
    %v4183 = vmul.f32 %v4167, %v3978
    %v4184 = vmul.f32 %v4168, %v3978
    %v4185 = vmul.f32 %v4169, %v3978
    %v4186 = vmul.f32 %v4170, %v3978
    %v4187 = vmul.f32 %v4171, 1.442695
    %v4188 = vpow.pop %v4187
    %v4189 = vmul.f32 %v4172, 1.442695
    %v4190 = vpow.pop %v4189
    %v4191 = vmul.f32 %v4173, 1.442695
    %v4192 = vpow.pop %v4191
    %v4193 = vmul.f32 %v4174, 1.442695
    %v4194 = vpow.pop %v4193
    %v4195 = vmul.f32 %v4175, 1.442695
    %v4196 = vpow.pop %v4195
    %v4197 = vmul.f32 %v4176, 1.442695
    %v4198 = vpow.pop %v4197
    %v4199 = vmul.f32 %v4177, 1.442695
    %v4200 = vpow.pop %v4199
    %v4201 = vmul.f32 %v4178, 1.442695
    %v4202 = vpow.pop %v4201
    %v4203 = vmul.f32 %v4179, 1.442695
    %v4204 = vpow.pop %v4203
    %v4205 = vmul.f32 %v4180, 1.442695
    %v4206 = vpow.pop %v4205
    %v4207 = vmul.f32 %v4181, 1.442695
    %v4208 = vpow.pop %v4207
    %v4209 = vmul.f32 %v4182, 1.442695
    %v4210 = vpow.pop %v4209
    %v4211 = vmul.f32 %v4183, 1.442695
    %v4212 = vpow.pop %v4211
    %v4213 = vmul.f32 %v4184, 1.442695
    %v4214 = vpow.pop %v4213
    %v4215 = vmul.f32 %v4185, 1.442695
    %v4216 = vpow.pop %v4215
    %v4217 = vmul.f32 %v4186, 1.442695
    %v4218 = vpow.pop %v4217
    %v4219 = vsub.f32 %v4027, %v4188
    %v4220 = vsub.f32 %v4028, %v4190
    %v4221 = vsub.f32 %v4029, %v4192
    %v4222 = vsub.f32 %v4030, %v4194
    %v4223 = vsub.f32 %v4031, %v4196
    %v4224 = vsub.f32 %v4032, %v4198
    %v4225 = vsub.f32 %v4033, %v4200
    %v4226 = vsub.f32 %v4034, %v4202
    %v4227 = vsub.f32 %v4035, %v4204
    %v4228 = vsub.f32 %v4036, %v4206
    %v4229 = vsub.f32 %v4037, %v4208
    %v4230 = vsub.f32 %v4038, %v4210
    %v4231 = vsub.f32 %v4039, %v4212
    %v4232 = vsub.f32 %v4040, %v4214
    %v4233 = vsub.f32 %v4041, %v4216
    %v4234 = vsub.f32 %v4042, %v4218
    %4251 = vset.pattern.permute.xlu0 0
    %4252 = vperm.xlu0 %4251, %v4219
    %v4253 = vpop.permute.xlu0 %4252
    %4254 = vset.pattern.permute.xlu0 0
    %4255 = vperm.xlu0 %4254, %v4220
    %v4256 = vpop.permute.xlu0 %4255
    %4257 = vset.pattern.permute.xlu0 0
    %4258 = vperm.xlu0 %4257, %v4221
    %v4259 = vpop.permute.xlu0 %4258
    %4260 = vset.pattern.permute.xlu0 0
    %4261 = vperm.xlu0 %4260, %v4222
    %v4262 = vpop.permute.xlu0 %4261
    %4263 = vset.pattern.permute.xlu0 0
    %4264 = vperm.xlu0 %4263, %v4223
    %v4265 = vpop.permute.xlu0 %4264
    %4266 = vset.pattern.permute.xlu0 0
    %4267 = vperm.xlu0 %4266, %v4224
    %v4268 = vpop.permute.xlu0 %4267
    %4269 = vset.pattern.permute.xlu0 0
    %4270 = vperm.xlu0 %4269, %v4225
    %v4271 = vpop.permute.xlu0 %4270
    %4272 = vset.pattern.permute.xlu0 0
    %4273 = vperm.xlu0 %4272, %v4226
    %v4274 = vpop.permute.xlu0 %4273
    %4275 = vset.pattern.permute.xlu0 0
    %4276 = vperm.xlu0 %4275, %v4227
    %v4277 = vpop.permute.xlu0 %4276
    %4278 = vset.pattern.permute.xlu0 0
    %4279 = vperm.xlu0 %4278, %v4228
    %v4280 = vpop.permute.xlu0 %4279
    %4281 = vset.pattern.permute.xlu0 0
    %4282 = vperm.xlu0 %4281, %v4229
    %v4283 = vpop.permute.xlu0 %4282
    %4284 = vset.pattern.permute.xlu0 0
    %4285 = vperm.xlu0 %4284, %v4230
    %v4286 = vpop.permute.xlu0 %4285
    %4287 = vset.pattern.permute.xlu0 0
    %4288 = vperm.xlu0 %4287, %v4231
    %v4289 = vpop.permute.xlu0 %4288
    %4290 = vset.pattern.permute.xlu0 0
    %4291 = vperm.xlu0 %4290, %v4232
    %v4292 = vpop.permute.xlu0 %4291
    %4293 = vset.pattern.permute.xlu0 0
    %4294 = vperm.xlu0 %4293, %v4233
    %v4295 = vpop.permute.xlu0 %4294
    %4296 = vset.pattern.permute.xlu0 0
    %4297 = vperm.xlu0 %4296, %v4234
    %v4298 = vpop.permute.xlu0 %4297
    %v4299 = vlaneseq
    %v4300 = vand.u32 %v4299, 127
    %v4301 = vlaneseq
    %v4302 = vshrl.u32 %v4301, 7
    %v4303 = vsub.s32 %v4300, %v4302
    %v4304 = vrot.slane %v4253, %v4303
    %v4305 = vadd.s32 %v4300, 4294967288
    %v4306 = vlaneseq
    %v4307 = vshrl.u32 %v4306, 7
    %v4308 = vsub.s32 %v4305, %v4307
    %v4309 = vrot.slane %v4256, %v4308
    %vm4310 = vcmask 130112
    %v4311 = vsel %vm4310, %v4309, %v4304
    %v4312 = vadd.s32 %v4300, 4294967280
    %v4313 = vlaneseq
    %v4314 = vshrl.u32 %v4313, 7
    %v4315 = vsub.s32 %v4312, %v4314
    %v4316 = vrot.slane %v4259, %v4315
    %vm4317 = vcmask 195712
    %v4318 = vsel %vm4317, %v4316, %v4311
    %v4319 = vadd.s32 %v4300, 4294967272
    %v4320 = vlaneseq
    %v4321 = vshrl.u32 %v4320, 7
    %v4322 = vsub.s32 %v4319, %v4321
    %v4323 = vrot.slane %v4262, %v4322
    %vm4324 = vcmask 261312
    %v4325 = vsel %vm4324, %v4323, %v4318
    %v4326 = vadd.s32 %v4300, 4294967264
    %v4327 = vlaneseq
    %v4328 = vshrl.u32 %v4327, 7
    %v4329 = vsub.s32 %v4326, %v4328
    %v4330 = vrot.slane %v4265, %v4329
    %vm4331 = vcmask 326912
    %v4332 = vsel %vm4331, %v4330, %v4325
    %v4333 = vadd.s32 %v4300, 4294967256
    %v4334 = vlaneseq
    %v4335 = vshrl.u32 %v4334, 7
    %v4336 = vsub.s32 %v4333, %v4335
    %v4337 = vrot.slane %v4268, %v4336
    %vm4338 = vcmask 392512
    %v4339 = vsel %vm4338, %v4337, %v4332
    %v4340 = vadd.s32 %v4300, 4294967248
    %v4341 = vlaneseq
    %v4342 = vshrl.u32 %v4341, 7
    %v4343 = vsub.s32 %v4340, %v4342
    %v4344 = vrot.slane %v4271, %v4343
    %vm4345 = vcmask 458112
    %v4346 = vsel %vm4345, %v4344, %v4339
    %v4347 = vadd.s32 %v4300, 4294967240
    %v4348 = vlaneseq
    %v4349 = vshrl.u32 %v4348, 7
    %v4350 = vsub.s32 %v4347, %v4349
    %v4351 = vrot.slane %v4274, %v4350
    %vm4352 = vcmask 523712
    %v4353 = vsel %vm4352, %v4351, %v4346
    %v4354 = vadd.s32 %v4300, 4294967232
    %v4355 = vlaneseq
    %v4356 = vshrl.u32 %v4355, 7
    %v4357 = vsub.s32 %v4354, %v4356
    %v4358 = vrot.slane %v4277, %v4357
    %vm4359 = vcmask 589312
    %v4360 = vsel %vm4359, %v4358, %v4353
    %v4361 = vadd.s32 %v4300, 4294967224
    %v4362 = vlaneseq
    %v4363 = vshrl.u32 %v4362, 7
    %v4364 = vsub.s32 %v4361, %v4363
    %v4365 = vrot.slane %v4280, %v4364
    %vm4366 = vcmask 654912
    %v4367 = vsel %vm4366, %v4365, %v4360
    %v4368 = vadd.s32 %v4300, 4294967216
    %v4369 = vlaneseq
    %v4370 = vshrl.u32 %v4369, 7
    %v4371 = vsub.s32 %v4368, %v4370
    %v4372 = vrot.slane %v4283, %v4371
    %vm4373 = vcmask 720512
    %v4374 = vsel %vm4373, %v4372, %v4367
    %v4375 = vadd.s32 %v4300, 4294967208
    %v4376 = vlaneseq
    %v4377 = vshrl.u32 %v4376, 7
    %v4378 = vsub.s32 %v4375, %v4377
    %v4379 = vrot.slane %v4286, %v4378
    %vm4380 = vcmask 786112
    %v4381 = vsel %vm4380, %v4379, %v4374
    %v4382 = vadd.s32 %v4300, 4294967200
    %v4383 = vlaneseq
    %v4384 = vshrl.u32 %v4383, 7
    %v4385 = vsub.s32 %v4382, %v4384
    %v4386 = vrot.slane %v4289, %v4385
    %vm4387 = vcmask 851712
    %v4388 = vsel %vm4387, %v4386, %v4381
    %v4389 = vadd.s32 %v4300, 4294967192
    %v4390 = vlaneseq
    %v4391 = vshrl.u32 %v4390, 7
    %v4392 = vsub.s32 %v4389, %v4391
    %v4393 = vrot.slane %v4292, %v4392
    %vm4394 = vcmask 917312
    %v4395 = vsel %vm4394, %v4393, %v4388
    %v4396 = vadd.s32 %v4300, 4294967184
    %v4397 = vlaneseq
    %v4398 = vshrl.u32 %v4397, 7
    %v4399 = vsub.s32 %v4396, %v4398
    %v4400 = vrot.slane %v4295, %v4399
    %vm4401 = vcmask 982912
    %v4402 = vsel %vm4401, %v4400, %v4395
    %v4403 = vadd.s32 %v4300, 4294967176
    %v4404 = vlaneseq
    %v4405 = vshrl.u32 %v4404, 7
    %v4406 = vsub.s32 %v4403, %v4405
    %v4407 = vrot.slane %v4298, %v4406
    %vm4408 = vcmask 1048512
    %v4409 = vsel %vm4408, %v4407, %v4402
    %4411 = vst [vmem:[#allocation5] sm:$0x1] %v4409
    // Predicated region
    $region26: #{tpu_custom_call.1} parent=1 // pred_check
      _
    $region27: #{tpu_custom_call.1} parent=1 // pred_check_branch
      %4413 = sbr.rel (0) target = $region29
    $region28: #{tpu_custom_call.1} parent=1 // pred_region
      %s4415 = ssub.s32 16, 16
      %4416 = vsyncadd [#allocation3], %s4415
      %s4418 = sshll.u32 [#allocation5], 4
      %s4419 = int_to_ptr.vmem [resolvable:$true] %s4418
      %4421 = dma.vmem_to_hbm [thread:$0]  %s4419, 16, %s5, [#allocation3]
    $region29: #{tpu_custom_call.1} parent=1 // pred_fallthru
      _
    // Predicated region
    $region30: #{tpu_custom_call.1} parent=1 // pred_check
      _
    $region31: #{tpu_custom_call.1} parent=1 // pred_check_branch
      %4423 = sbr.rel (0) target = $region33
    $region32: #{tpu_custom_call.1} parent=1 // pred_region
      %4424 = dma.done [#allocation3], 16
    $region33: #{tpu_custom_call.1} parent=1 // pred_fallthru
      _
    %4425 = vsyncpa [#allocation3], 1
    %4426 = vsyncpa [#allocation4], 1

</llo_original>
